<compile_context>
chip_gen: v5e
topology: v5e:2x2
jax: 0.10.0
libtpu: 0.0.40
codegen_flags: <defaults>
</compile_context>

<pallas_src>
import jax
import jax.numpy as jnp
import numpy as np
from jax import lax
from jax.experimental import pallas as pl
from jax.experimental.pallas import tpu as pltpu

EPS = 1e-5
_MXU_DTYPE = jnp.bfloat16   # MXU operand dtype; accumulation stays float32.


# ------------------------- Pallas kernels -------------------------

def _make_bnrelu_conv3x3_kernel(*, s, H, W, Ho, Wo, Hq, Cin, Cout, TR, equal):
    """Fused:  relu(bn1(x)) -> 3x3 conv (stride s) -> relu(bn2(.))  ==> y1 (padded)
    plus, when in/out planes differ, the 1x1 strided shortcut conv on relu(bn1(x)).

    The input block is the zero-padded image, repacked into s*s parity planes
    (concatenated along rows) so every 3x3 tap is a contiguous window.
    """
    M_c = TR * Wo   # rows of the im2col slab handled per chunk

    def kernel(x_ref, s1_ref, h1_ref, s2_ref, h2_ref, w1_ref, *rest):
        if equal:
            y1_ref, col_ref = rest
            wsc_ref = sc_ref = None
        else:
            wsc_ref, y1_ref, sc_ref, col_ref = rest

        # y1 is emitted pre-padded (zero halo) so conv2 needs no wrapper pad.
        y1_ref[...] = jnp.zeros_like(y1_ref)

        sc1 = s1_ref[...].reshape(1, 1, Cin)
        sh1 = h1_ref[...].reshape(1, 1, Cin)

        for r_start in range(0, Ho, TR):            # static unroll over row chunks
            i_idx = lax.broadcasted_iota(jnp.int32, (TR, Wo, 1), 0) + r_start
            j_idx = lax.broadcasted_iota(jnp.int32, (TR, Wo, 1), 1)
            center = None
            for kh in range(3):
                for kw in range(3):
                    g = (kh % s) * s + (kw % s)     # parity plane (always 0 if s == 1)
                    r0 = kh // s
                    c0 = kw // s
                    row0 = g * Hq + r_start + r0
                    tap = x_ref[0, row0:row0 + TR, c0:c0 + Wo, :]     # [TR, Wo, Cin]
                    # Fused BN1 + ReLU.  The zero-pad halo must stay zero after
                    # BN (bn(0) = shift != 0), so mask it explicitly.
                    t = jnp.maximum(tap * sc1 + sh1, 0.0)
                    r = s * i_idx + kh              # row in the padded image
                    c = s * j_idx + kw              # col in the padded image
                    inside = (r >= 1) & (r <= H) & (c >= 1) & (c <= W)
                    t = jnp.where(inside, t, 0.0)
                    t2 = t.reshape(M_c, Cin)
                    k = kh * 3 + kw
                    col_ref[:, k * Cin:(k + 1) * Cin] = t2
                    if (not equal) and kh == 1 and kw == 1:
                        center = t2                 # == relu(bn1(x)) subsampled at stride s
            # Single wide-K MXU matmul over all 9 taps (K = 9*Cin), bf16 operands,
            # f32 accumulation; BN2 + ReLU fused as the epilogue.
            acc = jnp.dot(col_ref[...].astype(_MXU_DTYPE), w1_ref[...],
                          preferred_element_type=jnp.float32)
            y1 = jnp.maximum(acc * s2_ref[...] + h2_ref[...], 0.0)
            y1_ref[0, 1 + r_start:1 + r_start + TR, 1:1 + Wo, :] = (
                y1.reshape(TR, Wo, Cout).astype(y1_ref.dtype))
            if not equal:
                # Fused 1x1 strided shortcut conv (reuses the centre tap).
                sc = jnp.dot(center.astype(_MXU_DTYPE), wsc_ref[...],
                             preferred_element_type=jnp.float32)
                sc_ref[0, r_start * Wo:(r_start + TR) * Wo, :] = sc.astype(sc_ref.dtype)

    return kernel


def _make_conv3x3_add_kernel(*, Ho, Wo, Cout, TR):
    """Fused:  3x3 conv (stride 1, zero-padded input) + residual add."""
    M_c = TR * Wo

    def kernel(x_ref, w2_ref, res_ref, o_ref, col_ref):
        for r_start in range(0, Ho, TR):
            for kh in range(3):
                for kw in range(3):
                    row0 = r_start + kh
                    tap = x_ref[0, row0:row0 + TR, kw:kw + Wo, :]     # [TR, Wo, Cout]
                    k = kh * 3 + kw
                    col_ref[:, k * Cout:(k + 1) * Cout] = tap.reshape(M_c, Cout)
            acc = jnp.dot(col_ref[...].astype(_MXU_DTYPE), w2_ref[...],
                          preferred_element_type=jnp.float32)
            lo = r_start * Wo
            hi = lo + M_c
            o_ref[0, lo:hi, :] = (acc + res_ref[0, lo:hi, :]).astype(o_ref.dtype)

    return kernel


# ------------------------- wrappers -------------------------

def _pad_hw(x_nhwc):
    return jnp.pad(x_nhwc, ((0, 0), (1, 1), (1, 1), (0, 0)))


def _stride_decompose(xp, s, Hq, Wq):
    """Repack the zero-padded image so every 3x3 tap of a stride-s conv is a
    plain contiguous window: [N, Hp, Wp, C] -> [N, s*s*Hq, Wq, C] where plane
    g = p*s + q holds the rows/cols of parity (p, q).  s == 1 is the identity
    (and the byte count is ~unchanged for s == 2 — no 9x im2col blow-up)."""
    if s == 1:
        return xp
    planes = []
    for p in range(s):
        for q in range(s):
            plane = xp[:, p::s, q::s, :][:, :Hq, :Wq, :]
            dh, dw = Hq - plane.shape[1], Wq - plane.shape[2]
            if dh or dw:
                plane = jnp.pad(plane, ((0, 0), (0, dh), (0, dw), (0, 0)))
            planes.append(plane)
    return jnp.concatenate(planes, axis=1)


def basic_block_forward(x, prm, stride):
    """One WideResNet BasicBlock as two fused Pallas kernels."""
    N, H, W, Cin = x.shape
    Cout = prm['w1'].shape[-1]
    equal = 'w_sc' not in prm
    s = int(stride)
    Ho = (H - 1) // s + 1
    Wo = (W - 1) // s + 1
    M = Ho * Wo
    Hq = Ho + 2 // s                     # rows needed per parity plane
    Wq = Wo + 2 // s
    G = s * s
    # Output-row chunk: bounds the im2col scratch (keeps the 2x-buffered
    # working set small enough for v7x's 64 MiB VMEM at real WRN widths) and is
    # exercised (2 chunks) by the toy test below.
    TR = 4 if Ho % 4 == 0 else Ho

    xd = _stride_decompose(_pad_hw(x), s, Hq, Wq)        # [N, G*Hq, Wq, Cin]

    scale1 = prm['scale1'].reshape(1, Cin)
    shift1 = prm['shift1'].reshape(1, Cin)
    scale2 = prm['scale2'].reshape(1, Cout)
    shift2 = prm['shift2'].reshape(1, Cout)
    w1 = prm['w1'].reshape(9 * Cin, Cout).astype(_MXU_DTYPE)
    w2 = prm['w2'].reshape(9 * Cout, Cout).astype(_MXU_DTYPE)

    # ---- kernel A: bn1+relu -> conv1(stride) -> bn2+relu (+ fused 1x1 shortcut)
    kern_a = _make_bnrelu_conv3x3_kernel(s=s, H=H, W=W, Ho=Ho, Wo=Wo, Hq=Hq,
                                         Cin=Cin, Cout=Cout, TR=TR, equal=equal)
    in_specs = [
        pl.BlockSpec((1, G * Hq, Wq, Cin), lambda n: (n, 0, 0, 0)),
        pl.BlockSpec((1, Cin), lambda n: (0, 0)),
        pl.BlockSpec((1, Cin), lambda n: (0, 0)),
        pl.BlockSpec((1, Cout), lambda n: (0, 0)),
        pl.BlockSpec((1, Cout), lambda n: (0, 0)),
        pl.BlockSpec((9 * Cin, Cout), lambda n: (0, 0)),
    ]
    args = [xd, scale1, shift1, scale2, shift2, w1]
    y1p_sds = jax.ShapeDtypeStruct((N, Ho + 2, Wo + 2, Cout), jnp.float32)
    y1p_spec = pl.BlockSpec((1, Ho + 2, Wo + 2, Cout), lambda n: (n, 0, 0, 0))
    if equal:
        out_shape, out_specs = y1p_sds, y1p_spec
    else:
        in_specs.append(pl.BlockSpec((Cin, Cout), lambda n: (0, 0)))
        args.append(prm['w_sc'].astype(_MXU_DTYPE))
        out_shape = (y1p_sds, jax.ShapeDtypeStruct((N, M, Cout), jnp.float32))
        out_specs = (y1p_spec, pl.BlockSpec((1, M, Cout), lambda n: (n, 0, 0)))

    res_a = pl.pallas_call(
        kern_a,
        out_shape=out_shape,
        grid=(N,),
        in_specs=in_specs,
        out_specs=out_specs,
        scratch_shapes=[pltpu.VMEM((TR * Wo, 9 * Cin), jnp.float32)],
        compiler_params=pltpu.CompilerParams(dimension_semantics=("parallel",)),
    )(*args)

    if equal:
        y1p = res_a
        res = x.reshape(N, M, Cout)          # identity shortcut (equal => stride 1)
    else:
        y1p, res = res_a

    # ---- kernel B: conv2 + residual add
    # TODO(synk): dropout omitted — dropRate=0.0 in this instantiation (identity).
    kern_b = _make_conv3x3_add_kernel(Ho=Ho, Wo=Wo, Cout=Cout, TR=TR)
    out = pl.pallas_call(
        kern_b,
        out_shape=jax.ShapeDtypeStruct((N, M, Cout), jnp.float32),
        grid=(N,),
        in_specs=[pl.BlockSpec((1, Ho + 2, Wo + 2, Cout), lambda n: (n, 0, 0, 0)),
                  pl.BlockSpec((9 * Cout, Cout), lambda n: (0, 0)),
                  pl.BlockSpec((1, M, Cout), lambda n: (n, 0, 0))],
        out_specs=pl.BlockSpec((1, M, Cout), lambda n: (n, 0, 0)),
        scratch_shapes=[pltpu.VMEM((TR * Wo, 9 * Cout), jnp.float32)],
        compiler_params=pltpu.CompilerParams(dimension_semantics=("parallel",)),
    )(y1p, w2, res)

    return out.reshape(N, Ho, Wo, Cout)


def network_block_forward(x_nchw, params, stride):
    # layout: input NCHW (PyTorch); compute in NHWC; output NCHW.
    x = jnp.transpose(x_nchw, (0, 2, 3, 1))
    for i, prm in enumerate(params):
        x = basic_block_forward(x, prm, stride if i == 0 else 1)
    return jnp.transpose(x, (0, 3, 1, 2))


# ------------------------- Parameters -------------------------

def init_network_block_params(key, nb_layers, in_planes, out_planes):
    blocks = []
    for i in range(nb_layers):
        cin = in_planes if i == 0 else out_planes
        ks = jax.random.split(jax.random.fold_in(key, i), 11)
        p = {}
        # bn1 (eval mode: fold gamma/beta/running stats into scale/shift)
        gamma1 = 1.0 + 0.1 * jax.random.normal(ks[0], (cin,), jnp.float32)
        beta1 = 0.1 * jax.random.normal(ks[1], (cin,), jnp.float32)
        mean1 = 0.1 * jax.random.normal(ks[2], (cin,), jnp.float32)
        var1 = jax.random.uniform(ks[3], (cin,), jnp.float32, 0.5, 1.5)
        p['scale1'] = gamma1 / jnp.sqrt(var1 + EPS)
        p['shift1'] = beta1 - mean1 * p['scale1']
        # conv1: 3x3, cin -> out_planes  (stored HWIO)
        p['w1'] = jax.random.normal(ks[4], (3, 3, cin, out_planes), jnp.float32) \
            * (2.0 / (9 * out_planes)) ** 0.5
        # bn2
        gamma2 = 1.0 + 0.1 * jax.random.normal(ks[5], (out_planes,), jnp.float32)
        beta2 = 0.1 * jax.random.normal(ks[6], (out_planes,), jnp.float32)
        mean2 = 0.1 * jax.random.normal(ks[7], (out_planes,), jnp.float32)
        var2 = jax.random.uniform(ks[8], (out_planes,), jnp.float32, 0.5, 1.5)
        p['scale2'] = gamma2 / jnp.sqrt(var2 + EPS)
        p['shift2'] = beta2 - mean2 * p['scale2']
        # conv2: 3x3, out_planes -> out_planes
        p['w2'] = jax.random.normal(ks[9], (3, 3, out_planes, out_planes), jnp.float32) \
            * (2.0 / (9 * out_planes)) ** 0.5
        # convShortcut only when in_planes != out_planes (as in BasicBlock)
        if cin != out_planes:
            p['w_sc'] = jax.random.normal(ks[10], (cin, out_planes), jnp.float32) \
                * (2.0 / out_planes) ** 0.5
        blocks.append(p)
    return blocks


# ------------------------- Pure-JAX reference -------------------------

def _ref_conv3x3(x, w, stride):
    return jax.lax.conv_general_dilated(
        x, w, (stride, stride), ((1, 1), (1, 1)),
        dimension_numbers=('NHWC', 'HWIO', 'NHWC'))


def _ref_conv1x1(x, w, stride):
    return jax.lax.conv_general_dilated(
        x, w[None, None], (stride, stride), 'VALID',
        dimension_numbers=('NHWC', 'HWIO', 'NHWC'))


def reference_forward(x_nchw, params, stride):
    x = jnp.transpose(x_nchw, (0, 2, 3, 1))
    for i, p in enumerate(params):
        s = stride if i == 0 else 1
        equal = 'w_sc' not in p
        out = jnp.maximum(x * p['scale1'] + p['shift1'], 0.0)
        y = _ref_conv3x3(out, p['w1'], s)
        y = jnp.maximum(y * p['scale2'] + p['shift2'], 0.0)
        y = _ref_conv3x3(y, p['w2'], 1)
        res = x if equal else _ref_conv1x1(out, p['w_sc'], s)
        x = res + y
    return jnp.transpose(x, (0, 3, 1, 2))


if __name__ == "__main__":
    key = jax.random.PRNGKey(0)
    nb_layers, in_planes, out_planes, stride = 2, 4, 8, 2

    params = init_network_block_params(jax.random.fold_in(key, 1),
                                       nb_layers, in_planes, out_planes)
    x = jax.random.normal(jax.random.fold_in(key, 2), (2, 4, 16, 16), jnp.float32)  # NCHW

    fwd = jax.jit(network_block_forward, static_argnums=2)
    y = jax.block_until_ready(fwd(x, params, stride))
    y_ref = jax.block_until_ready(reference_forward(x, params, stride))

    assert y.shape == (2, out_planes, 8, 8), y.shape
    # bf16 MXU operands (f32 accumulation) => slightly looser tolerance than the
    # all-f32 version.
    np.testing.assert_allclose(np.asarray(y), np.asarray(y_ref), rtol=3e-2, atol=3e-2)
    print("KERNEL_OK")
</pallas_src>

<mosaic_0001>
module attributes {stable_mosaic.version = 11 : i64} {
  func.func @kernel(%arg0: i32, %arg1: memref<1x10x10x8xf32, #tpu.memory_space<vmem>>, %arg2: memref<72x8xbf16, #tpu.memory_space<vmem>>, %arg3: memref<1x64x8xf32, #tpu.memory_space<vmem>>, %arg4: memref<1x64x8xf32, #tpu.memory_space<vmem>>, %arg5: memref<32x72xf32, #tpu.memory_space<vmem>>) attributes {dimension_semantics = [#tpu.dimension_semantics<parallel>], iteration_bounds = array<i64: 2>, scalar_prefetch = 0 : i64, scratch_operands = 1 : i64, tpu.core_type = #tpu.core_type<tc>, window_params = [{transform_indices = @transform_0, window_bounds = array<i64: 1, 10, 10, 8>}, {pipeline_mode = #tpu.pipeline_mode<synchronous>, transform_indices = @transform_1, window_bounds = array<i64: 72, 8>}, {transform_indices = @transform_2, window_bounds = array<i64: 1, 64, 8>}, {transform_indices = @transform_3, window_bounds = array<i64: 1, 64, 8>}]} {
    %c0 = arith.constant 0 : index
    %c0_0 = arith.constant 0 : index
    %c0_1 = arith.constant 0 : index
    %c0_2 = arith.constant 0 : index
    %0 = vector.load %arg1[%c0, %c0_0, %c0_1, %c0_2] : memref<1x10x10x8xf32, #tpu.memory_space<vmem>>, vector<1x4x8x8xf32>
    %1 = vector.shape_cast %0 : vector<1x4x8x8xf32> to vector<4x8x8xf32>
    %2 = vector.shape_cast %1 : vector<4x8x8xf32> to vector<32x8xf32>
    %c0_3 = arith.constant 0 : index
    %c0_4 = arith.constant 0 : index
    %3 = vector.load %arg5[%c0_3, %c0_4] : memref<32x72xf32, #tpu.memory_space<vmem>>, vector<32x8xf32>
    tpu.vector_store %arg5[%c0_3, %c0_4], %2 {strides = array<i32>} : memref<32x72xf32, #tpu.memory_space<vmem>>, vector<32x8xf32>,
    %c0_5 = arith.constant 0 : index
    %c0_6 = arith.constant 0 : index
    %c1 = arith.constant 1 : index
    %c0_7 = arith.constant 0 : index
    %4 = vector.load %arg1[%c0_5, %c0_6, %c1, %c0_7] : memref<1x10x10x8xf32, #tpu.memory_space<vmem>>, vector<1x4x8x8xf32>
    %5 = vector.shape_cast %4 : vector<1x4x8x8xf32> to vector<4x8x8xf32>
    %6 = vector.shape_cast %5 : vector<4x8x8xf32> to vector<32x8xf32>
    %c0_8 = arith.constant 0 : index
    %c8 = arith.constant 8 : index
    %7 = vector.load %arg5[%c0_8, %c8] : memref<32x72xf32, #tpu.memory_space<vmem>>, vector<32x8xf32>
    tpu.vector_store %arg5[%c0_8, %c8], %6 {strides = array<i32>} : memref<32x72xf32, #tpu.memory_space<vmem>>, vector<32x8xf32>,
    %c0_9 = arith.constant 0 : index
    %c0_10 = arith.constant 0 : index
    %c2 = arith.constant 2 : index
    %c0_11 = arith.constant 0 : index
    %8 = vector.load %arg1[%c0_9, %c0_10, %c2, %c0_11] : memref<1x10x10x8xf32, #tpu.memory_space<vmem>>, vector<1x4x8x8xf32>
    %9 = vector.shape_cast %8 : vector<1x4x8x8xf32> to vector<4x8x8xf32>
    %10 = vector.shape_cast %9 : vector<4x8x8xf32> to vector<32x8xf32>
    %c0_12 = arith.constant 0 : index
    %c16 = arith.constant 16 : index
    %11 = vector.load %arg5[%c0_12, %c16] : memref<32x72xf32, #tpu.memory_space<vmem>>, vector<32x8xf32>
    tpu.vector_store %arg5[%c0_12, %c16], %10 {strides = array<i32>} : memref<32x72xf32, #tpu.memory_space<vmem>>, vector<32x8xf32>,
    %c0_13 = arith.constant 0 : index
    %c1_14 = arith.constant 1 : index
    %c0_15 = arith.constant 0 : index
    %c0_16 = arith.constant 0 : index
    %12 = vector.load %arg1[%c0_13, %c1_14, %c0_15, %c0_16] : memref<1x10x10x8xf32, #tpu.memory_space<vmem>>, vector<1x4x8x8xf32>
    %13 = vector.shape_cast %12 : vector<1x4x8x8xf32> to vector<4x8x8xf32>
    %14 = vector.shape_cast %13 : vector<4x8x8xf32> to vector<32x8xf32>
    %c0_17 = arith.constant 0 : index
    %c24 = arith.constant 24 : index
    %15 = vector.load %arg5[%c0_17, %c24] : memref<32x72xf32, #tpu.memory_space<vmem>>, vector<32x8xf32>
    tpu.vector_store %arg5[%c0_17, %c24], %14 {strides = array<i32>} : memref<32x72xf32, #tpu.memory_space<vmem>>, vector<32x8xf32>,
    %c0_18 = arith.constant 0 : index
    %c1_19 = arith.constant 1 : index
    %c1_20 = arith.constant 1 : index
    %c0_21 = arith.constant 0 : index
    %16 = vector.load %arg1[%c0_18, %c1_19, %c1_20, %c0_21] : memref<1x10x10x8xf32, #tpu.memory_space<vmem>>, vector<1x4x8x8xf32>
    %17 = vector.shape_cast %16 : vector<1x4x8x8xf32> to vector<4x8x8xf32>
    %18 = vector.shape_cast %17 : vector<4x8x8xf32> to vector<32x8xf32>
    %c0_22 = arith.constant 0 : index
    %c32 = arith.constant 32 : index
    %19 = vector.load %arg5[%c0_22, %c32] : memref<32x72xf32, #tpu.memory_space<vmem>>, vector<32x8xf32>
    tpu.vector_store %arg5[%c0_22, %c32], %18 {strides = array<i32>} : memref<32x72xf32, #tpu.memory_space<vmem>>, vector<32x8xf32>,
    %c0_23 = arith.constant 0 : index
    %c1_24 = arith.constant 1 : index
    %c2_25 = arith.constant 2 : index
    %c0_26 = arith.constant 0 : index
    %20 = vector.load %arg1[%c0_23, %c1_24, %c2_25, %c0_26] : memref<1x10x10x8xf32, #tpu.memory_space<vmem>>, vector<1x4x8x8xf32>
    %21 = vector.shape_cast %20 : vector<1x4x8x8xf32> to vector<4x8x8xf32>
    %22 = vector.shape_cast %21 : vector<4x8x8xf32> to vector<32x8xf32>
    %c0_27 = arith.constant 0 : index
    %c40 = arith.constant 40 : index
    %23 = vector.load %arg5[%c0_27, %c40] : memref<32x72xf32, #tpu.memory_space<vmem>>, vector<32x8xf32>
    tpu.vector_store %arg5[%c0_27, %c40], %22 {strides = array<i32>} : memref<32x72xf32, #tpu.memory_space<vmem>>, vector<32x8xf32>,
    %c0_28 = arith.constant 0 : index
    %c2_29 = arith.constant 2 : index
    %c0_30 = arith.constant 0 : index
    %c0_31 = arith.constant 0 : index
    %24 = vector.load %arg1[%c0_28, %c2_29, %c0_30, %c0_31] : memref<1x10x10x8xf32, #tpu.memory_space<vmem>>, vector<1x4x8x8xf32>
    %25 = vector.shape_cast %24 : vector<1x4x8x8xf32> to vector<4x8x8xf32>
    %26 = vector.shape_cast %25 : vector<4x8x8xf32> to vector<32x8xf32>
    %c0_32 = arith.constant 0 : index
    %c48 = arith.constant 48 : index
    %27 = vector.load %arg5[%c0_32, %c48] : memref<32x72xf32, #tpu.memory_space<vmem>>, vector<32x8xf32>
    tpu.vector_store %arg5[%c0_32, %c48], %26 {strides = array<i32>} : memref<32x72xf32, #tpu.memory_space<vmem>>, vector<32x8xf32>,
    %c0_33 = arith.constant 0 : index
    %c2_34 = arith.constant 2 : index
    %c1_35 = arith.constant 1 : index
    %c0_36 = arith.constant 0 : index
    %28 = vector.load %arg1[%c0_33, %c2_34, %c1_35, %c0_36] : memref<1x10x10x8xf32, #tpu.memory_space<vmem>>, vector<1x4x8x8xf32>
    %29 = vector.shape_cast %28 : vector<1x4x8x8xf32> to vector<4x8x8xf32>
    %30 = vector.shape_cast %29 : vector<4x8x8xf32> to vector<32x8xf32>
    %c0_37 = arith.constant 0 : index
    %c56 = arith.constant 56 : index
    %31 = vector.load %arg5[%c0_37, %c56] : memref<32x72xf32, #tpu.memory_space<vmem>>, vector<32x8xf32>
    tpu.vector_store %arg5[%c0_37, %c56], %30 {strides = array<i32>} : memref<32x72xf32, #tpu.memory_space<vmem>>, vector<32x8xf32>,
    %c0_38 = arith.constant 0 : index
    %c2_39 = arith.constant 2 : index
    %c2_40 = arith.constant 2 : index
    %c0_41 = arith.constant 0 : index
    %32 = vector.load %arg1[%c0_38, %c2_39, %c2_40, %c0_41] : memref<1x10x10x8xf32, #tpu.memory_space<vmem>>, vector<1x4x8x8xf32>
    %33 = vector.shape_cast %32 : vector<1x4x8x8xf32> to vector<4x8x8xf32>
    %34 = vector.shape_cast %33 : vector<4x8x8xf32> to vector<32x8xf32>
    %c0_42 = arith.constant 0 : index
    %c64 = arith.constant 64 : index
    %35 = vector.load %arg5[%c0_42, %c64] : memref<32x72xf32, #tpu.memory_space<vmem>>, vector<32x8xf32>
    tpu.vector_store %arg5[%c0_42, %c64], %34 {strides = array<i32>} : memref<32x72xf32, #tpu.memory_space<vmem>>, vector<32x8xf32>,
    %c0_43 = arith.constant 0 : index
    %c0_44 = arith.constant 0 : index
    %36 = vector.load %arg5[%c0_43, %c0_44] : memref<32x72xf32, #tpu.memory_space<vmem>>, vector<32x72xf32>
    %37 = arith.truncf %36 : vector<32x72xf32> to vector<32x72xbf16>
    %c0_45 = arith.constant 0 : index
    %c0_46 = arith.constant 0 : index
    %38 = vector.load %arg2[%c0_45, %c0_46] : memref<72x8xbf16, #tpu.memory_space<vmem>>, vector<72x8xbf16>
    %cst = arith.constant dense<0.000000e+00> : vector<32x8xf32>
    %39 = tpu.matmul %37, %38, %cst {dimension_numbers = #tpu.dot_dimension_numbers<[1], [0], [0], [1], [0, 0, 1, 1], [], []>} : vector<32x72xbf16>, vector<72x8xbf16>, vector<32x8xf32> -> vector<32x8xf32>
    %c0_47 = arith.constant 0 : index
    %c0_48 = arith.constant 0 : index
    %c0_49 = arith.constant 0 : index
    %40 = vector.load %arg3[%c0_47, %c0_48, %c0_49] : memref<1x64x8xf32, #tpu.memory_space<vmem>>, vector<1x32x8xf32>
    %41 = vector.shape_cast %40 : vector<1x32x8xf32> to vector<32x8xf32>
    %42 = arith.addf %39, %41 : vector<32x8xf32>
    %c0_50 = arith.constant 0 : index
    %c0_51 = arith.constant 0 : index
    %c0_52 = arith.constant 0 : index
    %43 = vector.load %arg4[%c0_50, %c0_51, %c0_52] : memref<1x64x8xf32, #tpu.memory_space<vmem>>, vector<1x32x8xf32>
    %44 = vector.shape_cast %43 : vector<1x32x8xf32> to vector<32x8xf32>
    %45 = vector.shape_cast %42 : vector<32x8xf32> to vector<1x32x8xf32>
    tpu.vector_store %arg4[%c0_50, %c0_51, %c0_52], %45 {strides = array<i32>} : memref<1x64x8xf32, #tpu.memory_space<vmem>>, vector<1x32x8xf32>,
    %c0_53 = arith.constant 0 : index
    %c4 = arith.constant 4 : index
    %c0_54 = arith.constant 0 : index
    %c0_55 = arith.constant 0 : index
    %46 = vector.load %arg1[%c0_53, %c4, %c0_54, %c0_55] : memref<1x10x10x8xf32, #tpu.memory_space<vmem>>, vector<1x4x8x8xf32>
    %47 = vector.shape_cast %46 : vector<1x4x8x8xf32> to vector<4x8x8xf32>
    %48 = vector.shape_cast %47 : vector<4x8x8xf32> to vector<32x8xf32>
    %c0_56 = arith.constant 0 : index
    %c0_57 = arith.constant 0 : index
    %49 = vector.load %arg5[%c0_56, %c0_57] : memref<32x72xf32, #tpu.memory_space<vmem>>, vector<32x8xf32>
    tpu.vector_store %arg5[%c0_56, %c0_57], %48 {strides = array<i32>} : memref<32x72xf32, #tpu.memory_space<vmem>>, vector<32x8xf32>,
    %c0_58 = arith.constant 0 : index
    %c4_59 = arith.constant 4 : index
    %c1_60 = arith.constant 1 : index
    %c0_61 = arith.constant 0 : index
    %50 = vector.load %arg1[%c0_58, %c4_59, %c1_60, %c0_61] : memref<1x10x10x8xf32, #tpu.memory_space<vmem>>, vector<1x4x8x8xf32>
    %51 = vector.shape_cast %50 : vector<1x4x8x8xf32> to vector<4x8x8xf32>
    %52 = vector.shape_cast %51 : vector<4x8x8xf32> to vector<32x8xf32>
    %c0_62 = arith.constant 0 : index
    %c8_63 = arith.constant 8 : index
    %53 = vector.load %arg5[%c0_62, %c8_63] : memref<32x72xf32, #tpu.memory_space<vmem>>, vector<32x8xf32>
    tpu.vector_store %arg5[%c0_62, %c8_63], %52 {strides = array<i32>} : memref<32x72xf32, #tpu.memory_space<vmem>>, vector<32x8xf32>,
    %c0_64 = arith.constant 0 : index
    %c4_65 = arith.constant 4 : index
    %c2_66 = arith.constant 2 : index
    %c0_67 = arith.constant 0 : index
    %54 = vector.load %arg1[%c0_64, %c4_65, %c2_66, %c0_67] : memref<1x10x10x8xf32, #tpu.memory_space<vmem>>, vector<1x4x8x8xf32>
    %55 = vector.shape_cast %54 : vector<1x4x8x8xf32> to vector<4x8x8xf32>
    %56 = vector.shape_cast %55 : vector<4x8x8xf32> to vector<32x8xf32>
    %c0_68 = arith.constant 0 : index
    %c16_69 = arith.constant 16 : index
    %57 = vector.load %arg5[%c0_68, %c16_69] : memref<32x72xf32, #tpu.memory_space<vmem>>, vector<32x8xf32>
    tpu.vector_store %arg5[%c0_68, %c16_69], %56 {strides = array<i32>} : memref<32x72xf32, #tpu.memory_space<vmem>>, vector<32x8xf32>,
    %c0_70 = arith.constant 0 : index
    %c5 = arith.constant 5 : index
    %c0_71 = arith.constant 0 : index
    %c0_72 = arith.constant 0 : index
    %58 = vector.load %arg1[%c0_70, %c5, %c0_71, %c0_72] : memref<1x10x10x8xf32, #tpu.memory_space<vmem>>, vector<1x4x8x8xf32>
    %59 = vector.shape_cast %58 : vector<1x4x8x8xf32> to vector<4x8x8xf32>
    %60 = vector.shape_cast %59 : vector<4x8x8xf32> to vector<32x8xf32>
    %c0_73 = arith.constant 0 : index
    %c24_74 = arith.constant 24 : index
    %61 = vector.load %arg5[%c0_73, %c24_74] : memref<32x72xf32, #tpu.memory_space<vmem>>, vector<32x8xf32>
    tpu.vector_store %arg5[%c0_73, %c24_74], %60 {strides = array<i32>} : memref<32x72xf32, #tpu.memory_space<vmem>>, vector<32x8xf32>,
    %c0_75 = arith.constant 0 : index
    %c5_76 = arith.constant 5 : index
    %c1_77 = arith.constant 1 : index
    %c0_78 = arith.constant 0 : index
    %62 = vector.load %arg1[%c0_75, %c5_76, %c1_77, %c0_78] : memref<1x10x10x8xf32, #tpu.memory_space<vmem>>, vector<1x4x8x8xf32>
    %63 = vector.shape_cast %62 : vector<1x4x8x8xf32> to vector<4x8x8xf32>
    %64 = vector.shape_cast %63 : vector<4x8x8xf32> to vector<32x8xf32>
    %c0_79 = arith.constant 0 : index
    %c32_80 = arith.constant 32 : index
    %65 = vector.load %arg5[%c0_79, %c32_80] : memref<32x72xf32, #tpu.memory_space<vmem>>, vector<32x8xf32>
    tpu.vector_store %arg5[%c0_79, %c32_80], %64 {strides = array<i32>} : memref<32x72xf32, #tpu.memory_space<vmem>>, vector<32x8xf32>,
    %c0_81 = arith.constant 0 : index
    %c5_82 = arith.constant 5 : index
    %c2_83 = arith.constant 2 : index
    %c0_84 = arith.constant 0 : index
    %66 = vector.load %arg1[%c0_81, %c5_82, %c2_83, %c0_84] : memref<1x10x10x8xf32, #tpu.memory_space<vmem>>, vector<1x4x8x8xf32>
    %67 = vector.shape_cast %66 : vector<1x4x8x8xf32> to vector<4x8x8xf32>
    %68 = vector.shape_cast %67 : vector<4x8x8xf32> to vector<32x8xf32>
    %c0_85 = arith.constant 0 : index
    %c40_86 = arith.constant 40 : index
    %69 = vector.load %arg5[%c0_85, %c40_86] : memref<32x72xf32, #tpu.memory_space<vmem>>, vector<32x8xf32>
    tpu.vector_store %arg5[%c0_85, %c40_86], %68 {strides = array<i32>} : memref<32x72xf32, #tpu.memory_space<vmem>>, vector<32x8xf32>,
    %c0_87 = arith.constant 0 : index
    %c6 = arith.constant 6 : index
    %c0_88 = arith.constant 0 : index
    %c0_89 = arith.constant 0 : index
    %70 = vector.load %arg1[%c0_87, %c6, %c0_88, %c0_89] : memref<1x10x10x8xf32, #tpu.memory_space<vmem>>, vector<1x4x8x8xf32>
    %71 = vector.shape_cast %70 : vector<1x4x8x8xf32> to vector<4x8x8xf32>
    %72 = vector.shape_cast %71 : vector<4x8x8xf32> to vector<32x8xf32>
    %c0_90 = arith.constant 0 : index
    %c48_91 = arith.constant 48 : index
    %73 = vector.load %arg5[%c0_90, %c48_91] : memref<32x72xf32, #tpu.memory_space<vmem>>, vector<32x8xf32>
    tpu.vector_store %arg5[%c0_90, %c48_91], %72 {strides = array<i32>} : memref<32x72xf32, #tpu.memory_space<vmem>>, vector<32x8xf32>,
    %c0_92 = arith.constant 0 : index
    %c6_93 = arith.constant 6 : index
    %c1_94 = arith.constant 1 : index
    %c0_95 = arith.constant 0 : index
    %74 = vector.load %arg1[%c0_92, %c6_93, %c1_94, %c0_95] : memref<1x10x10x8xf32, #tpu.memory_space<vmem>>, vector<1x4x8x8xf32>
    %75 = vector.shape_cast %74 : vector<1x4x8x8xf32> to vector<4x8x8xf32>
    %76 = vector.shape_cast %75 : vector<4x8x8xf32> to vector<32x8xf32>
    %c0_96 = arith.constant 0 : index
    %c56_97 = arith.constant 56 : index
    %77 = vector.load %arg5[%c0_96, %c56_97] : memref<32x72xf32, #tpu.memory_space<vmem>>, vector<32x8xf32>
    tpu.vector_store %arg5[%c0_96, %c56_97], %76 {strides = array<i32>} : memref<32x72xf32, #tpu.memory_space<vmem>>, vector<32x8xf32>,
    %c0_98 = arith.constant 0 : index
    %c6_99 = arith.constant 6 : index
    %c2_100 = arith.constant 2 : index
    %c0_101 = arith.constant 0 : index
    %78 = vector.load %arg1[%c0_98, %c6_99, %c2_100, %c0_101] : memref<1x10x10x8xf32, #tpu.memory_space<vmem>>, vector<1x4x8x8xf32>
    %79 = vector.shape_cast %78 : vector<1x4x8x8xf32> to vector<4x8x8xf32>
    %80 = vector.shape_cast %79 : vector<4x8x8xf32> to vector<32x8xf32>
    %c0_102 = arith.constant 0 : index
    %c64_103 = arith.constant 64 : index
    %81 = vector.load %arg5[%c0_102, %c64_103] : memref<32x72xf32, #tpu.memory_space<vmem>>, vector<32x8xf32>
    tpu.vector_store %arg5[%c0_102, %c64_103], %80 {strides = array<i32>} : memref<32x72xf32, #tpu.memory_space<vmem>>, vector<32x8xf32>,
    %c0_104 = arith.constant 0 : index
    %c0_105 = arith.constant 0 : index
    %82 = vector.load %arg5[%c0_104, %c0_105] : memref<32x72xf32, #tpu.memory_space<vmem>>, vector<32x72xf32>
    %83 = arith.truncf %82 : vector<32x72xf32> to vector<32x72xbf16>
    %c0_106 = arith.constant 0 : index
    %c0_107 = arith.constant 0 : index
    %84 = vector.load %arg2[%c0_106, %c0_107] : memref<72x8xbf16, #tpu.memory_space<vmem>>, vector<72x8xbf16>
    %cst_108 = arith.constant dense<0.000000e+00> : vector<32x8xf32>
    %85 = tpu.matmul %83, %84, %cst_108 {dimension_numbers = #tpu.dot_dimension_numbers<[1], [0], [0], [1], [0, 0, 1, 1], [], []>} : vector<32x72xbf16>, vector<72x8xbf16>, vector<32x8xf32> -> vector<32x8xf32>
    %c0_109 = arith.constant 0 : index
    %c32_110 = arith.constant 32 : index
    %c0_111 = arith.constant 0 : index
    %86 = vector.load %arg3[%c0_109, %c32_110, %c0_111] : memref<1x64x8xf32, #tpu.memory_space<vmem>>, vector<1x32x8xf32>
    %87 = vector.shape_cast %86 : vector<1x32x8xf32> to vector<32x8xf32>
    %88 = arith.addf %85, %87 : vector<32x8xf32>
    %c0_112 = arith.constant 0 : index
    %c32_113 = arith.constant 32 : index
    %c0_114 = arith.constant 0 : index
    %89 = vector.load %arg4[%c0_112, %c32_113, %c0_114] : memref<1x64x8xf32, #tpu.memory_space<vmem>>, vector<1x32x8xf32>
    %90 = vector.shape_cast %89 : vector<1x32x8xf32> to vector<32x8xf32>
    %91 = vector.shape_cast %88 : vector<32x8xf32> to vector<1x32x8xf32>
    tpu.vector_store %arg4[%c0_112, %c32_113, %c0_114], %91 {strides = array<i32>} : memref<1x64x8xf32, #tpu.memory_space<vmem>>, vector<1x32x8xf32>,
    return
  }
  func.func @transform_0(%arg0: i32) -> (i32, i32, i32, i32) {
    %c0_i32 = arith.constant 0 : i32
    %c0_i32_0 = arith.constant 0 : i32
    %c0_i32_1 = arith.constant 0 : i32
    %c0_i32_2 = arith.constant 0 : i32
    return %arg0, %c0_i32, %c0_i32_0, %c0_i32_1 : i32, i32, i32, i32
  }
  func.func @transform_1(%arg0: i32) -> (i32, i32) {
    %c0_i32 = arith.constant 0 : i32
    %c0_i32_0 = arith.constant 0 : i32
    %c0_i32_1 = arith.constant 0 : i32
    return %c0_i32, %c0_i32_0 : i32, i32
  }
  func.func @transform_2(%arg0: i32) -> (i32, i32, i32) {
    %c0_i32 = arith.constant 0 : i32
    %c0_i32_0 = arith.constant 0 : i32
    %c0_i32_1 = arith.constant 0 : i32
    return %arg0, %c0_i32, %c0_i32_0 : i32, i32, i32
  }
  func.func @transform_3(%arg0: i32) -> (i32, i32, i32) {
    %c0_i32 = arith.constant 0 : i32
    %c0_i32_0 = arith.constant 0 : i32
    %c0_i32_1 = arith.constant 0 : i32
    return %arg0, %c0_i32, %c0_i32_0 : i32, i32, i32
  }
}

module attributes {stable_mosaic.version = 11 : i64} {
  func.func @kernel(%arg0: i32, %arg1: memref<1x36x9x4xf32, #tpu.memory_space<vmem>>, %arg2: memref<1x4xf32, #tpu.memory_space<vmem>>, %arg3: memref<1x4xf32, #tpu.memory_space<vmem>>, %arg4: memref<1x8xf32, #tpu.memory_space<vmem>>, %arg5: memref<1x8xf32, #tpu.memory_space<vmem>>, %arg6: memref<36x8xbf16, #tpu.memory_space<vmem>>, %arg7: memref<4x8xbf16, #tpu.memory_space<vmem>>, %arg8: memref<1x10x10x8xf32, #tpu.memory_space<vmem>>, %arg9: memref<1x64x8xf32, #tpu.memory_space<vmem>>, %arg10: memref<32x36xf32, #tpu.memory_space<vmem>>) attributes {dimension_semantics = [#tpu.dimension_semantics<parallel>], iteration_bounds = array<i64: 2>, scalar_prefetch = 0 : i64, scratch_operands = 1 : i64, tpu.core_type = #tpu.core_type<tc>, window_params = [{transform_indices = @transform_0, window_bounds = array<i64: 1, 36, 9, 4>}, {pipeline_mode = #tpu.pipeline_mode<synchronous>, transform_indices = @transform_1, window_bounds = array<i64: 1, 4>}, {pipeline_mode = #tpu.pipeline_mode<synchronous>, transform_indices = @transform_2, window_bounds = array<i64: 1, 4>}, {pipeline_mode = #tpu.pipeline_mode<synchronous>, transform_indices = @transform_3, window_bounds = array<i64: 1, 8>}, {pipeline_mode = #tpu.pipeline_mode<synchronous>, transform_indices = @transform_4, window_bounds = array<i64: 1, 8>}, {pipeline_mode = #tpu.pipeline_mode<synchronous>, transform_indices = @transform_5, window_bounds = array<i64: 36, 8>}, {pipeline_mode = #tpu.pipeline_mode<synchronous>, transform_indices = @transform_6, window_bounds = array<i64: 4, 8>}, {transform_indices = @transform_7, window_bounds = array<i64: 1, 10, 10, 8>}, {transform_indices = @transform_8, window_bounds = array<i64: 1, 64, 8>}]} {
    %cst = arith.constant 0.000000e+00 : f32
    %0 = vector.broadcast %cst : f32 to vector<1x10x10x8xf32>
    %c0 = arith.constant 0 : index
    %c0_0 = arith.constant 0 : index
    %c0_1 = arith.constant 0 : index
    %c0_2 = arith.constant 0 : index
    %1 = vector.load %arg8[%c0, %c0_0, %c0_1, %c0_2] : memref<1x10x10x8xf32, #tpu.memory_space<vmem>>, vector<1x10x10x8xf32>
    tpu.vector_store %arg8[%c0, %c0_0, %c0_1, %c0_2], %0 {strides = array<i32>} : memref<1x10x10x8xf32, #tpu.memory_space<vmem>>, vector<1x10x10x8xf32>,
    %c0_3 = arith.constant 0 : index
    %c0_4 = arith.constant 0 : index
    %2 = vector.load %arg2[%c0_3, %c0_4] : memref<1x4xf32, #tpu.memory_space<vmem>>, vector<1x4xf32>
    %3 = vector.shape_cast %2 : vector<1x4xf32> to vector<1x1x4xf32>
    %c0_5 = arith.constant 0 : index
    %c0_6 = arith.constant 0 : index
    %4 = vector.load %arg3[%c0_5, %c0_6] : memref<1x4xf32, #tpu.memory_space<vmem>>, vector<1x4xf32>
    %5 = vector.shape_cast %4 : vector<1x4xf32> to vector<1x1x4xf32>
    %6 = tpu.iota {dimensions = array<i32: 0>} : vector<4x8x1xi32>
    %c0_i32 = arith.constant 0 : i32
    %7 = vector.broadcast %c0_i32 : i32 to vector<4x8x1xi32>
    %8 = arith.addi %6, %7 : vector<4x8x1xi32>
    %9 = tpu.iota {dimensions = array<i32: 1>} : vector<4x8x1xi32>
    %c0_7 = arith.constant 0 : index
    %c0_8 = arith.constant 0 : index
    %c0_9 = arith.constant 0 : index
    %c0_10 = arith.constant 0 : index
    %10 = vector.load %arg1[%c0_7, %c0_8, %c0_9, %c0_10] : memref<1x36x9x4xf32, #tpu.memory_space<vmem>>, vector<1x4x8x4xf32>
    %11 = vector.shape_cast %10 : vector<1x4x8x4xf32> to vector<4x8x4xf32>
    %12 = vector.broadcast %3 : vector<1x1x4xf32> to vector<4x8x4xf32>
    %13 = arith.mulf %11, %12 : vector<4x8x4xf32>
    %14 = vector.broadcast %5 : vector<1x1x4xf32> to vector<4x8x4xf32>
    %15 = arith.addf %13, %14 : vector<4x8x4xf32>
    %cst_11 = arith.constant 0.000000e+00 : f32
    %16 = vector.broadcast %cst_11 : f32 to vector<4x8x4xf32>
    %17 = arith.maximumf %15, %16 : vector<4x8x4xf32>
    %c2_i32 = arith.constant 2 : i32
    %18 = vector.broadcast %c2_i32 : i32 to vector<4x8x1xi32>
    %19 = arith.muli %18, %8 : vector<4x8x1xi32>
    %c0_i32_12 = arith.constant 0 : i32
    %20 = vector.broadcast %c0_i32_12 : i32 to vector<4x8x1xi32>
    %21 = arith.addi %19, %20 : vector<4x8x1xi32>
    %c2_i32_13 = arith.constant 2 : i32
    %22 = vector.broadcast %c2_i32_13 : i32 to vector<4x8x1xi32>
    %23 = arith.muli %22, %9 : vector<4x8x1xi32>
    %c0_i32_14 = arith.constant 0 : i32
    %24 = vector.broadcast %c0_i32_14 : i32 to vector<4x8x1xi32>
    %25 = arith.addi %23, %24 : vector<4x8x1xi32>
    %c1_i32 = arith.constant 1 : i32
    %26 = vector.broadcast %c1_i32 : i32 to vector<4x8x1xi32>
    %27 = arith.cmpi sge, %21, %26 : vector<4x8x1xi32>
    %c16_i32 = arith.constant 16 : i32
    %28 = vector.broadcast %c16_i32 : i32 to vector<4x8x1xi32>
    %29 = arith.cmpi sle, %21, %28 : vector<4x8x1xi32>
    %30 = arith.andi %27, %29 : vector<4x8x1xi1>
    %c1_i32_15 = arith.constant 1 : i32
    %31 = vector.broadcast %c1_i32_15 : i32 to vector<4x8x1xi32>
    %32 = arith.cmpi sge, %25, %31 : vector<4x8x1xi32>
    %33 = arith.andi %30, %32 : vector<4x8x1xi1>
    %c16_i32_16 = arith.constant 16 : i32
    %34 = vector.broadcast %c16_i32_16 : i32 to vector<4x8x1xi32>
    %35 = arith.cmpi sle, %25, %34 : vector<4x8x1xi32>
    %36 = arith.andi %33, %35 : vector<4x8x1xi1>
    %cst_17 = arith.constant 0.000000e+00 : f32
    %37 = vector.shape_cast %36 : vector<4x8x1xi1> to vector<4x8x1xi1>
    %38 = vector.broadcast %37 : vector<4x8x1xi1> to vector<4x8x4xi1>
    %39 = vector.broadcast %cst_17 : f32 to vector<4x8x4xf32>
    %40 = arith.select %38, %17, %39 : vector<4x8x4xi1>, vector<4x8x4xf32>
    %41 = vector.shape_cast %40 : vector<4x8x4xf32> to vector<32x4xf32>
    %c0_18 = arith.constant 0 : index
    %c0_19 = arith.constant 0 : index
    %42 = vector.load %arg10[%c0_18, %c0_19] : memref<32x36xf32, #tpu.memory_space<vmem>>, vector<32x4xf32>
    tpu.vector_store %arg10[%c0_18, %c0_19], %41 {strides = array<i32>} : memref<32x36xf32, #tpu.memory_space<vmem>>, vector<32x4xf32>,
    %c0_20 = arith.constant 0 : index
    %c9 = arith.constant 9 : index
    %c0_21 = arith.constant 0 : index
    %c0_22 = arith.constant 0 : index
    %43 = vector.load %arg1[%c0_20, %c9, %c0_21, %c0_22] : memref<1x36x9x4xf32, #tpu.memory_space<vmem>>, vector<1x4x8x4xf32>
    %44 = vector.shape_cast %43 : vector<1x4x8x4xf32> to vector<4x8x4xf32>
    %45 = vector.broadcast %3 : vector<1x1x4xf32> to vector<4x8x4xf32>
    %46 = arith.mulf %44, %45 : vector<4x8x4xf32>
    %47 = vector.broadcast %5 : vector<1x1x4xf32> to vector<4x8x4xf32>
    %48 = arith.addf %46, %47 : vector<4x8x4xf32>
    %cst_23 = arith.constant 0.000000e+00 : f32
    %49 = vector.broadcast %cst_23 : f32 to vector<4x8x4xf32>
    %50 = arith.maximumf %48, %49 : vector<4x8x4xf32>
    %c2_i32_24 = arith.constant 2 : i32
    %51 = vector.broadcast %c2_i32_24 : i32 to vector<4x8x1xi32>
    %52 = arith.muli %51, %8 : vector<4x8x1xi32>
    %c0_i32_25 = arith.constant 0 : i32
    %53 = vector.broadcast %c0_i32_25 : i32 to vector<4x8x1xi32>
    %54 = arith.addi %52, %53 : vector<4x8x1xi32>
    %c2_i32_26 = arith.constant 2 : i32
    %55 = vector.broadcast %c2_i32_26 : i32 to vector<4x8x1xi32>
    %56 = arith.muli %55, %9 : vector<4x8x1xi32>
    %c1_i32_27 = arith.constant 1 : i32
    %57 = vector.broadcast %c1_i32_27 : i32 to vector<4x8x1xi32>
    %58 = arith.addi %56, %57 : vector<4x8x1xi32>
    %c1_i32_28 = arith.constant 1 : i32
    %59 = vector.broadcast %c1_i32_28 : i32 to vector<4x8x1xi32>
    %60 = arith.cmpi sge, %54, %59 : vector<4x8x1xi32>
    %c16_i32_29 = arith.constant 16 : i32
    %61 = vector.broadcast %c16_i32_29 : i32 to vector<4x8x1xi32>
    %62 = arith.cmpi sle, %54, %61 : vector<4x8x1xi32>
    %63 = arith.andi %60, %62 : vector<4x8x1xi1>
    %c1_i32_30 = arith.constant 1 : i32
    %64 = vector.broadcast %c1_i32_30 : i32 to vector<4x8x1xi32>
    %65 = arith.cmpi sge, %58, %64 : vector<4x8x1xi32>
    %66 = arith.andi %63, %65 : vector<4x8x1xi1>
    %c16_i32_31 = arith.constant 16 : i32
    %67 = vector.broadcast %c16_i32_31 : i32 to vector<4x8x1xi32>
    %68 = arith.cmpi sle, %58, %67 : vector<4x8x1xi32>
    %69 = arith.andi %66, %68 : vector<4x8x1xi1>
    %cst_32 = arith.constant 0.000000e+00 : f32
    %70 = vector.shape_cast %69 : vector<4x8x1xi1> to vector<4x8x1xi1>
    %71 = vector.broadcast %70 : vector<4x8x1xi1> to vector<4x8x4xi1>
    %72 = vector.broadcast %cst_32 : f32 to vector<4x8x4xf32>
    %73 = arith.select %71, %50, %72 : vector<4x8x4xi1>, vector<4x8x4xf32>
    %74 = vector.shape_cast %73 : vector<4x8x4xf32> to vector<32x4xf32>
    %c0_33 = arith.constant 0 : index
    %c4 = arith.constant 4 : index
    %75 = vector.load %arg10[%c0_33, %c4] : memref<32x36xf32, #tpu.memory_space<vmem>>, vector<32x4xf32>
    tpu.vector_store %arg10[%c0_33, %c4], %74 {strides = array<i32>} : memref<32x36xf32, #tpu.memory_space<vmem>>, vector<32x4xf32>,
    %c0_34 = arith.constant 0 : index
    %c0_35 = arith.constant 0 : index
    %c1 = arith.constant 1 : index
    %c0_36 = arith.constant 0 : index
    %76 = vector.load %arg1[%c0_34, %c0_35, %c1, %c0_36] : memref<1x36x9x4xf32, #tpu.memory_space<vmem>>, vector<1x4x8x4xf32>
    %77 = vector.shape_cast %76 : vector<1x4x8x4xf32> to vector<4x8x4xf32>
    %78 = vector.broadcast %3 : vector<1x1x4xf32> to vector<4x8x4xf32>
    %79 = arith.mulf %77, %78 : vector<4x8x4xf32>
    %80 = vector.broadcast %5 : vector<1x1x4xf32> to vector<4x8x4xf32>
    %81 = arith.addf %79, %80 : vector<4x8x4xf32>
    %cst_37 = arith.constant 0.000000e+00 : f32
    %82 = vector.broadcast %cst_37 : f32 to vector<4x8x4xf32>
    %83 = arith.maximumf %81, %82 : vector<4x8x4xf32>
    %c2_i32_38 = arith.constant 2 : i32
    %84 = vector.broadcast %c2_i32_38 : i32 to vector<4x8x1xi32>
    %85 = arith.muli %84, %8 : vector<4x8x1xi32>
    %c0_i32_39 = arith.constant 0 : i32
    %86 = vector.broadcast %c0_i32_39 : i32 to vector<4x8x1xi32>
    %87 = arith.addi %85, %86 : vector<4x8x1xi32>
    %c2_i32_40 = arith.constant 2 : i32
    %88 = vector.broadcast %c2_i32_40 : i32 to vector<4x8x1xi32>
    %89 = arith.muli %88, %9 : vector<4x8x1xi32>
    %c2_i32_41 = arith.constant 2 : i32
    %90 = vector.broadcast %c2_i32_41 : i32 to vector<4x8x1xi32>
    %91 = arith.addi %89, %90 : vector<4x8x1xi32>
    %c1_i32_42 = arith.constant 1 : i32
    %92 = vector.broadcast %c1_i32_42 : i32 to vector<4x8x1xi32>
    %93 = arith.cmpi sge, %87, %92 : vector<4x8x1xi32>
    %c16_i32_43 = arith.constant 16 : i32
    %94 = vector.broadcast %c16_i32_43 : i32 to vector<4x8x1xi32>
    %95 = arith.cmpi sle, %87, %94 : vector<4x8x1xi32>
    %96 = arith.andi %93, %95 : vector<4x8x1xi1>
    %c1_i32_44 = arith.constant 1 : i32
    %97 = vector.broadcast %c1_i32_44 : i32 to vector<4x8x1xi32>
    %98 = arith.cmpi sge, %91, %97 : vector<4x8x1xi32>
    %99 = arith.andi %96, %98 : vector<4x8x1xi1>
    %c16_i32_45 = arith.constant 16 : i32
    %100 = vector.broadcast %c16_i32_45 : i32 to vector<4x8x1xi32>
    %101 = arith.cmpi sle, %91, %100 : vector<4x8x1xi32>
    %102 = arith.andi %99, %101 : vector<4x8x1xi1>
    %cst_46 = arith.constant 0.000000e+00 : f32
    %103 = vector.shape_cast %102 : vector<4x8x1xi1> to vector<4x8x1xi1>
    %104 = vector.broadcast %103 : vector<4x8x1xi1> to vector<4x8x4xi1>
    %105 = vector.broadcast %cst_46 : f32 to vector<4x8x4xf32>
    %106 = arith.select %104, %83, %105 : vector<4x8x4xi1>, vector<4x8x4xf32>
    %107 = vector.shape_cast %106 : vector<4x8x4xf32> to vector<32x4xf32>
    %c0_47 = arith.constant 0 : index
    %c8 = arith.constant 8 : index
    %108 = vector.load %arg10[%c0_47, %c8] : memref<32x36xf32, #tpu.memory_space<vmem>>, vector<32x4xf32>
    tpu.vector_store %arg10[%c0_47, %c8], %107 {strides = array<i32>} : memref<32x36xf32, #tpu.memory_space<vmem>>, vector<32x4xf32>,
    %c0_48 = arith.constant 0 : index
    %c18 = arith.constant 18 : index
    %c0_49 = arith.constant 0 : index
    %c0_50 = arith.constant 0 : index
    %109 = vector.load %arg1[%c0_48, %c18, %c0_49, %c0_50] : memref<1x36x9x4xf32, #tpu.memory_space<vmem>>, vector<1x4x8x4xf32>
    %110 = vector.shape_cast %109 : vector<1x4x8x4xf32> to vector<4x8x4xf32>
    %111 = vector.broadcast %3 : vector<1x1x4xf32> to vector<4x8x4xf32>
    %112 = arith.mulf %110, %111 : vector<4x8x4xf32>
    %113 = vector.broadcast %5 : vector<1x1x4xf32> to vector<4x8x4xf32>
    %114 = arith.addf %112, %113 : vector<4x8x4xf32>
    %cst_51 = arith.constant 0.000000e+00 : f32
    %115 = vector.broadcast %cst_51 : f32 to vector<4x8x4xf32>
    %116 = arith.maximumf %114, %115 : vector<4x8x4xf32>
    %c2_i32_52 = arith.constant 2 : i32
    %117 = vector.broadcast %c2_i32_52 : i32 to vector<4x8x1xi32>
    %118 = arith.muli %117, %8 : vector<4x8x1xi32>
    %c1_i32_53 = arith.constant 1 : i32
    %119 = vector.broadcast %c1_i32_53 : i32 to vector<4x8x1xi32>
    %120 = arith.addi %118, %119 : vector<4x8x1xi32>
    %c2_i32_54 = arith.constant 2 : i32
    %121 = vector.broadcast %c2_i32_54 : i32 to vector<4x8x1xi32>
    %122 = arith.muli %121, %9 : vector<4x8x1xi32>
    %c0_i32_55 = arith.constant 0 : i32
    %123 = vector.broadcast %c0_i32_55 : i32 to vector<4x8x1xi32>
    %124 = arith.addi %122, %123 : vector<4x8x1xi32>
    %c1_i32_56 = arith.constant 1 : i32
    %125 = vector.broadcast %c1_i32_56 : i32 to vector<4x8x1xi32>
    %126 = arith.cmpi sge, %120, %125 : vector<4x8x1xi32>
    %c16_i32_57 = arith.constant 16 : i32
    %127 = vector.broadcast %c16_i32_57 : i32 to vector<4x8x1xi32>
    %128 = arith.cmpi sle, %120, %127 : vector<4x8x1xi32>
    %129 = arith.andi %126, %128 : vector<4x8x1xi1>
    %c1_i32_58 = arith.constant 1 : i32
    %130 = vector.broadcast %c1_i32_58 : i32 to vector<4x8x1xi32>
    %131 = arith.cmpi sge, %124, %130 : vector<4x8x1xi32>
    %132 = arith.andi %129, %131 : vector<4x8x1xi1>
    %c16_i32_59 = arith.constant 16 : i32
    %133 = vector.broadcast %c16_i32_59 : i32 to vector<4x8x1xi32>
    %134 = arith.cmpi sle, %124, %133 : vector<4x8x1xi32>
    %135 = arith.andi %132, %134 : vector<4x8x1xi1>
    %cst_60 = arith.constant 0.000000e+00 : f32
    %136 = vector.shape_cast %135 : vector<4x8x1xi1> to vector<4x8x1xi1>
    %137 = vector.broadcast %136 : vector<4x8x1xi1> to vector<4x8x4xi1>
    %138 = vector.broadcast %cst_60 : f32 to vector<4x8x4xf32>
    %139 = arith.select %137, %116, %138 : vector<4x8x4xi1>, vector<4x8x4xf32>
    %140 = vector.shape_cast %139 : vector<4x8x4xf32> to vector<32x4xf32>
    %c0_61 = arith.constant 0 : index
    %c12 = arith.constant 12 : index
    %141 = vector.load %arg10[%c0_61, %c12] : memref<32x36xf32, #tpu.memory_space<vmem>>, vector<32x4xf32>
    tpu.vector_store %arg10[%c0_61, %c12], %140 {strides = array<i32>} : memref<32x36xf32, #tpu.memory_space<vmem>>, vector<32x4xf32>,
    %c0_62 = arith.constant 0 : index
    %c27 = arith.constant 27 : index
    %c0_63 = arith.constant 0 : index
    %c0_64 = arith.constant 0 : index
    %142 = vector.load %arg1[%c0_62, %c27, %c0_63, %c0_64] : memref<1x36x9x4xf32, #tpu.memory_space<vmem>>, vector<1x4x8x4xf32>
    %143 = vector.shape_cast %142 : vector<1x4x8x4xf32> to vector<4x8x4xf32>
    %144 = vector.broadcast %3 : vector<1x1x4xf32> to vector<4x8x4xf32>
    %145 = arith.mulf %143, %144 : vector<4x8x4xf32>
    %146 = vector.broadcast %5 : vector<1x1x4xf32> to vector<4x8x4xf32>
    %147 = arith.addf %145, %146 : vector<4x8x4xf32>
    %cst_65 = arith.constant 0.000000e+00 : f32
    %148 = vector.broadcast %cst_65 : f32 to vector<4x8x4xf32>
    %149 = arith.maximumf %147, %148 : vector<4x8x4xf32>
    %c2_i32_66 = arith.constant 2 : i32
    %150 = vector.broadcast %c2_i32_66 : i32 to vector<4x8x1xi32>
    %151 = arith.muli %150, %8 : vector<4x8x1xi32>
    %c1_i32_67 = arith.constant 1 : i32
    %152 = vector.broadcast %c1_i32_67 : i32 to vector<4x8x1xi32>
    %153 = arith.addi %151, %152 : vector<4x8x1xi32>
    %c2_i32_68 = arith.constant 2 : i32
    %154 = vector.broadcast %c2_i32_68 : i32 to vector<4x8x1xi32>
    %155 = arith.muli %154, %9 : vector<4x8x1xi32>
    %c1_i32_69 = arith.constant 1 : i32
    %156 = vector.broadcast %c1_i32_69 : i32 to vector<4x8x1xi32>
    %157 = arith.addi %155, %156 : vector<4x8x1xi32>
    %c1_i32_70 = arith.constant 1 : i32
    %158 = vector.broadcast %c1_i32_70 : i32 to vector<4x8x1xi32>
    %159 = arith.cmpi sge, %153, %158 : vector<4x8x1xi32>
    %c16_i32_71 = arith.constant 16 : i32
    %160 = vector.broadcast %c16_i32_71 : i32 to vector<4x8x1xi32>
    %161 = arith.cmpi sle, %153, %160 : vector<4x8x1xi32>
    %162 = arith.andi %159, %161 : vector<4x8x1xi1>
    %c1_i32_72 = arith.constant 1 : i32
    %163 = vector.broadcast %c1_i32_72 : i32 to vector<4x8x1xi32>
    %164 = arith.cmpi sge, %157, %163 : vector<4x8x1xi32>
    %165 = arith.andi %162, %164 : vector<4x8x1xi1>
    %c16_i32_73 = arith.constant 16 : i32
    %166 = vector.broadcast %c16_i32_73 : i32 to vector<4x8x1xi32>
    %167 = arith.cmpi sle, %157, %166 : vector<4x8x1xi32>
    %168 = arith.andi %165, %167 : vector<4x8x1xi1>
    %cst_74 = arith.constant 0.000000e+00 : f32
    %169 = vector.shape_cast %168 : vector<4x8x1xi1> to vector<4x8x1xi1>
    %170 = vector.broadcast %169 : vector<4x8x1xi1> to vector<4x8x4xi1>
    %171 = vector.broadcast %cst_74 : f32 to vector<4x8x4xf32>
    %172 = arith.select %170, %149, %171 : vector<4x8x4xi1>, vector<4x8x4xf32>
    %173 = vector.shape_cast %172 : vector<4x8x4xf32> to vector<32x4xf32>
    %c0_75 = arith.constant 0 : index
    %c16 = arith.constant 16 : index
    %174 = vector.load %arg10[%c0_75, %c16] : memref<32x36xf32, #tpu.memory_space<vmem>>, vector<32x4xf32>
    tpu.vector_store %arg10[%c0_75, %c16], %173 {strides = array<i32>} : memref<32x36xf32, #tpu.memory_space<vmem>>, vector<32x4xf32>,
    %c0_76 = arith.constant 0 : index
    %c18_77 = arith.constant 18 : index
    %c1_78 = arith.constant 1 : index
    %c0_79 = arith.constant 0 : index
    %175 = vector.load %arg1[%c0_76, %c18_77, %c1_78, %c0_79] : memref<1x36x9x4xf32, #tpu.memory_space<vmem>>, vector<1x4x8x4xf32>
    %176 = vector.shape_cast %175 : vector<1x4x8x4xf32> to vector<4x8x4xf32>
    %177 = vector.broadcast %3 : vector<1x1x4xf32> to vector<4x8x4xf32>
    %178 = arith.mulf %176, %177 : vector<4x8x4xf32>
    %179 = vector.broadcast %5 : vector<1x1x4xf32> to vector<4x8x4xf32>
    %180 = arith.addf %178, %179 : vector<4x8x4xf32>
    %cst_80 = arith.constant 0.000000e+00 : f32
    %181 = vector.broadcast %cst_80 : f32 to vector<4x8x4xf32>
    %182 = arith.maximumf %180, %181 : vector<4x8x4xf32>
    %c2_i32_81 = arith.constant 2 : i32
    %183 = vector.broadcast %c2_i32_81 : i32 to vector<4x8x1xi32>
    %184 = arith.muli %183, %8 : vector<4x8x1xi32>
    %c1_i32_82 = arith.constant 1 : i32
    %185 = vector.broadcast %c1_i32_82 : i32 to vector<4x8x1xi32>
    %186 = arith.addi %184, %185 : vector<4x8x1xi32>
    %c2_i32_83 = arith.constant 2 : i32
    %187 = vector.broadcast %c2_i32_83 : i32 to vector<4x8x1xi32>
    %188 = arith.muli %187, %9 : vector<4x8x1xi32>
    %c2_i32_84 = arith.constant 2 : i32
    %189 = vector.broadcast %c2_i32_84 : i32 to vector<4x8x1xi32>
    %190 = arith.addi %188, %189 : vector<4x8x1xi32>
    %c1_i32_85 = arith.constant 1 : i32
    %191 = vector.broadcast %c1_i32_85 : i32 to vector<4x8x1xi32>
    %192 = arith.cmpi sge, %186, %191 : vector<4x8x1xi32>
    %c16_i32_86 = arith.constant 16 : i32
    %193 = vector.broadcast %c16_i32_86 : i32 to vector<4x8x1xi32>
    %194 = arith.cmpi sle, %186, %193 : vector<4x8x1xi32>
    %195 = arith.andi %192, %194 : vector<4x8x1xi1>
    %c1_i32_87 = arith.constant 1 : i32
    %196 = vector.broadcast %c1_i32_87 : i32 to vector<4x8x1xi32>
    %197 = arith.cmpi sge, %190, %196 : vector<4x8x1xi32>
    %198 = arith.andi %195, %197 : vector<4x8x1xi1>
    %c16_i32_88 = arith.constant 16 : i32
    %199 = vector.broadcast %c16_i32_88 : i32 to vector<4x8x1xi32>
    %200 = arith.cmpi sle, %190, %199 : vector<4x8x1xi32>
    %201 = arith.andi %198, %200 : vector<4x8x1xi1>
    %cst_89 = arith.constant 0.000000e+00 : f32
    %202 = vector.shape_cast %201 : vector<4x8x1xi1> to vector<4x8x1xi1>
    %203 = vector.broadcast %202 : vector<4x8x1xi1> to vector<4x8x4xi1>
    %204 = vector.broadcast %cst_89 : f32 to vector<4x8x4xf32>
    %205 = arith.select %203, %182, %204 : vector<4x8x4xi1>, vector<4x8x4xf32>
    %206 = vector.shape_cast %205 : vector<4x8x4xf32> to vector<32x4xf32>
    %c0_90 = arith.constant 0 : index
    %c20 = arith.constant 20 : index
    %207 = vector.load %arg10[%c0_90, %c20] : memref<32x36xf32, #tpu.memory_space<vmem>>, vector<32x4xf32>
    tpu.vector_store %arg10[%c0_90, %c20], %206 {strides = array<i32>} : memref<32x36xf32, #tpu.memory_space<vmem>>, vector<32x4xf32>,
    %c0_91 = arith.constant 0 : index
    %c1_92 = arith.constant 1 : index
    %c0_93 = arith.constant 0 : index
    %c0_94 = arith.constant 0 : index
    %208 = vector.load %arg1[%c0_91, %c1_92, %c0_93, %c0_94] : memref<1x36x9x4xf32, #tpu.memory_space<vmem>>, vector<1x4x8x4xf32>
    %209 = vector.shape_cast %208 : vector<1x4x8x4xf32> to vector<4x8x4xf32>
    %210 = vector.broadcast %3 : vector<1x1x4xf32> to vector<4x8x4xf32>
    %211 = arith.mulf %209, %210 : vector<4x8x4xf32>
    %212 = vector.broadcast %5 : vector<1x1x4xf32> to vector<4x8x4xf32>
    %213 = arith.addf %211, %212 : vector<4x8x4xf32>
    %cst_95 = arith.constant 0.000000e+00 : f32
    %214 = vector.broadcast %cst_95 : f32 to vector<4x8x4xf32>
    %215 = arith.maximumf %213, %214 : vector<4x8x4xf32>
    %c2_i32_96 = arith.constant 2 : i32
    %216 = vector.broadcast %c2_i32_96 : i32 to vector<4x8x1xi32>
    %217 = arith.muli %216, %8 : vector<4x8x1xi32>
    %c2_i32_97 = arith.constant 2 : i32
    %218 = vector.broadcast %c2_i32_97 : i32 to vector<4x8x1xi32>
    %219 = arith.addi %217, %218 : vector<4x8x1xi32>
    %c2_i32_98 = arith.constant 2 : i32
    %220 = vector.broadcast %c2_i32_98 : i32 to vector<4x8x1xi32>
    %221 = arith.muli %220, %9 : vector<4x8x1xi32>
    %c0_i32_99 = arith.constant 0 : i32
    %222 = vector.broadcast %c0_i32_99 : i32 to vector<4x8x1xi32>
    %223 = arith.addi %221, %222 : vector<4x8x1xi32>
    %c1_i32_100 = arith.constant 1 : i32
    %224 = vector.broadcast %c1_i32_100 : i32 to vector<4x8x1xi32>
    %225 = arith.cmpi sge, %219, %224 : vector<4x8x1xi32>
    %c16_i32_101 = arith.constant 16 : i32
    %226 = vector.broadcast %c16_i32_101 : i32 to vector<4x8x1xi32>
    %227 = arith.cmpi sle, %219, %226 : vector<4x8x1xi32>
    %228 = arith.andi %225, %227 : vector<4x8x1xi1>
    %c1_i32_102 = arith.constant 1 : i32
    %229 = vector.broadcast %c1_i32_102 : i32 to vector<4x8x1xi32>
    %230 = arith.cmpi sge, %223, %229 : vector<4x8x1xi32>
    %231 = arith.andi %228, %230 : vector<4x8x1xi1>
    %c16_i32_103 = arith.constant 16 : i32
    %232 = vector.broadcast %c16_i32_103 : i32 to vector<4x8x1xi32>
    %233 = arith.cmpi sle, %223, %232 : vector<4x8x1xi32>
    %234 = arith.andi %231, %233 : vector<4x8x1xi1>
    %cst_104 = arith.constant 0.000000e+00 : f32
    %235 = vector.shape_cast %234 : vector<4x8x1xi1> to vector<4x8x1xi1>
    %236 = vector.broadcast %235 : vector<4x8x1xi1> to vector<4x8x4xi1>
    %237 = vector.broadcast %cst_104 : f32 to vector<4x8x4xf32>
    %238 = arith.select %236, %215, %237 : vector<4x8x4xi1>, vector<4x8x4xf32>
    %239 = vector.shape_cast %238 : vector<4x8x4xf32> to vector<32x4xf32>
    %c0_105 = arith.constant 0 : index
    %c24 = arith.constant 24 : index
    %240 = vector.load %arg10[%c0_105, %c24] : memref<32x36xf32, #tpu.memory_space<vmem>>, vector<32x4xf32>
    tpu.vector_store %arg10[%c0_105, %c24], %239 {strides = array<i32>} : memref<32x36xf32, #tpu.memory_space<vmem>>, vector<32x4xf32>,
    %c0_106 = arith.constant 0 : index
    %c10 = arith.constant 10 : index
    %c0_107 = arith.constant 0 : index
    %c0_108 = arith.constant 0 : index
    %241 = vector.load %arg1[%c0_106, %c10, %c0_107, %c0_108] : memref<1x36x9x4xf32, #tpu.memory_space<vmem>>, vector<1x4x8x4xf32>
    %242 = vector.shape_cast %241 : vector<1x4x8x4xf32> to vector<4x8x4xf32>
    %243 = vector.broadcast %3 : vector<1x1x4xf32> to vector<4x8x4xf32>
    %244 = arith.mulf %242, %243 : vector<4x8x4xf32>
    %245 = vector.broadcast %5 : vector<1x1x4xf32> to vector<4x8x4xf32>
    %246 = arith.addf %244, %245 : vector<4x8x4xf32>
    %cst_109 = arith.constant 0.000000e+00 : f32
    %247 = vector.broadcast %cst_109 : f32 to vector<4x8x4xf32>
    %248 = arith.maximumf %246, %247 : vector<4x8x4xf32>
    %c2_i32_110 = arith.constant 2 : i32
    %249 = vector.broadcast %c2_i32_110 : i32 to vector<4x8x1xi32>
    %250 = arith.muli %249, %8 : vector<4x8x1xi32>
    %c2_i32_111 = arith.constant 2 : i32
    %251 = vector.broadcast %c2_i32_111 : i32 to vector<4x8x1xi32>
    %252 = arith.addi %250, %251 : vector<4x8x1xi32>
    %c2_i32_112 = arith.constant 2 : i32
    %253 = vector.broadcast %c2_i32_112 : i32 to vector<4x8x1xi32>
    %254 = arith.muli %253, %9 : vector<4x8x1xi32>
    %c1_i32_113 = arith.constant 1 : i32
    %255 = vector.broadcast %c1_i32_113 : i32 to vector<4x8x1xi32>
    %256 = arith.addi %254, %255 : vector<4x8x1xi32>
    %c1_i32_114 = arith.constant 1 : i32
    %257 = vector.broadcast %c1_i32_114 : i32 to vector<4x8x1xi32>
    %258 = arith.cmpi sge, %252, %257 : vector<4x8x1xi32>
    %c16_i32_115 = arith.constant 16 : i32
    %259 = vector.broadcast %c16_i32_115 : i32 to vector<4x8x1xi32>
    %260 = arith.cmpi sle, %252, %259 : vector<4x8x1xi32>
    %261 = arith.andi %258, %260 : vector<4x8x1xi1>
    %c1_i32_116 = arith.constant 1 : i32
    %262 = vector.broadcast %c1_i32_116 : i32 to vector<4x8x1xi32>
    %263 = arith.cmpi sge, %256, %262 : vector<4x8x1xi32>
    %264 = arith.andi %261, %263 : vector<4x8x1xi1>
    %c16_i32_117 = arith.constant 16 : i32
    %265 = vector.broadcast %c16_i32_117 : i32 to vector<4x8x1xi32>
    %266 = arith.cmpi sle, %256, %265 : vector<4x8x1xi32>
    %267 = arith.andi %264, %266 : vector<4x8x1xi1>
    %cst_118 = arith.constant 0.000000e+00 : f32
    %268 = vector.shape_cast %267 : vector<4x8x1xi1> to vector<4x8x1xi1>
    %269 = vector.broadcast %268 : vector<4x8x1xi1> to vector<4x8x4xi1>
    %270 = vector.broadcast %cst_118 : f32 to vector<4x8x4xf32>
    %271 = arith.select %269, %248, %270 : vector<4x8x4xi1>, vector<4x8x4xf32>
    %272 = vector.shape_cast %271 : vector<4x8x4xf32> to vector<32x4xf32>
    %c0_119 = arith.constant 0 : index
    %c28 = arith.constant 28 : index
    %273 = vector.load %arg10[%c0_119, %c28] : memref<32x36xf32, #tpu.memory_space<vmem>>, vector<32x4xf32>
    tpu.vector_store %arg10[%c0_119, %c28], %272 {strides = array<i32>} : memref<32x36xf32, #tpu.memory_space<vmem>>, vector<32x4xf32>,
    %c0_120 = arith.constant 0 : index
    %c1_121 = arith.constant 1 : index
    %c1_122 = arith.constant 1 : index
    %c0_123 = arith.constant 0 : index
    %274 = vector.load %arg1[%c0_120, %c1_121, %c1_122, %c0_123] : memref<1x36x9x4xf32, #tpu.memory_space<vmem>>, vector<1x4x8x4xf32>
    %275 = vector.shape_cast %274 : vector<1x4x8x4xf32> to vector<4x8x4xf32>
    %276 = vector.broadcast %3 : vector<1x1x4xf32> to vector<4x8x4xf32>
    %277 = arith.mulf %275, %276 : vector<4x8x4xf32>
    %278 = vector.broadcast %5 : vector<1x1x4xf32> to vector<4x8x4xf32>
    %279 = arith.addf %277, %278 : vector<4x8x4xf32>
    %cst_124 = arith.constant 0.000000e+00 : f32
    %280 = vector.broadcast %cst_124 : f32 to vector<4x8x4xf32>
    %281 = arith.maximumf %279, %280 : vector<4x8x4xf32>
    %c2_i32_125 = arith.constant 2 : i32
    %282 = vector.broadcast %c2_i32_125 : i32 to vector<4x8x1xi32>
    %283 = arith.muli %282, %8 : vector<4x8x1xi32>
    %c2_i32_126 = arith.constant 2 : i32
    %284 = vector.broadcast %c2_i32_126 : i32 to vector<4x8x1xi32>
    %285 = arith.addi %283, %284 : vector<4x8x1xi32>
    %c2_i32_127 = arith.constant 2 : i32
    %286 = vector.broadcast %c2_i32_127 : i32 to vector<4x8x1xi32>
    %287 = arith.muli %286, %9 : vector<4x8x1xi32>
    %c2_i32_128 = arith.constant 2 : i32
    %288 = vector.broadcast %c2_i32_128 : i32 to vector<4x8x1xi32>
    %289 = arith.addi %287, %288 : vector<4x8x1xi32>
    %c1_i32_129 = arith.constant 1 : i32
    %290 = vector.broadcast %c1_i32_129 : i32 to vector<4x8x1xi32>
    %291 = arith.cmpi sge, %285, %290 : vector<4x8x1xi32>
    %c16_i32_130 = arith.constant 16 : i32
    %292 = vector.broadcast %c16_i32_130 : i32 to vector<4x8x1xi32>
    %293 = arith.cmpi sle, %285, %292 : vector<4x8x1xi32>
    %294 = arith.andi %291, %293 : vector<4x8x1xi1>
    %c1_i32_131 = arith.constant 1 : i32
    %295 = vector.broadcast %c1_i32_131 : i32 to vector<4x8x1xi32>
    %296 = arith.cmpi sge, %289, %295 : vector<4x8x1xi32>
    %297 = arith.andi %294, %296 : vector<4x8x1xi1>
    %c16_i32_132 = arith.constant 16 : i32
    %298 = vector.broadcast %c16_i32_132 : i32 to vector<4x8x1xi32>
    %299 = arith.cmpi sle, %289, %298 : vector<4x8x1xi32>
    %300 = arith.andi %297, %299 : vector<4x8x1xi1>
    %cst_133 = arith.constant 0.000000e+00 : f32
    %301 = vector.shape_cast %300 : vector<4x8x1xi1> to vector<4x8x1xi1>
    %302 = vector.broadcast %301 : vector<4x8x1xi1> to vector<4x8x4xi1>
    %303 = vector.broadcast %cst_133 : f32 to vector<4x8x4xf32>
    %304 = arith.select %302, %281, %303 : vector<4x8x4xi1>, vector<4x8x4xf32>
    %305 = vector.shape_cast %304 : vector<4x8x4xf32> to vector<32x4xf32>
    %c0_134 = arith.constant 0 : index
    %c32 = arith.constant 32 : index
    %306 = vector.load %arg10[%c0_134, %c32] : memref<32x36xf32, #tpu.memory_space<vmem>>, vector<32x4xf32>
    tpu.vector_store %arg10[%c0_134, %c32], %305 {strides = array<i32>} : memref<32x36xf32, #tpu.memory_space<vmem>>, vector<32x4xf32>,
    %c0_135 = arith.constant 0 : index
    %c0_136 = arith.constant 0 : index
    %307 = vector.load %arg10[%c0_135, %c0_136] : memref<32x36xf32, #tpu.memory_space<vmem>>, vector<32x36xf32>
    %308 = arith.truncf %307 : vector<32x36xf32> to vector<32x36xbf16>
    %c0_137 = arith.constant 0 : index
    %c0_138 = arith.constant 0 : index
    %309 = vector.load %arg6[%c0_137, %c0_138] : memref<36x8xbf16, #tpu.memory_space<vmem>>, vector<36x8xbf16>
    %cst_139 = arith.constant dense<0.000000e+00> : vector<32x8xf32>
    %310 = tpu.matmul %308, %309, %cst_139 {dimension_numbers = #tpu.dot_dimension_numbers<[1], [0], [0], [1], [0, 0, 1, 1], [], []>} : vector<32x36xbf16>, vector<36x8xbf16>, vector<32x8xf32> -> vector<32x8xf32>
    %c0_140 = arith.constant 0 : index
    %c0_141 = arith.constant 0 : index
    %311 = vector.load %arg4[%c0_140, %c0_141] : memref<1x8xf32, #tpu.memory_space<vmem>>, vector<1x8xf32>
    %312 = vector.broadcast %311 : vector<1x8xf32> to vector<32x8xf32>
    %313 = arith.mulf %310, %312 : vector<32x8xf32>
    %c0_142 = arith.constant 0 : index
    %c0_143 = arith.constant 0 : index
    %314 = vector.load %arg5[%c0_142, %c0_143] : memref<1x8xf32, #tpu.memory_space<vmem>>, vector<1x8xf32>
    %315 = vector.broadcast %314 : vector<1x8xf32> to vector<32x8xf32>
    %316 = arith.addf %313, %315 : vector<32x8xf32>
    %cst_144 = arith.constant 0.000000e+00 : f32
    %317 = vector.broadcast %cst_144 : f32 to vector<32x8xf32>
    %318 = arith.maximumf %316, %317 : vector<32x8xf32>
    %319 = vector.shape_cast %318 : vector<32x8xf32> to vector<4x8x8xf32>
    %c0_145 = arith.constant 0 : index
    %c1_146 = arith.constant 1 : index
    %c1_147 = arith.constant 1 : index
    %c0_148 = arith.constant 0 : index
    %320 = vector.load %arg8[%c0_145, %c1_146, %c1_147, %c0_148] : memref<1x10x10x8xf32, #tpu.memory_space<vmem>>, vector<1x4x8x8xf32>
    %321 = vector.shape_cast %320 : vector<1x4x8x8xf32> to vector<4x8x8xf32>
    %322 = vector.shape_cast %319 : vector<4x8x8xf32> to vector<1x4x8x8xf32>
    tpu.vector_store %arg8[%c0_145, %c1_146, %c1_147, %c0_148], %322 {strides = array<i32>} : memref<1x10x10x8xf32, #tpu.memory_space<vmem>>, vector<1x4x8x8xf32>,
    %323 = arith.truncf %173 : vector<32x4xf32> to vector<32x4xbf16>
    %c0_149 = arith.constant 0 : index
    %c0_150 = arith.constant 0 : index
    %324 = vector.load %arg7[%c0_149, %c0_150] : memref<4x8xbf16, #tpu.memory_space<vmem>>, vector<4x8xbf16>
    %cst_151 = arith.constant dense<0.000000e+00> : vector<32x8xf32>
    %325 = tpu.matmul %323, %324, %cst_151 {dimension_numbers = #tpu.dot_dimension_numbers<[1], [0], [0], [1], [0, 0, 1, 1], [], []>} : vector<32x4xbf16>, vector<4x8xbf16>, vector<32x8xf32> -> vector<32x8xf32>
    %c0_152 = arith.constant 0 : index
    %c0_153 = arith.constant 0 : index
    %c0_154 = arith.constant 0 : index
    %326 = vector.load %arg9[%c0_152, %c0_153, %c0_154] : memref<1x64x8xf32, #tpu.memory_space<vmem>>, vector<1x32x8xf32>
    %327 = vector.shape_cast %326 : vector<1x32x8xf32> to vector<32x8xf32>
    %328 = vector.shape_cast %325 : vector<32x8xf32> to vector<1x32x8xf32>
    tpu.vector_store %arg9[%c0_152, %c0_153, %c0_154], %328 {strides = array<i32>} : memref<1x64x8xf32, #tpu.memory_space<vmem>>, vector<1x32x8xf32>,
    %329 = tpu.iota {dimensions = array<i32: 0>} : vector<4x8x1xi32>
    %c4_i32 = arith.constant 4 : i32
    %330 = vector.broadcast %c4_i32 : i32 to vector<4x8x1xi32>
    %331 = arith.addi %329, %330 : vector<4x8x1xi32>
    %332 = tpu.iota {dimensions = array<i32: 1>} : vector<4x8x1xi32>
    %c0_155 = arith.constant 0 : index
    %c4_156 = arith.constant 4 : index
    %c0_157 = arith.constant 0 : index
    %c0_158 = arith.constant 0 : index
    %333 = vector.load %arg1[%c0_155, %c4_156, %c0_157, %c0_158] : memref<1x36x9x4xf32, #tpu.memory_space<vmem>>, vector<1x4x8x4xf32>
    %334 = vector.shape_cast %333 : vector<1x4x8x4xf32> to vector<4x8x4xf32>
    %335 = vector.broadcast %3 : vector<1x1x4xf32> to vector<4x8x4xf32>
    %336 = arith.mulf %334, %335 : vector<4x8x4xf32>
    %337 = vector.broadcast %5 : vector<1x1x4xf32> to vector<4x8x4xf32>
    %338 = arith.addf %336, %337 : vector<4x8x4xf32>
    %cst_159 = arith.constant 0.000000e+00 : f32
    %339 = vector.broadcast %cst_159 : f32 to vector<4x8x4xf32>
    %340 = arith.maximumf %338, %339 : vector<4x8x4xf32>
    %c2_i32_160 = arith.constant 2 : i32
    %341 = vector.broadcast %c2_i32_160 : i32 to vector<4x8x1xi32>
    %342 = arith.muli %341, %331 : vector<4x8x1xi32>
    %c0_i32_161 = arith.constant 0 : i32
    %343 = vector.broadcast %c0_i32_161 : i32 to vector<4x8x1xi32>
    %344 = arith.addi %342, %343 : vector<4x8x1xi32>
    %c2_i32_162 = arith.constant 2 : i32
    %345 = vector.broadcast %c2_i32_162 : i32 to vector<4x8x1xi32>
    %346 = arith.muli %345, %332 : vector<4x8x1xi32>
    %c0_i32_163 = arith.constant 0 : i32
    %347 = vector.broadcast %c0_i32_163 : i32 to vector<4x8x1xi32>
    %348 = arith.addi %346, %347 : vector<4x8x1xi32>
    %c1_i32_164 = arith.constant 1 : i32
    %349 = vector.broadcast %c1_i32_164 : i32 to vector<4x8x1xi32>
    %350 = arith.cmpi sge, %344, %349 : vector<4x8x1xi32>
    %c16_i32_165 = arith.constant 16 : i32
    %351 = vector.broadcast %c16_i32_165 : i32 to vector<4x8x1xi32>
    %352 = arith.cmpi sle, %344, %351 : vector<4x8x1xi32>
    %353 = arith.andi %350, %352 : vector<4x8x1xi1>
    %c1_i32_166 = arith.constant 1 : i32
    %354 = vector.broadcast %c1_i32_166 : i32 to vector<4x8x1xi32>
    %355 = arith.cmpi sge, %348, %354 : vector<4x8x1xi32>
    %356 = arith.andi %353, %355 : vector<4x8x1xi1>
    %c16_i32_167 = arith.constant 16 : i32
    %357 = vector.broadcast %c16_i32_167 : i32 to vector<4x8x1xi32>
    %358 = arith.cmpi sle, %348, %357 : vector<4x8x1xi32>
    %359 = arith.andi %356, %358 : vector<4x8x1xi1>
    %cst_168 = arith.constant 0.000000e+00 : f32
    %360 = vector.shape_cast %359 : vector<4x8x1xi1> to vector<4x8x1xi1>
    %361 = vector.broadcast %360 : vector<4x8x1xi1> to vector<4x8x4xi1>
    %362 = vector.broadcast %cst_168 : f32 to vector<4x8x4xf32>
    %363 = arith.select %361, %340, %362 : vector<4x8x4xi1>, vector<4x8x4xf32>
    %364 = vector.shape_cast %363 : vector<4x8x4xf32> to vector<32x4xf32>
    %c0_169 = arith.constant 0 : index
    %c0_170 = arith.constant 0 : index
    %365 = vector.load %arg10[%c0_169, %c0_170] : memref<32x36xf32, #tpu.memory_space<vmem>>, vector<32x4xf32>
    tpu.vector_store %arg10[%c0_169, %c0_170], %364 {strides = array<i32>} : memref<32x36xf32, #tpu.memory_space<vmem>>, vector<32x4xf32>,
    %c0_171 = arith.constant 0 : index
    %c13 = arith.constant 13 : index
    %c0_172 = arith.constant 0 : index
    %c0_173 = arith.constant 0 : index
    %366 = vector.load %arg1[%c0_171, %c13, %c0_172, %c0_173] : memref<1x36x9x4xf32, #tpu.memory_space<vmem>>, vector<1x4x8x4xf32>
    %367 = vector.shape_cast %366 : vector<1x4x8x4xf32> to vector<4x8x4xf32>
    %368 = vector.broadcast %3 : vector<1x1x4xf32> to vector<4x8x4xf32>
    %369 = arith.mulf %367, %368 : vector<4x8x4xf32>
    %370 = vector.broadcast %5 : vector<1x1x4xf32> to vector<4x8x4xf32>
    %371 = arith.addf %369, %370 : vector<4x8x4xf32>
    %cst_174 = arith.constant 0.000000e+00 : f32
    %372 = vector.broadcast %cst_174 : f32 to vector<4x8x4xf32>
    %373 = arith.maximumf %371, %372 : vector<4x8x4xf32>
    %c2_i32_175 = arith.constant 2 : i32
    %374 = vector.broadcast %c2_i32_175 : i32 to vector<4x8x1xi32>
    %375 = arith.muli %374, %331 : vector<4x8x1xi32>
    %c0_i32_176 = arith.constant 0 : i32
    %376 = vector.broadcast %c0_i32_176 : i32 to vector<4x8x1xi32>
    %377 = arith.addi %375, %376 : vector<4x8x1xi32>
    %c2_i32_177 = arith.constant 2 : i32
    %378 = vector.broadcast %c2_i32_177 : i32 to vector<4x8x1xi32>
    %379 = arith.muli %378, %332 : vector<4x8x1xi32>
    %c1_i32_178 = arith.constant 1 : i32
    %380 = vector.broadcast %c1_i32_178 : i32 to vector<4x8x1xi32>
    %381 = arith.addi %379, %380 : vector<4x8x1xi32>
    %c1_i32_179 = arith.constant 1 : i32
    %382 = vector.broadcast %c1_i32_179 : i32 to vector<4x8x1xi32>
    %383 = arith.cmpi sge, %377, %382 : vector<4x8x1xi32>
    %c16_i32_180 = arith.constant 16 : i32
    %384 = vector.broadcast %c16_i32_180 : i32 to vector<4x8x1xi32>
    %385 = arith.cmpi sle, %377, %384 : vector<4x8x1xi32>
    %386 = arith.andi %383, %385 : vector<4x8x1xi1>
    %c1_i32_181 = arith.constant 1 : i32
    %387 = vector.broadcast %c1_i32_181 : i32 to vector<4x8x1xi32>
    %388 = arith.cmpi sge, %381, %387 : vector<4x8x1xi32>
    %389 = arith.andi %386, %388 : vector<4x8x1xi1>
    %c16_i32_182 = arith.constant 16 : i32
    %390 = vector.broadcast %c16_i32_182 : i32 to vector<4x8x1xi32>
    %391 = arith.cmpi sle, %381, %390 : vector<4x8x1xi32>
    %392 = arith.andi %389, %391 : vector<4x8x1xi1>
    %cst_183 = arith.constant 0.000000e+00 : f32
    %393 = vector.shape_cast %392 : vector<4x8x1xi1> to vector<4x8x1xi1>
    %394 = vector.broadcast %393 : vector<4x8x1xi1> to vector<4x8x4xi1>
    %395 = vector.broadcast %cst_183 : f32 to vector<4x8x4xf32>
    %396 = arith.select %394, %373, %395 : vector<4x8x4xi1>, vector<4x8x4xf32>
    %397 = vector.shape_cast %396 : vector<4x8x4xf32> to vector<32x4xf32>
    %c0_184 = arith.constant 0 : index
    %c4_185 = arith.constant 4 : index
    %398 = vector.load %arg10[%c0_184, %c4_185] : memref<32x36xf32, #tpu.memory_space<vmem>>, vector<32x4xf32>
    tpu.vector_store %arg10[%c0_184, %c4_185], %397 {strides = array<i32>} : memref<32x36xf32, #tpu.memory_space<vmem>>, vector<32x4xf32>,
    %c0_186 = arith.constant 0 : index
    %c4_187 = arith.constant 4 : index
    %c1_188 = arith.constant 1 : index
    %c0_189 = arith.constant 0 : index
    %399 = vector.load %arg1[%c0_186, %c4_187, %c1_188, %c0_189] : memref<1x36x9x4xf32, #tpu.memory_space<vmem>>, vector<1x4x8x4xf32>
    %400 = vector.shape_cast %399 : vector<1x4x8x4xf32> to vector<4x8x4xf32>
    %401 = vector.broadcast %3 : vector<1x1x4xf32> to vector<4x8x4xf32>
    %402 = arith.mulf %400, %401 : vector<4x8x4xf32>
    %403 = vector.broadcast %5 : vector<1x1x4xf32> to vector<4x8x4xf32>
    %404 = arith.addf %402, %403 : vector<4x8x4xf32>
    %cst_190 = arith.constant 0.000000e+00 : f32
    %405 = vector.broadcast %cst_190 : f32 to vector<4x8x4xf32>
    %406 = arith.maximumf %404, %405 : vector<4x8x4xf32>
    %c2_i32_191 = arith.constant 2 : i32
    %407 = vector.broadcast %c2_i32_191 : i32 to vector<4x8x1xi32>
    %408 = arith.muli %407, %331 : vector<4x8x1xi32>
    %c0_i32_192 = arith.constant 0 : i32
    %409 = vector.broadcast %c0_i32_192 : i32 to vector<4x8x1xi32>
    %410 = arith.addi %408, %409 : vector<4x8x1xi32>
    %c2_i32_193 = arith.constant 2 : i32
    %411 = vector.broadcast %c2_i32_193 : i32 to vector<4x8x1xi32>
    %412 = arith.muli %411, %332 : vector<4x8x1xi32>
    %c2_i32_194 = arith.constant 2 : i32
    %413 = vector.broadcast %c2_i32_194 : i32 to vector<4x8x1xi32>
    %414 = arith.addi %412, %413 : vector<4x8x1xi32>
    %c1_i32_195 = arith.constant 1 : i32
    %415 = vector.broadcast %c1_i32_195 : i32 to vector<4x8x1xi32>
    %416 = arith.cmpi sge, %410, %415 : vector<4x8x1xi32>
    %c16_i32_196 = arith.constant 16 : i32
    %417 = vector.broadcast %c16_i32_196 : i32 to vector<4x8x1xi32>
    %418 = arith.cmpi sle, %410, %417 : vector<4x8x1xi32>
    %419 = arith.andi %416, %418 : vector<4x8x1xi1>
    %c1_i32_197 = arith.constant 1 : i32
    %420 = vector.broadcast %c1_i32_197 : i32 to vector<4x8x1xi32>
    %421 = arith.cmpi sge, %414, %420 : vector<4x8x1xi32>
    %422 = arith.andi %419, %421 : vector<4x8x1xi1>
    %c16_i32_198 = arith.constant 16 : i32
    %423 = vector.broadcast %c16_i32_198 : i32 to vector<4x8x1xi32>
    %424 = arith.cmpi sle, %414, %423 : vector<4x8x1xi32>
    %425 = arith.andi %422, %424 : vector<4x8x1xi1>
    %cst_199 = arith.constant 0.000000e+00 : f32
    %426 = vector.shape_cast %425 : vector<4x8x1xi1> to vector<4x8x1xi1>
    %427 = vector.broadcast %426 : vector<4x8x1xi1> to vector<4x8x4xi1>
    %428 = vector.broadcast %cst_199 : f32 to vector<4x8x4xf32>
    %429 = arith.select %427, %406, %428 : vector<4x8x4xi1>, vector<4x8x4xf32>
    %430 = vector.shape_cast %429 : vector<4x8x4xf32> to vector<32x4xf32>
    %c0_200 = arith.constant 0 : index
    %c8_201 = arith.constant 8 : index
    %431 = vector.load %arg10[%c0_200, %c8_201] : memref<32x36xf32, #tpu.memory_space<vmem>>, vector<32x4xf32>
    tpu.vector_store %arg10[%c0_200, %c8_201], %430 {strides = array<i32>} : memref<32x36xf32, #tpu.memory_space<vmem>>, vector<32x4xf32>,
    %c0_202 = arith.constant 0 : index
    %c22 = arith.constant 22 : index
    %c0_203 = arith.constant 0 : index
    %c0_204 = arith.constant 0 : index
    %432 = vector.load %arg1[%c0_202, %c22, %c0_203, %c0_204] : memref<1x36x9x4xf32, #tpu.memory_space<vmem>>, vector<1x4x8x4xf32>
    %433 = vector.shape_cast %432 : vector<1x4x8x4xf32> to vector<4x8x4xf32>
    %434 = vector.broadcast %3 : vector<1x1x4xf32> to vector<4x8x4xf32>
    %435 = arith.mulf %433, %434 : vector<4x8x4xf32>
    %436 = vector.broadcast %5 : vector<1x1x4xf32> to vector<4x8x4xf32>
    %437 = arith.addf %435, %436 : vector<4x8x4xf32>
    %cst_205 = arith.constant 0.000000e+00 : f32
    %438 = vector.broadcast %cst_205 : f32 to vector<4x8x4xf32>
    %439 = arith.maximumf %437, %438 : vector<4x8x4xf32>
    %c2_i32_206 = arith.constant 2 : i32
    %440 = vector.broadcast %c2_i32_206 : i32 to vector<4x8x1xi32>
    %441 = arith.muli %440, %331 : vector<4x8x1xi32>
    %c1_i32_207 = arith.constant 1 : i32
    %442 = vector.broadcast %c1_i32_207 : i32 to vector<4x8x1xi32>
    %443 = arith.addi %441, %442 : vector<4x8x1xi32>
    %c2_i32_208 = arith.constant 2 : i32
    %444 = vector.broadcast %c2_i32_208 : i32 to vector<4x8x1xi32>
    %445 = arith.muli %444, %332 : vector<4x8x1xi32>
    %c0_i32_209 = arith.constant 0 : i32
    %446 = vector.broadcast %c0_i32_209 : i32 to vector<4x8x1xi32>
    %447 = arith.addi %445, %446 : vector<4x8x1xi32>
    %c1_i32_210 = arith.constant 1 : i32
    %448 = vector.broadcast %c1_i32_210 : i32 to vector<4x8x1xi32>
    %449 = arith.cmpi sge, %443, %448 : vector<4x8x1xi32>
    %c16_i32_211 = arith.constant 16 : i32
    %450 = vector.broadcast %c16_i32_211 : i32 to vector<4x8x1xi32>
    %451 = arith.cmpi sle, %443, %450 : vector<4x8x1xi32>
    %452 = arith.andi %449, %451 : vector<4x8x1xi1>
    %c1_i32_212 = arith.constant 1 : i32
    %453 = vector.broadcast %c1_i32_212 : i32 to vector<4x8x1xi32>
    %454 = arith.cmpi sge, %447, %453 : vector<4x8x1xi32>
    %455 = arith.andi %452, %454 : vector<4x8x1xi1>
    %c16_i32_213 = arith.constant 16 : i32
    %456 = vector.broadcast %c16_i32_213 : i32 to vector<4x8x1xi32>
    %457 = arith.cmpi sle, %447, %456 : vector<4x8x1xi32>
    %458 = arith.andi %455, %457 : vector<4x8x1xi1>
    %cst_214 = arith.constant 0.000000e+00 : f32
    %459 = vector.shape_cast %458 : vector<4x8x1xi1> to vector<4x8x1xi1>
    %460 = vector.broadcast %459 : vector<4x8x1xi1> to vector<4x8x4xi1>
    %461 = vector.broadcast %cst_214 : f32 to vector<4x8x4xf32>
    %462 = arith.select %460, %439, %461 : vector<4x8x4xi1>, vector<4x8x4xf32>
    %463 = vector.shape_cast %462 : vector<4x8x4xf32> to vector<32x4xf32>
    %c0_215 = arith.constant 0 : index
    %c12_216 = arith.constant 12 : index
    %464 = vector.load %arg10[%c0_215, %c12_216] : memref<32x36xf32, #tpu.memory_space<vmem>>, vector<32x4xf32>
    tpu.vector_store %arg10[%c0_215, %c12_216], %463 {strides = array<i32>} : memref<32x36xf32, #tpu.memory_space<vmem>>, vector<32x4xf32>,
    %c0_217 = arith.constant 0 : index
    %c31 = arith.constant 31 : index
    %c0_218 = arith.constant 0 : index
    %c0_219 = arith.constant 0 : index
    %465 = vector.load %arg1[%c0_217, %c31, %c0_218, %c0_219] : memref<1x36x9x4xf32, #tpu.memory_space<vmem>>, vector<1x4x8x4xf32>
    %466 = vector.shape_cast %465 : vector<1x4x8x4xf32> to vector<4x8x4xf32>
    %467 = vector.broadcast %3 : vector<1x1x4xf32> to vector<4x8x4xf32>
    %468 = arith.mulf %466, %467 : vector<4x8x4xf32>
    %469 = vector.broadcast %5 : vector<1x1x4xf32> to vector<4x8x4xf32>
    %470 = arith.addf %468, %469 : vector<4x8x4xf32>
    %cst_220 = arith.constant 0.000000e+00 : f32
    %471 = vector.broadcast %cst_220 : f32 to vector<4x8x4xf32>
    %472 = arith.maximumf %470, %471 : vector<4x8x4xf32>
    %c2_i32_221 = arith.constant 2 : i32
    %473 = vector.broadcast %c2_i32_221 : i32 to vector<4x8x1xi32>
    %474 = arith.muli %473, %331 : vector<4x8x1xi32>
    %c1_i32_222 = arith.constant 1 : i32
    %475 = vector.broadcast %c1_i32_222 : i32 to vector<4x8x1xi32>
    %476 = arith.addi %474, %475 : vector<4x8x1xi32>
    %c2_i32_223 = arith.constant 2 : i32
    %477 = vector.broadcast %c2_i32_223 : i32 to vector<4x8x1xi32>
    %478 = arith.muli %477, %332 : vector<4x8x1xi32>
    %c1_i32_224 = arith.constant 1 : i32
    %479 = vector.broadcast %c1_i32_224 : i32 to vector<4x8x1xi32>
    %480 = arith.addi %478, %479 : vector<4x8x1xi32>
    %c1_i32_225 = arith.constant 1 : i32
    %481 = vector.broadcast %c1_i32_225 : i32 to vector<4x8x1xi32>
    %482 = arith.cmpi sge, %476, %481 : vector<4x8x1xi32>
    %c16_i32_226 = arith.constant 16 : i32
    %483 = vector.broadcast %c16_i32_226 : i32 to vector<4x8x1xi32>
    %484 = arith.cmpi sle, %476, %483 : vector<4x8x1xi32>
    %485 = arith.andi %482, %484 : vector<4x8x1xi1>
    %c1_i32_227 = arith.constant 1 : i32
    %486 = vector.broadcast %c1_i32_227 : i32 to vector<4x8x1xi32>
    %487 = arith.cmpi sge, %480, %486 : vector<4x8x1xi32>
    %488 = arith.andi %485, %487 : vector<4x8x1xi1>
    %c16_i32_228 = arith.constant 16 : i32
    %489 = vector.broadcast %c16_i32_228 : i32 to vector<4x8x1xi32>
    %490 = arith.cmpi sle, %480, %489 : vector<4x8x1xi32>
    %491 = arith.andi %488, %490 : vector<4x8x1xi1>
    %cst_229 = arith.constant 0.000000e+00 : f32
    %492 = vector.shape_cast %491 : vector<4x8x1xi1> to vector<4x8x1xi1>
    %493 = vector.broadcast %492 : vector<4x8x1xi1> to vector<4x8x4xi1>
    %494 = vector.broadcast %cst_229 : f32 to vector<4x8x4xf32>
    %495 = arith.select %493, %472, %494 : vector<4x8x4xi1>, vector<4x8x4xf32>
    %496 = vector.shape_cast %495 : vector<4x8x4xf32> to vector<32x4xf32>
    %c0_230 = arith.constant 0 : index
    %c16_231 = arith.constant 16 : index
    %497 = vector.load %arg10[%c0_230, %c16_231] : memref<32x36xf32, #tpu.memory_space<vmem>>, vector<32x4xf32>
    tpu.vector_store %arg10[%c0_230, %c16_231], %496 {strides = array<i32>} : memref<32x36xf32, #tpu.memory_space<vmem>>, vector<32x4xf32>,
    %c0_232 = arith.constant 0 : index
    %c22_233 = arith.constant 22 : index
    %c1_234 = arith.constant 1 : index
    %c0_235 = arith.constant 0 : index
    %498 = vector.load %arg1[%c0_232, %c22_233, %c1_234, %c0_235] : memref<1x36x9x4xf32, #tpu.memory_space<vmem>>, vector<1x4x8x4xf32>
    %499 = vector.shape_cast %498 : vector<1x4x8x4xf32> to vector<4x8x4xf32>
    %500 = vector.broadcast %3 : vector<1x1x4xf32> to vector<4x8x4xf32>
    %501 = arith.mulf %499, %500 : vector<4x8x4xf32>
    %502 = vector.broadcast %5 : vector<1x1x4xf32> to vector<4x8x4xf32>
    %503 = arith.addf %501, %502 : vector<4x8x4xf32>
    %cst_236 = arith.constant 0.000000e+00 : f32
    %504 = vector.broadcast %cst_236 : f32 to vector<4x8x4xf32>
    %505 = arith.maximumf %503, %504 : vector<4x8x4xf32>
    %c2_i32_237 = arith.constant 2 : i32
    %506 = vector.broadcast %c2_i32_237 : i32 to vector<4x8x1xi32>
    %507 = arith.muli %506, %331 : vector<4x8x1xi32>
    %c1_i32_238 = arith.constant 1 : i32
    %508 = vector.broadcast %c1_i32_238 : i32 to vector<4x8x1xi32>
    %509 = arith.addi %507, %508 : vector<4x8x1xi32>
    %c2_i32_239 = arith.constant 2 : i32
    %510 = vector.broadcast %c2_i32_239 : i32 to vector<4x8x1xi32>
    %511 = arith.muli %510, %332 : vector<4x8x1xi32>
    %c2_i32_240 = arith.constant 2 : i32
    %512 = vector.broadcast %c2_i32_240 : i32 to vector<4x8x1xi32>
    %513 = arith.addi %511, %512 : vector<4x8x1xi32>
    %c1_i32_241 = arith.constant 1 : i32
    %514 = vector.broadcast %c1_i32_241 : i32 to vector<4x8x1xi32>
    %515 = arith.cmpi sge, %509, %514 : vector<4x8x1xi32>
    %c16_i32_242 = arith.constant 16 : i32
    %516 = vector.broadcast %c16_i32_242 : i32 to vector<4x8x1xi32>
    %517 = arith.cmpi sle, %509, %516 : vector<4x8x1xi32>
    %518 = arith.andi %515, %517 : vector<4x8x1xi1>
    %c1_i32_243 = arith.constant 1 : i32
    %519 = vector.broadcast %c1_i32_243 : i32 to vector<4x8x1xi32>
    %520 = arith.cmpi sge, %513, %519 : vector<4x8x1xi32>
    %521 = arith.andi %518, %520 : vector<4x8x1xi1>
    %c16_i32_244 = arith.constant 16 : i32
    %522 = vector.broadcast %c16_i32_244 : i32 to vector<4x8x1xi32>
    %523 = arith.cmpi sle, %513, %522 : vector<4x8x1xi32>
    %524 = arith.andi %521, %523 : vector<4x8x1xi1>
    %cst_245 = arith.constant 0.000000e+00 : f32
    %525 = vector.shape_cast %524 : vector<4x8x1xi1> to vector<4x8x1xi1>
    %526 = vector.broadcast %525 : vector<4x8x1xi1> to vector<4x8x4xi1>
    %527 = vector.broadcast %cst_245 : f32 to vector<4x8x4xf32>
    %528 = arith.select %526, %505, %527 : vector<4x8x4xi1>, vector<4x8x4xf32>
    %529 = vector.shape_cast %528 : vector<4x8x4xf32> to vector<32x4xf32>
    %c0_246 = arith.constant 0 : index
    %c20_247 = arith.constant 20 : index
    %530 = vector.load %arg10[%c0_246, %c20_247] : memref<32x36xf32, #tpu.memory_space<vmem>>, vector<32x4xf32>
    tpu.vector_store %arg10[%c0_246, %c20_247], %529 {strides = array<i32>} : memref<32x36xf32, #tpu.memory_space<vmem>>, vector<32x4xf32>,
    %c0_248 = arith.constant 0 : index
    %c5 = arith.constant 5 : index
    %c0_249 = arith.constant 0 : index
    %c0_250 = arith.constant 0 : index
    %531 = vector.load %arg1[%c0_248, %c5, %c0_249, %c0_250] : memref<1x36x9x4xf32, #tpu.memory_space<vmem>>, vector<1x4x8x4xf32>
    %532 = vector.shape_cast %531 : vector<1x4x8x4xf32> to vector<4x8x4xf32>
    %533 = vector.broadcast %3 : vector<1x1x4xf32> to vector<4x8x4xf32>
    %534 = arith.mulf %532, %533 : vector<4x8x4xf32>
    %535 = vector.broadcast %5 : vector<1x1x4xf32> to vector<4x8x4xf32>
    %536 = arith.addf %534, %535 : vector<4x8x4xf32>
    %cst_251 = arith.constant 0.000000e+00 : f32
    %537 = vector.broadcast %cst_251 : f32 to vector<4x8x4xf32>
    %538 = arith.maximumf %536, %537 : vector<4x8x4xf32>
    %c2_i32_252 = arith.constant 2 : i32
    %539 = vector.broadcast %c2_i32_252 : i32 to vector<4x8x1xi32>
    %540 = arith.muli %539, %331 : vector<4x8x1xi32>
    %c2_i32_253 = arith.constant 2 : i32
    %541 = vector.broadcast %c2_i32_253 : i32 to vector<4x8x1xi32>
    %542 = arith.addi %540, %541 : vector<4x8x1xi32>
    %c2_i32_254 = arith.constant 2 : i32
    %543 = vector.broadcast %c2_i32_254 : i32 to vector<4x8x1xi32>
    %544 = arith.muli %543, %332 : vector<4x8x1xi32>
    %c0_i32_255 = arith.constant 0 : i32
    %545 = vector.broadcast %c0_i32_255 : i32 to vector<4x8x1xi32>
    %546 = arith.addi %544, %545 : vector<4x8x1xi32>
    %c1_i32_256 = arith.constant 1 : i32
    %547 = vector.broadcast %c1_i32_256 : i32 to vector<4x8x1xi32>
    %548 = arith.cmpi sge, %542, %547 : vector<4x8x1xi32>
    %c16_i32_257 = arith.constant 16 : i32
    %549 = vector.broadcast %c16_i32_257 : i32 to vector<4x8x1xi32>
    %550 = arith.cmpi sle, %542, %549 : vector<4x8x1xi32>
    %551 = arith.andi %548, %550 : vector<4x8x1xi1>
    %c1_i32_258 = arith.constant 1 : i32
    %552 = vector.broadcast %c1_i32_258 : i32 to vector<4x8x1xi32>
    %553 = arith.cmpi sge, %546, %552 : vector<4x8x1xi32>
    %554 = arith.andi %551, %553 : vector<4x8x1xi1>
    %c16_i32_259 = arith.constant 16 : i32
    %555 = vector.broadcast %c16_i32_259 : i32 to vector<4x8x1xi32>
    %556 = arith.cmpi sle, %546, %555 : vector<4x8x1xi32>
    %557 = arith.andi %554, %556 : vector<4x8x1xi1>
    %cst_260 = arith.constant 0.000000e+00 : f32
    %558 = vector.shape_cast %557 : vector<4x8x1xi1> to vector<4x8x1xi1>
    %559 = vector.broadcast %558 : vector<4x8x1xi1> to vector<4x8x4xi1>
    %560 = vector.broadcast %cst_260 : f32 to vector<4x8x4xf32>
    %561 = arith.select %559, %538, %560 : vector<4x8x4xi1>, vector<4x8x4xf32>
    %562 = vector.shape_cast %561 : vector<4x8x4xf32> to vector<32x4xf32>
    %c0_261 = arith.constant 0 : index
    %c24_262 = arith.constant 24 : index
    %563 = vector.load %arg10[%c0_261, %c24_262] : memref<32x36xf32, #tpu.memory_space<vmem>>, vector<32x4xf32>
    tpu.vector_store %arg10[%c0_261, %c24_262], %562 {strides = array<i32>} : memref<32x36xf32, #tpu.memory_space<vmem>>, vector<32x4xf32>,
    %c0_263 = arith.constant 0 : index
    %c14 = arith.constant 14 : index
    %c0_264 = arith.constant 0 : index
    %c0_265 = arith.constant 0 : index
    %564 = vector.load %arg1[%c0_263, %c14, %c0_264, %c0_265] : memref<1x36x9x4xf32, #tpu.memory_space<vmem>>, vector<1x4x8x4xf32>
    %565 = vector.shape_cast %564 : vector<1x4x8x4xf32> to vector<4x8x4xf32>
    %566 = vector.broadcast %3 : vector<1x1x4xf32> to vector<4x8x4xf32>
    %567 = arith.mulf %565, %566 : vector<4x8x4xf32>
    %568 = vector.broadcast %5 : vector<1x1x4xf32> to vector<4x8x4xf32>
    %569 = arith.addf %567, %568 : vector<4x8x4xf32>
    %cst_266 = arith.constant 0.000000e+00 : f32
    %570 = vector.broadcast %cst_266 : f32 to vector<4x8x4xf32>
    %571 = arith.maximumf %569, %570 : vector<4x8x4xf32>
    %c2_i32_267 = arith.constant 2 : i32
    %572 = vector.broadcast %c2_i32_267 : i32 to vector<4x8x1xi32>
    %573 = arith.muli %572, %331 : vector<4x8x1xi32>
    %c2_i32_268 = arith.constant 2 : i32
    %574 = vector.broadcast %c2_i32_268 : i32 to vector<4x8x1xi32>
    %575 = arith.addi %573, %574 : vector<4x8x1xi32>
    %c2_i32_269 = arith.constant 2 : i32
    %576 = vector.broadcast %c2_i32_269 : i32 to vector<4x8x1xi32>
    %577 = arith.muli %576, %332 : vector<4x8x1xi32>
    %c1_i32_270 = arith.constant 1 : i32
    %578 = vector.broadcast %c1_i32_270 : i32 to vector<4x8x1xi32>
    %579 = arith.addi %577, %578 : vector<4x8x1xi32>
    %c1_i32_271 = arith.constant 1 : i32
    %580 = vector.broadcast %c1_i32_271 : i32 to vector<4x8x1xi32>
    %581 = arith.cmpi sge, %575, %580 : vector<4x8x1xi32>
    %c16_i32_272 = arith.constant 16 : i32
    %582 = vector.broadcast %c16_i32_272 : i32 to vector<4x8x1xi32>
    %583 = arith.cmpi sle, %575, %582 : vector<4x8x1xi32>
    %584 = arith.andi %581, %583 : vector<4x8x1xi1>
    %c1_i32_273 = arith.constant 1 : i32
    %585 = vector.broadcast %c1_i32_273 : i32 to vector<4x8x1xi32>
    %586 = arith.cmpi sge, %579, %585 : vector<4x8x1xi32>
    %587 = arith.andi %584, %586 : vector<4x8x1xi1>
    %c16_i32_274 = arith.constant 16 : i32
    %588 = vector.broadcast %c16_i32_274 : i32 to vector<4x8x1xi32>
    %589 = arith.cmpi sle, %579, %588 : vector<4x8x1xi32>
    %590 = arith.andi %587, %589 : vector<4x8x1xi1>
    %cst_275 = arith.constant 0.000000e+00 : f32
    %591 = vector.shape_cast %590 : vector<4x8x1xi1> to vector<4x8x1xi1>
    %592 = vector.broadcast %591 : vector<4x8x1xi1> to vector<4x8x4xi1>
    %593 = vector.broadcast %cst_275 : f32 to vector<4x8x4xf32>
    %594 = arith.select %592, %571, %593 : vector<4x8x4xi1>, vector<4x8x4xf32>
    %595 = vector.shape_cast %594 : vector<4x8x4xf32> to vector<32x4xf32>
    %c0_276 = arith.constant 0 : index
    %c28_277 = arith.constant 28 : index
    %596 = vector.load %arg10[%c0_276, %c28_277] : memref<32x36xf32, #tpu.memory_space<vmem>>, vector<32x4xf32>
    tpu.vector_store %arg10[%c0_276, %c28_277], %595 {strides = array<i32>} : memref<32x36xf32, #tpu.memory_space<vmem>>, vector<32x4xf32>,
    %c0_278 = arith.constant 0 : index
    %c5_279 = arith.constant 5 : index
    %c1_280 = arith.constant 1 : index
    %c0_281 = arith.constant 0 : index
    %597 = vector.load %arg1[%c0_278, %c5_279, %c1_280, %c0_281] : memref<1x36x9x4xf32, #tpu.memory_space<vmem>>, vector<1x4x8x4xf32>
    %598 = vector.shape_cast %597 : vector<1x4x8x4xf32> to vector<4x8x4xf32>
    %599 = vector.broadcast %3 : vector<1x1x4xf32> to vector<4x8x4xf32>
    %600 = arith.mulf %598, %599 : vector<4x8x4xf32>
    %601 = vector.broadcast %5 : vector<1x1x4xf32> to vector<4x8x4xf32>
    %602 = arith.addf %600, %601 : vector<4x8x4xf32>
    %cst_282 = arith.constant 0.000000e+00 : f32
    %603 = vector.broadcast %cst_282 : f32 to vector<4x8x4xf32>
    %604 = arith.maximumf %602, %603 : vector<4x8x4xf32>
    %c2_i32_283 = arith.constant 2 : i32
    %605 = vector.broadcast %c2_i32_283 : i32 to vector<4x8x1xi32>
    %606 = arith.muli %605, %331 : vector<4x8x1xi32>
    %c2_i32_284 = arith.constant 2 : i32
    %607 = vector.broadcast %c2_i32_284 : i32 to vector<4x8x1xi32>
    %608 = arith.addi %606, %607 : vector<4x8x1xi32>
    %c2_i32_285 = arith.constant 2 : i32
    %609 = vector.broadcast %c2_i32_285 : i32 to vector<4x8x1xi32>
    %610 = arith.muli %609, %332 : vector<4x8x1xi32>
    %c2_i32_286 = arith.constant 2 : i32
    %611 = vector.broadcast %c2_i32_286 : i32 to vector<4x8x1xi32>
    %612 = arith.addi %610, %611 : vector<4x8x1xi32>
    %c1_i32_287 = arith.constant 1 : i32
    %613 = vector.broadcast %c1_i32_287 : i32 to vector<4x8x1xi32>
    %614 = arith.cmpi sge, %608, %613 : vector<4x8x1xi32>
    %c16_i32_288 = arith.constant 16 : i32
    %615 = vector.broadcast %c16_i32_288 : i32 to vector<4x8x1xi32>
    %616 = arith.cmpi sle, %608, %615 : vector<4x8x1xi32>
    %617 = arith.andi %614, %616 : vector<4x8x1xi1>
    %c1_i32_289 = arith.constant 1 : i32
    %618 = vector.broadcast %c1_i32_289 : i32 to vector<4x8x1xi32>
    %619 = arith.cmpi sge, %612, %618 : vector<4x8x1xi32>
    %620 = arith.andi %617, %619 : vector<4x8x1xi1>
    %c16_i32_290 = arith.constant 16 : i32
    %621 = vector.broadcast %c16_i32_290 : i32 to vector<4x8x1xi32>
    %622 = arith.cmpi sle, %612, %621 : vector<4x8x1xi32>
    %623 = arith.andi %620, %622 : vector<4x8x1xi1>
    %cst_291 = arith.constant 0.000000e+00 : f32
    %624 = vector.shape_cast %623 : vector<4x8x1xi1> to vector<4x8x1xi1>
    %625 = vector.broadcast %624 : vector<4x8x1xi1> to vector<4x8x4xi1>
    %626 = vector.broadcast %cst_291 : f32 to vector<4x8x4xf32>
    %627 = arith.select %625, %604, %626 : vector<4x8x4xi1>, vector<4x8x4xf32>
    %628 = vector.shape_cast %627 : vector<4x8x4xf32> to vector<32x4xf32>
    %c0_292 = arith.constant 0 : index
    %c32_293 = arith.constant 32 : index
    %629 = vector.load %arg10[%c0_292, %c32_293] : memref<32x36xf32, #tpu.memory_space<vmem>>, vector<32x4xf32>
    tpu.vector_store %arg10[%c0_292, %c32_293], %628 {strides = array<i32>} : memref<32x36xf32, #tpu.memory_space<vmem>>, vector<32x4xf32>,
    %c0_294 = arith.constant 0 : index
    %c0_295 = arith.constant 0 : index
    %630 = vector.load %arg10[%c0_294, %c0_295] : memref<32x36xf32, #tpu.memory_space<vmem>>, vector<32x36xf32>
    %631 = arith.truncf %630 : vector<32x36xf32> to vector<32x36xbf16>
    %c0_296 = arith.constant 0 : index
    %c0_297 = arith.constant 0 : index
    %632 = vector.load %arg6[%c0_296, %c0_297] : memref<36x8xbf16, #tpu.memory_space<vmem>>, vector<36x8xbf16>
    %cst_298 = arith.constant dense<0.000000e+00> : vector<32x8xf32>
    %633 = tpu.matmul %631, %632, %cst_298 {dimension_numbers = #tpu.dot_dimension_numbers<[1], [0], [0], [1], [0, 0, 1, 1], [], []>} : vector<32x36xbf16>, vector<36x8xbf16>, vector<32x8xf32> -> vector<32x8xf32>
    %c0_299 = arith.constant 0 : index
    %c0_300 = arith.constant 0 : index
    %634 = vector.load %arg4[%c0_299, %c0_300] : memref<1x8xf32, #tpu.memory_space<vmem>>, vector<1x8xf32>
    %635 = vector.broadcast %634 : vector<1x8xf32> to vector<32x8xf32>
    %636 = arith.mulf %633, %635 : vector<32x8xf32>
    %c0_301 = arith.constant 0 : index
    %c0_302 = arith.constant 0 : index
    %637 = vector.load %arg5[%c0_301, %c0_302] : memref<1x8xf32, #tpu.memory_space<vmem>>, vector<1x8xf32>
    %638 = vector.broadcast %637 : vector<1x8xf32> to vector<32x8xf32>
    %639 = arith.addf %636, %638 : vector<32x8xf32>
    %cst_303 = arith.constant 0.000000e+00 : f32
    %640 = vector.broadcast %cst_303 : f32 to vector<32x8xf32>
    %641 = arith.maximumf %639, %640 : vector<32x8xf32>
    %642 = vector.shape_cast %641 : vector<32x8xf32> to vector<4x8x8xf32>
    %c0_304 = arith.constant 0 : index
    %c5_305 = arith.constant 5 : index
    %c1_306 = arith.constant 1 : index
    %c0_307 = arith.constant 0 : index
    %643 = vector.load %arg8[%c0_304, %c5_305, %c1_306, %c0_307] : memref<1x10x10x8xf32, #tpu.memory_space<vmem>>, vector<1x4x8x8xf32>
    %644 = vector.shape_cast %643 : vector<1x4x8x8xf32> to vector<4x8x8xf32>
    %645 = vector.shape_cast %642 : vector<4x8x8xf32> to vector<1x4x8x8xf32>
    tpu.vector_store %arg8[%c0_304, %c5_305, %c1_306, %c0_307], %645 {strides = array<i32>} : memref<1x10x10x8xf32, #tpu.memory_space<vmem>>, vector<1x4x8x8xf32>,
    %646 = arith.truncf %496 : vector<32x4xf32> to vector<32x4xbf16>
    %c0_308 = arith.constant 0 : index
    %c0_309 = arith.constant 0 : index
    %647 = vector.load %arg7[%c0_308, %c0_309] : memref<4x8xbf16, #tpu.memory_space<vmem>>, vector<4x8xbf16>
    %cst_310 = arith.constant dense<0.000000e+00> : vector<32x8xf32>
    %648 = tpu.matmul %646, %647, %cst_310 {dimension_numbers = #tpu.dot_dimension_numbers<[1], [0], [0], [1], [0, 0, 1, 1], [], []>} : vector<32x4xbf16>, vector<4x8xbf16>, vector<32x8xf32> -> vector<32x8xf32>
    %c0_311 = arith.constant 0 : index
    %c32_312 = arith.constant 32 : index
    %c0_313 = arith.constant 0 : index
    %649 = vector.load %arg9[%c0_311, %c32_312, %c0_313] : memref<1x64x8xf32, #tpu.memory_space<vmem>>, vector<1x32x8xf32>
    %650 = vector.shape_cast %649 : vector<1x32x8xf32> to vector<32x8xf32>
    %651 = vector.shape_cast %648 : vector<32x8xf32> to vector<1x32x8xf32>
    tpu.vector_store %arg9[%c0_311, %c32_312, %c0_313], %651 {strides = array<i32>} : memref<1x64x8xf32, #tpu.memory_space<vmem>>, vector<1x32x8xf32>,
    return
  }
  func.func @transform_0(%arg0: i32) -> (i32, i32, i32, i32) {
    %c0_i32 = arith.constant 0 : i32
    %c0_i32_0 = arith.constant 0 : i32
    %c0_i32_1 = arith.constant 0 : i32
    %c0_i32_2 = arith.constant 0 : i32
    return %arg0, %c0_i32, %c0_i32_0, %c0_i32_1 : i32, i32, i32, i32
  }
  func.func @transform_1(%arg0: i32) -> (i32, i32) {
    %c0_i32 = arith.constant 0 : i32
    %c0_i32_0 = arith.constant 0 : i32
    %c0_i32_1 = arith.constant 0 : i32
    return %c0_i32, %c0_i32_0 : i32, i32
  }
  func.func @transform_2(%arg0: i32) -> (i32, i32) {
    %c0_i32 = arith.constant 0 : i32
    %c0_i32_0 = arith.constant 0 : i32
    %c0_i32_1 = arith.constant 0 : i32
    return %c0_i32, %c0_i32_0 : i32, i32
  }
  func.func @transform_3(%arg0: i32) -> (i32, i32) {
    %c0_i32 = arith.constant 0 : i32
    %c0_i32_0 = arith.constant 0 : i32
    %c0_i32_1 = arith.constant 0 : i32
    return %c0_i32, %c0_i32_0 : i32, i32
  }
  func.func @transform_4(%arg0: i32) -> (i32, i32) {
    %c0_i32 = arith.constant 0 : i32
    %c0_i32_0 = arith.constant 0 : i32
    %c0_i32_1 = arith.constant 0 : i32
    return %c0_i32, %c0_i32_0 : i32, i32
  }
  func.func @transform_5(%arg0: i32) -> (i32, i32) {
    %c0_i32 = arith.constant 0 : i32
    %c0_i32_0 = arith.constant 0 : i32
    %c0_i32_1 = arith.constant 0 : i32
    return %c0_i32, %c0_i32_0 : i32, i32
  }
  func.func @transform_6(%arg0: i32) -> (i32, i32) {
    %c0_i32 = arith.constant 0 : i32
    %c0_i32_0 = arith.constant 0 : i32
    %c0_i32_1 = arith.constant 0 : i32
    return %c0_i32, %c0_i32_0 : i32, i32
  }
  func.func @transform_7(%arg0: i32) -> (i32, i32, i32, i32) {
    %c0_i32 = arith.constant 0 : i32
    %c0_i32_0 = arith.constant 0 : i32
    %c0_i32_1 = arith.constant 0 : i32
    %c0_i32_2 = arith.constant 0 : i32
    return %arg0, %c0_i32, %c0_i32_0, %c0_i32_1 : i32, i32, i32, i32
  }
  func.func @transform_8(%arg0: i32) -> (i32, i32, i32) {
    %c0_i32 = arith.constant 0 : i32
    %c0_i32_0 = arith.constant 0 : i32
    %c0_i32_1 = arith.constant 0 : i32
    return %arg0, %c0_i32, %c0_i32_0 : i32, i32, i32
  }
}

module attributes {stable_mosaic.version = 11 : i64} {
  func.func @kernel(%arg0: i32, %arg1: memref<1x10x10x8xf32, #tpu.memory_space<vmem>>, %arg2: memref<1x8xf32, #tpu.memory_space<vmem>>, %arg3: memref<1x8xf32, #tpu.memory_space<vmem>>, %arg4: memref<1x8xf32, #tpu.memory_space<vmem>>, %arg5: memref<1x8xf32, #tpu.memory_space<vmem>>, %arg6: memref<72x8xbf16, #tpu.memory_space<vmem>>, %arg7: memref<1x10x10x8xf32, #tpu.memory_space<vmem>>, %arg8: memref<32x72xf32, #tpu.memory_space<vmem>>) attributes {dimension_semantics = [#tpu.dimension_semantics<parallel>], iteration_bounds = array<i64: 2>, scalar_prefetch = 0 : i64, scratch_operands = 1 : i64, tpu.core_type = #tpu.core_type<tc>, window_params = [{transform_indices = @transform_0, window_bounds = array<i64: 1, 10, 10, 8>}, {pipeline_mode = #tpu.pipeline_mode<synchronous>, transform_indices = @transform_1, window_bounds = array<i64: 1, 8>}, {pipeline_mode = #tpu.pipeline_mode<synchronous>, transform_indices = @transform_2, window_bounds = array<i64: 1, 8>}, {pipeline_mode = #tpu.pipeline_mode<synchronous>, transform_indices = @transform_3, window_bounds = array<i64: 1, 8>}, {pipeline_mode = #tpu.pipeline_mode<synchronous>, transform_indices = @transform_4, window_bounds = array<i64: 1, 8>}, {pipeline_mode = #tpu.pipeline_mode<synchronous>, transform_indices = @transform_5, window_bounds = array<i64: 72, 8>}, {transform_indices = @transform_6, window_bounds = array<i64: 1, 10, 10, 8>}]} {
    %cst = arith.constant 0.000000e+00 : f32
    %0 = vector.broadcast %cst : f32 to vector<1x10x10x8xf32>
    %c0 = arith.constant 0 : index
    %c0_0 = arith.constant 0 : index
    %c0_1 = arith.constant 0 : index
    %c0_2 = arith.constant 0 : index
    %1 = vector.load %arg7[%c0, %c0_0, %c0_1, %c0_2] : memref<1x10x10x8xf32, #tpu.memory_space<vmem>>, vector<1x10x10x8xf32>
    tpu.vector_store %arg7[%c0, %c0_0, %c0_1, %c0_2], %0 {strides = array<i32>} : memref<1x10x10x8xf32, #tpu.memory_space<vmem>>, vector<1x10x10x8xf32>,
    %c0_3 = arith.constant 0 : index
    %c0_4 = arith.constant 0 : index
    %2 = vector.load %arg2[%c0_3, %c0_4] : memref<1x8xf32, #tpu.memory_space<vmem>>, vector<1x8xf32>
    %3 = vector.shape_cast %2 : vector<1x8xf32> to vector<1x1x8xf32>
    %c0_5 = arith.constant 0 : index
    %c0_6 = arith.constant 0 : index
    %4 = vector.load %arg3[%c0_5, %c0_6] : memref<1x8xf32, #tpu.memory_space<vmem>>, vector<1x8xf32>
    %5 = vector.shape_cast %4 : vector<1x8xf32> to vector<1x1x8xf32>
    %6 = tpu.iota {dimensions = array<i32: 0>} : vector<4x8x1xi32>
    %c0_i32 = arith.constant 0 : i32
    %7 = vector.broadcast %c0_i32 : i32 to vector<4x8x1xi32>
    %8 = arith.addi %6, %7 : vector<4x8x1xi32>
    %9 = tpu.iota {dimensions = array<i32: 1>} : vector<4x8x1xi32>
    %c0_7 = arith.constant 0 : index
    %c0_8 = arith.constant 0 : index
    %c0_9 = arith.constant 0 : index
    %c0_10 = arith.constant 0 : index
    %10 = vector.load %arg1[%c0_7, %c0_8, %c0_9, %c0_10] : memref<1x10x10x8xf32, #tpu.memory_space<vmem>>, vector<1x4x8x8xf32>
    %11 = vector.shape_cast %10 : vector<1x4x8x8xf32> to vector<4x8x8xf32>
    %12 = vector.broadcast %3 : vector<1x1x8xf32> to vector<4x8x8xf32>
    %13 = arith.mulf %11, %12 : vector<4x8x8xf32>
    %14 = vector.broadcast %5 : vector<1x1x8xf32> to vector<4x8x8xf32>
    %15 = arith.addf %13, %14 : vector<4x8x8xf32>
    %cst_11 = arith.constant 0.000000e+00 : f32
    %16 = vector.broadcast %cst_11 : f32 to vector<4x8x8xf32>
    %17 = arith.maximumf %15, %16 : vector<4x8x8xf32>
    %c1_i32 = arith.constant 1 : i32
    %18 = vector.broadcast %c1_i32 : i32 to vector<4x8x1xi32>
    %19 = arith.muli %18, %8 : vector<4x8x1xi32>
    %c0_i32_12 = arith.constant 0 : i32
    %20 = vector.broadcast %c0_i32_12 : i32 to vector<4x8x1xi32>
    %21 = arith.addi %19, %20 : vector<4x8x1xi32>
    %c1_i32_13 = arith.constant 1 : i32
    %22 = vector.broadcast %c1_i32_13 : i32 to vector<4x8x1xi32>
    %23 = arith.muli %22, %9 : vector<4x8x1xi32>
    %c0_i32_14 = arith.constant 0 : i32
    %24 = vector.broadcast %c0_i32_14 : i32 to vector<4x8x1xi32>
    %25 = arith.addi %23, %24 : vector<4x8x1xi32>
    %c1_i32_15 = arith.constant 1 : i32
    %26 = vector.broadcast %c1_i32_15 : i32 to vector<4x8x1xi32>
    %27 = arith.cmpi sge, %21, %26 : vector<4x8x1xi32>
    %c8_i32 = arith.constant 8 : i32
    %28 = vector.broadcast %c8_i32 : i32 to vector<4x8x1xi32>
    %29 = arith.cmpi sle, %21, %28 : vector<4x8x1xi32>
    %30 = arith.andi %27, %29 : vector<4x8x1xi1>
    %c1_i32_16 = arith.constant 1 : i32
    %31 = vector.broadcast %c1_i32_16 : i32 to vector<4x8x1xi32>
    %32 = arith.cmpi sge, %25, %31 : vector<4x8x1xi32>
    %33 = arith.andi %30, %32 : vector<4x8x1xi1>
    %c8_i32_17 = arith.constant 8 : i32
    %34 = vector.broadcast %c8_i32_17 : i32 to vector<4x8x1xi32>
    %35 = arith.cmpi sle, %25, %34 : vector<4x8x1xi32>
    %36 = arith.andi %33, %35 : vector<4x8x1xi1>
    %cst_18 = arith.constant 0.000000e+00 : f32
    %37 = vector.shape_cast %36 : vector<4x8x1xi1> to vector<4x8x1xi1>
    %38 = vector.broadcast %37 : vector<4x8x1xi1> to vector<4x8x8xi1>
    %39 = vector.broadcast %cst_18 : f32 to vector<4x8x8xf32>
    %40 = arith.select %38, %17, %39 : vector<4x8x8xi1>, vector<4x8x8xf32>
    %41 = vector.shape_cast %40 : vector<4x8x8xf32> to vector<32x8xf32>
    %c0_19 = arith.constant 0 : index
    %c0_20 = arith.constant 0 : index
    %42 = vector.load %arg8[%c0_19, %c0_20] : memref<32x72xf32, #tpu.memory_space<vmem>>, vector<32x8xf32>
    tpu.vector_store %arg8[%c0_19, %c0_20], %41 {strides = array<i32>} : memref<32x72xf32, #tpu.memory_space<vmem>>, vector<32x8xf32>,
    %c0_21 = arith.constant 0 : index
    %c0_22 = arith.constant 0 : index
    %c1 = arith.constant 1 : index
    %c0_23 = arith.constant 0 : index
    %43 = vector.load %arg1[%c0_21, %c0_22, %c1, %c0_23] : memref<1x10x10x8xf32, #tpu.memory_space<vmem>>, vector<1x4x8x8xf32>
    %44 = vector.shape_cast %43 : vector<1x4x8x8xf32> to vector<4x8x8xf32>
    %45 = vector.broadcast %3 : vector<1x1x8xf32> to vector<4x8x8xf32>
    %46 = arith.mulf %44, %45 : vector<4x8x8xf32>
    %47 = vector.broadcast %5 : vector<1x1x8xf32> to vector<4x8x8xf32>
    %48 = arith.addf %46, %47 : vector<4x8x8xf32>
    %cst_24 = arith.constant 0.000000e+00 : f32
    %49 = vector.broadcast %cst_24 : f32 to vector<4x8x8xf32>
    %50 = arith.maximumf %48, %49 : vector<4x8x8xf32>
    %c1_i32_25 = arith.constant 1 : i32
    %51 = vector.broadcast %c1_i32_25 : i32 to vector<4x8x1xi32>
    %52 = arith.muli %51, %8 : vector<4x8x1xi32>
    %c0_i32_26 = arith.constant 0 : i32
    %53 = vector.broadcast %c0_i32_26 : i32 to vector<4x8x1xi32>
    %54 = arith.addi %52, %53 : vector<4x8x1xi32>
    %c1_i32_27 = arith.constant 1 : i32
    %55 = vector.broadcast %c1_i32_27 : i32 to vector<4x8x1xi32>
    %56 = arith.muli %55, %9 : vector<4x8x1xi32>
    %c1_i32_28 = arith.constant 1 : i32
    %57 = vector.broadcast %c1_i32_28 : i32 to vector<4x8x1xi32>
    %58 = arith.addi %56, %57 : vector<4x8x1xi32>
    %c1_i32_29 = arith.constant 1 : i32
    %59 = vector.broadcast %c1_i32_29 : i32 to vector<4x8x1xi32>
    %60 = arith.cmpi sge, %54, %59 : vector<4x8x1xi32>
    %c8_i32_30 = arith.constant 8 : i32
    %61 = vector.broadcast %c8_i32_30 : i32 to vector<4x8x1xi32>
    %62 = arith.cmpi sle, %54, %61 : vector<4x8x1xi32>
    %63 = arith.andi %60, %62 : vector<4x8x1xi1>
    %c1_i32_31 = arith.constant 1 : i32
    %64 = vector.broadcast %c1_i32_31 : i32 to vector<4x8x1xi32>
    %65 = arith.cmpi sge, %58, %64 : vector<4x8x1xi32>
    %66 = arith.andi %63, %65 : vector<4x8x1xi1>
    %c8_i32_32 = arith.constant 8 : i32
    %67 = vector.broadcast %c8_i32_32 : i32 to vector<4x8x1xi32>
    %68 = arith.cmpi sle, %58, %67 : vector<4x8x1xi32>
    %69 = arith.andi %66, %68 : vector<4x8x1xi1>
    %cst_33 = arith.constant 0.000000e+00 : f32
    %70 = vector.shape_cast %69 : vector<4x8x1xi1> to vector<4x8x1xi1>
    %71 = vector.broadcast %70 : vector<4x8x1xi1> to vector<4x8x8xi1>
    %72 = vector.broadcast %cst_33 : f32 to vector<4x8x8xf32>
    %73 = arith.select %71, %50, %72 : vector<4x8x8xi1>, vector<4x8x8xf32>
    %74 = vector.shape_cast %73 : vector<4x8x8xf32> to vector<32x8xf32>
    %c0_34 = arith.constant 0 : index
    %c8 = arith.constant 8 : index
    %75 = vector.load %arg8[%c0_34, %c8] : memref<32x72xf32, #tpu.memory_space<vmem>>, vector<32x8xf32>
    tpu.vector_store %arg8[%c0_34, %c8], %74 {strides = array<i32>} : memref<32x72xf32, #tpu.memory_space<vmem>>, vector<32x8xf32>,
    %c0_35 = arith.constant 0 : index
    %c0_36 = arith.constant 0 : index
    %c2 = arith.constant 2 : index
    %c0_37 = arith.constant 0 : index
    %76 = vector.load %arg1[%c0_35, %c0_36, %c2, %c0_37] : memref<1x10x10x8xf32, #tpu.memory_space<vmem>>, vector<1x4x8x8xf32>
    %77 = vector.shape_cast %76 : vector<1x4x8x8xf32> to vector<4x8x8xf32>
    %78 = vector.broadcast %3 : vector<1x1x8xf32> to vector<4x8x8xf32>
    %79 = arith.mulf %77, %78 : vector<4x8x8xf32>
    %80 = vector.broadcast %5 : vector<1x1x8xf32> to vector<4x8x8xf32>
    %81 = arith.addf %79, %80 : vector<4x8x8xf32>
    %cst_38 = arith.constant 0.000000e+00 : f32
    %82 = vector.broadcast %cst_38 : f32 to vector<4x8x8xf32>
    %83 = arith.maximumf %81, %82 : vector<4x8x8xf32>
    %c1_i32_39 = arith.constant 1 : i32
    %84 = vector.broadcast %c1_i32_39 : i32 to vector<4x8x1xi32>
    %85 = arith.muli %84, %8 : vector<4x8x1xi32>
    %c0_i32_40 = arith.constant 0 : i32
    %86 = vector.broadcast %c0_i32_40 : i32 to vector<4x8x1xi32>
    %87 = arith.addi %85, %86 : vector<4x8x1xi32>
    %c1_i32_41 = arith.constant 1 : i32
    %88 = vector.broadcast %c1_i32_41 : i32 to vector<4x8x1xi32>
    %89 = arith.muli %88, %9 : vector<4x8x1xi32>
    %c2_i32 = arith.constant 2 : i32
    %90 = vector.broadcast %c2_i32 : i32 to vector<4x8x1xi32>
    %91 = arith.addi %89, %90 : vector<4x8x1xi32>
    %c1_i32_42 = arith.constant 1 : i32
    %92 = vector.broadcast %c1_i32_42 : i32 to vector<4x8x1xi32>
    %93 = arith.cmpi sge, %87, %92 : vector<4x8x1xi32>
    %c8_i32_43 = arith.constant 8 : i32
    %94 = vector.broadcast %c8_i32_43 : i32 to vector<4x8x1xi32>
    %95 = arith.cmpi sle, %87, %94 : vector<4x8x1xi32>
    %96 = arith.andi %93, %95 : vector<4x8x1xi1>
    %c1_i32_44 = arith.constant 1 : i32
    %97 = vector.broadcast %c1_i32_44 : i32 to vector<4x8x1xi32>
    %98 = arith.cmpi sge, %91, %97 : vector<4x8x1xi32>
    %99 = arith.andi %96, %98 : vector<4x8x1xi1>
    %c8_i32_45 = arith.constant 8 : i32
    %100 = vector.broadcast %c8_i32_45 : i32 to vector<4x8x1xi32>
    %101 = arith.cmpi sle, %91, %100 : vector<4x8x1xi32>
    %102 = arith.andi %99, %101 : vector<4x8x1xi1>
    %cst_46 = arith.constant 0.000000e+00 : f32
    %103 = vector.shape_cast %102 : vector<4x8x1xi1> to vector<4x8x1xi1>
    %104 = vector.broadcast %103 : vector<4x8x1xi1> to vector<4x8x8xi1>
    %105 = vector.broadcast %cst_46 : f32 to vector<4x8x8xf32>
    %106 = arith.select %104, %83, %105 : vector<4x8x8xi1>, vector<4x8x8xf32>
    %107 = vector.shape_cast %106 : vector<4x8x8xf32> to vector<32x8xf32>
    %c0_47 = arith.constant 0 : index
    %c16 = arith.constant 16 : index
    %108 = vector.load %arg8[%c0_47, %c16] : memref<32x72xf32, #tpu.memory_space<vmem>>, vector<32x8xf32>
    tpu.vector_store %arg8[%c0_47, %c16], %107 {strides = array<i32>} : memref<32x72xf32, #tpu.memory_space<vmem>>, vector<32x8xf32>,
    %c0_48 = arith.constant 0 : index
    %c1_49 = arith.constant 1 : index
    %c0_50 = arith.constant 0 : index
    %c0_51 = arith.constant 0 : index
    %109 = vector.load %arg1[%c0_48, %c1_49, %c0_50, %c0_51] : memref<1x10x10x8xf32, #tpu.memory_space<vmem>>, vector<1x4x8x8xf32>
    %110 = vector.shape_cast %109 : vector<1x4x8x8xf32> to vector<4x8x8xf32>
    %111 = vector.broadcast %3 : vector<1x1x8xf32> to vector<4x8x8xf32>
    %112 = arith.mulf %110, %111 : vector<4x8x8xf32>
    %113 = vector.broadcast %5 : vector<1x1x8xf32> to vector<4x8x8xf32>
    %114 = arith.addf %112, %113 : vector<4x8x8xf32>
    %cst_52 = arith.constant 0.000000e+00 : f32
    %115 = vector.broadcast %cst_52 : f32 to vector<4x8x8xf32>
    %116 = arith.maximumf %114, %115 : vector<4x8x8xf32>
    %c1_i32_53 = arith.constant 1 : i32
    %117 = vector.broadcast %c1_i32_53 : i32 to vector<4x8x1xi32>
    %118 = arith.muli %117, %8 : vector<4x8x1xi32>
    %c1_i32_54 = arith.constant 1 : i32
    %119 = vector.broadcast %c1_i32_54 : i32 to vector<4x8x1xi32>
    %120 = arith.addi %118, %119 : vector<4x8x1xi32>
    %c1_i32_55 = arith.constant 1 : i32
    %121 = vector.broadcast %c1_i32_55 : i32 to vector<4x8x1xi32>
    %122 = arith.muli %121, %9 : vector<4x8x1xi32>
    %c0_i32_56 = arith.constant 0 : i32
    %123 = vector.broadcast %c0_i32_56 : i32 to vector<4x8x1xi32>
    %124 = arith.addi %122, %123 : vector<4x8x1xi32>
    %c1_i32_57 = arith.constant 1 : i32
    %125 = vector.broadcast %c1_i32_57 : i32 to vector<4x8x1xi32>
    %126 = arith.cmpi sge, %120, %125 : vector<4x8x1xi32>
    %c8_i32_58 = arith.constant 8 : i32
    %127 = vector.broadcast %c8_i32_58 : i32 to vector<4x8x1xi32>
    %128 = arith.cmpi sle, %120, %127 : vector<4x8x1xi32>
    %129 = arith.andi %126, %128 : vector<4x8x1xi1>
    %c1_i32_59 = arith.constant 1 : i32
    %130 = vector.broadcast %c1_i32_59 : i32 to vector<4x8x1xi32>
    %131 = arith.cmpi sge, %124, %130 : vector<4x8x1xi32>
    %132 = arith.andi %129, %131 : vector<4x8x1xi1>
    %c8_i32_60 = arith.constant 8 : i32
    %133 = vector.broadcast %c8_i32_60 : i32 to vector<4x8x1xi32>
    %134 = arith.cmpi sle, %124, %133 : vector<4x8x1xi32>
    %135 = arith.andi %132, %134 : vector<4x8x1xi1>
    %cst_61 = arith.constant 0.000000e+00 : f32
    %136 = vector.shape_cast %135 : vector<4x8x1xi1> to vector<4x8x1xi1>
    %137 = vector.broadcast %136 : vector<4x8x1xi1> to vector<4x8x8xi1>
    %138 = vector.broadcast %cst_61 : f32 to vector<4x8x8xf32>
    %139 = arith.select %137, %116, %138 : vector<4x8x8xi1>, vector<4x8x8xf32>
    %140 = vector.shape_cast %139 : vector<4x8x8xf32> to vector<32x8xf32>
    %c0_62 = arith.constant 0 : index
    %c24 = arith.constant 24 : index
    %141 = vector.load %arg8[%c0_62, %c24] : memref<32x72xf32, #tpu.memory_space<vmem>>, vector<32x8xf32>
    tpu.vector_store %arg8[%c0_62, %c24], %140 {strides = array<i32>} : memref<32x72xf32, #tpu.memory_space<vmem>>, vector<32x8xf32>,
    %c0_63 = arith.constant 0 : index
    %c1_64 = arith.constant 1 : index
    %c1_65 = arith.constant 1 : index
    %c0_66 = arith.constant 0 : index
    %142 = vector.load %arg1[%c0_63, %c1_64, %c1_65, %c0_66] : memref<1x10x10x8xf32, #tpu.memory_space<vmem>>, vector<1x4x8x8xf32>
    %143 = vector.shape_cast %142 : vector<1x4x8x8xf32> to vector<4x8x8xf32>
    %144 = vector.broadcast %3 : vector<1x1x8xf32> to vector<4x8x8xf32>
    %145 = arith.mulf %143, %144 : vector<4x8x8xf32>
    %146 = vector.broadcast %5 : vector<1x1x8xf32> to vector<4x8x8xf32>
    %147 = arith.addf %145, %146 : vector<4x8x8xf32>
    %cst_67 = arith.constant 0.000000e+00 : f32
    %148 = vector.broadcast %cst_67 : f32 to vector<4x8x8xf32>
    %149 = arith.maximumf %147, %148 : vector<4x8x8xf32>
    %c1_i32_68 = arith.constant 1 : i32
    %150 = vector.broadcast %c1_i32_68 : i32 to vector<4x8x1xi32>
    %151 = arith.muli %150, %8 : vector<4x8x1xi32>
    %c1_i32_69 = arith.constant 1 : i32
    %152 = vector.broadcast %c1_i32_69 : i32 to vector<4x8x1xi32>
    %153 = arith.addi %151, %152 : vector<4x8x1xi32>
    %c1_i32_70 = arith.constant 1 : i32
    %154 = vector.broadcast %c1_i32_70 : i32 to vector<4x8x1xi32>
    %155 = arith.muli %154, %9 : vector<4x8x1xi32>
    %c1_i32_71 = arith.constant 1 : i32
    %156 = vector.broadcast %c1_i32_71 : i32 to vector<4x8x1xi32>
    %157 = arith.addi %155, %156 : vector<4x8x1xi32>
    %c1_i32_72 = arith.constant 1 : i32
    %158 = vector.broadcast %c1_i32_72 : i32 to vector<4x8x1xi32>
    %159 = arith.cmpi sge, %153, %158 : vector<4x8x1xi32>
    %c8_i32_73 = arith.constant 8 : i32
    %160 = vector.broadcast %c8_i32_73 : i32 to vector<4x8x1xi32>
    %161 = arith.cmpi sle, %153, %160 : vector<4x8x1xi32>
    %162 = arith.andi %159, %161 : vector<4x8x1xi1>
    %c1_i32_74 = arith.constant 1 : i32
    %163 = vector.broadcast %c1_i32_74 : i32 to vector<4x8x1xi32>
    %164 = arith.cmpi sge, %157, %163 : vector<4x8x1xi32>
    %165 = arith.andi %162, %164 : vector<4x8x1xi1>
    %c8_i32_75 = arith.constant 8 : i32
    %166 = vector.broadcast %c8_i32_75 : i32 to vector<4x8x1xi32>
    %167 = arith.cmpi sle, %157, %166 : vector<4x8x1xi32>
    %168 = arith.andi %165, %167 : vector<4x8x1xi1>
    %cst_76 = arith.constant 0.000000e+00 : f32
    %169 = vector.shape_cast %168 : vector<4x8x1xi1> to vector<4x8x1xi1>
    %170 = vector.broadcast %169 : vector<4x8x1xi1> to vector<4x8x8xi1>
    %171 = vector.broadcast %cst_76 : f32 to vector<4x8x8xf32>
    %172 = arith.select %170, %149, %171 : vector<4x8x8xi1>, vector<4x8x8xf32>
    %173 = vector.shape_cast %172 : vector<4x8x8xf32> to vector<32x8xf32>
    %c0_77 = arith.constant 0 : index
    %c32 = arith.constant 32 : index
    %174 = vector.load %arg8[%c0_77, %c32] : memref<32x72xf32, #tpu.memory_space<vmem>>, vector<32x8xf32>
    tpu.vector_store %arg8[%c0_77, %c32], %173 {strides = array<i32>} : memref<32x72xf32, #tpu.memory_space<vmem>>, vector<32x8xf32>,
    %c0_78 = arith.constant 0 : index
    %c1_79 = arith.constant 1 : index
    %c2_80 = arith.constant 2 : index
    %c0_81 = arith.constant 0 : index
    %175 = vector.load %arg1[%c0_78, %c1_79, %c2_80, %c0_81] : memref<1x10x10x8xf32, #tpu.memory_space<vmem>>, vector<1x4x8x8xf32>
    %176 = vector.shape_cast %175 : vector<1x4x8x8xf32> to vector<4x8x8xf32>
    %177 = vector.broadcast %3 : vector<1x1x8xf32> to vector<4x8x8xf32>
    %178 = arith.mulf %176, %177 : vector<4x8x8xf32>
    %179 = vector.broadcast %5 : vector<1x1x8xf32> to vector<4x8x8xf32>
    %180 = arith.addf %178, %179 : vector<4x8x8xf32>
    %cst_82 = arith.constant 0.000000e+00 : f32
    %181 = vector.broadcast %cst_82 : f32 to vector<4x8x8xf32>
    %182 = arith.maximumf %180, %181 : vector<4x8x8xf32>
    %c1_i32_83 = arith.constant 1 : i32
    %183 = vector.broadcast %c1_i32_83 : i32 to vector<4x8x1xi32>
    %184 = arith.muli %183, %8 : vector<4x8x1xi32>
    %c1_i32_84 = arith.constant 1 : i32
    %185 = vector.broadcast %c1_i32_84 : i32 to vector<4x8x1xi32>
    %186 = arith.addi %184, %185 : vector<4x8x1xi32>
    %c1_i32_85 = arith.constant 1 : i32
    %187 = vector.broadcast %c1_i32_85 : i32 to vector<4x8x1xi32>
    %188 = arith.muli %187, %9 : vector<4x8x1xi32>
    %c2_i32_86 = arith.constant 2 : i32
    %189 = vector.broadcast %c2_i32_86 : i32 to vector<4x8x1xi32>
    %190 = arith.addi %188, %189 : vector<4x8x1xi32>
    %c1_i32_87 = arith.constant 1 : i32
    %191 = vector.broadcast %c1_i32_87 : i32 to vector<4x8x1xi32>
    %192 = arith.cmpi sge, %186, %191 : vector<4x8x1xi32>
    %c8_i32_88 = arith.constant 8 : i32
    %193 = vector.broadcast %c8_i32_88 : i32 to vector<4x8x1xi32>
    %194 = arith.cmpi sle, %186, %193 : vector<4x8x1xi32>
    %195 = arith.andi %192, %194 : vector<4x8x1xi1>
    %c1_i32_89 = arith.constant 1 : i32
    %196 = vector.broadcast %c1_i32_89 : i32 to vector<4x8x1xi32>
    %197 = arith.cmpi sge, %190, %196 : vector<4x8x1xi32>
    %198 = arith.andi %195, %197 : vector<4x8x1xi1>
    %c8_i32_90 = arith.constant 8 : i32
    %199 = vector.broadcast %c8_i32_90 : i32 to vector<4x8x1xi32>
    %200 = arith.cmpi sle, %190, %199 : vector<4x8x1xi32>
    %201 = arith.andi %198, %200 : vector<4x8x1xi1>
    %cst_91 = arith.constant 0.000000e+00 : f32
    %202 = vector.shape_cast %201 : vector<4x8x1xi1> to vector<4x8x1xi1>
    %203 = vector.broadcast %202 : vector<4x8x1xi1> to vector<4x8x8xi1>
    %204 = vector.broadcast %cst_91 : f32 to vector<4x8x8xf32>
    %205 = arith.select %203, %182, %204 : vector<4x8x8xi1>, vector<4x8x8xf32>
    %206 = vector.shape_cast %205 : vector<4x8x8xf32> to vector<32x8xf32>
    %c0_92 = arith.constant 0 : index
    %c40 = arith.constant 40 : index
    %207 = vector.load %arg8[%c0_92, %c40] : memref<32x72xf32, #tpu.memory_space<vmem>>, vector<32x8xf32>
    tpu.vector_store %arg8[%c0_92, %c40], %206 {strides = array<i32>} : memref<32x72xf32, #tpu.memory_space<vmem>>, vector<32x8xf32>,
    %c0_93 = arith.constant 0 : index
    %c2_94 = arith.constant 2 : index
    %c0_95 = arith.constant 0 : index
    %c0_96 = arith.constant 0 : index
    %208 = vector.load %arg1[%c0_93, %c2_94, %c0_95, %c0_96] : memref<1x10x10x8xf32, #tpu.memory_space<vmem>>, vector<1x4x8x8xf32>
    %209 = vector.shape_cast %208 : vector<1x4x8x8xf32> to vector<4x8x8xf32>
    %210 = vector.broadcast %3 : vector<1x1x8xf32> to vector<4x8x8xf32>
    %211 = arith.mulf %209, %210 : vector<4x8x8xf32>
    %212 = vector.broadcast %5 : vector<1x1x8xf32> to vector<4x8x8xf32>
    %213 = arith.addf %211, %212 : vector<4x8x8xf32>
    %cst_97 = arith.constant 0.000000e+00 : f32
    %214 = vector.broadcast %cst_97 : f32 to vector<4x8x8xf32>
    %215 = arith.maximumf %213, %214 : vector<4x8x8xf32>
    %c1_i32_98 = arith.constant 1 : i32
    %216 = vector.broadcast %c1_i32_98 : i32 to vector<4x8x1xi32>
    %217 = arith.muli %216, %8 : vector<4x8x1xi32>
    %c2_i32_99 = arith.constant 2 : i32
    %218 = vector.broadcast %c2_i32_99 : i32 to vector<4x8x1xi32>
    %219 = arith.addi %217, %218 : vector<4x8x1xi32>
    %c1_i32_100 = arith.constant 1 : i32
    %220 = vector.broadcast %c1_i32_100 : i32 to vector<4x8x1xi32>
    %221 = arith.muli %220, %9 : vector<4x8x1xi32>
    %c0_i32_101 = arith.constant 0 : i32
    %222 = vector.broadcast %c0_i32_101 : i32 to vector<4x8x1xi32>
    %223 = arith.addi %221, %222 : vector<4x8x1xi32>
    %c1_i32_102 = arith.constant 1 : i32
    %224 = vector.broadcast %c1_i32_102 : i32 to vector<4x8x1xi32>
    %225 = arith.cmpi sge, %219, %224 : vector<4x8x1xi32>
    %c8_i32_103 = arith.constant 8 : i32
    %226 = vector.broadcast %c8_i32_103 : i32 to vector<4x8x1xi32>
    %227 = arith.cmpi sle, %219, %226 : vector<4x8x1xi32>
    %228 = arith.andi %225, %227 : vector<4x8x1xi1>
    %c1_i32_104 = arith.constant 1 : i32
    %229 = vector.broadcast %c1_i32_104 : i32 to vector<4x8x1xi32>
    %230 = arith.cmpi sge, %223, %229 : vector<4x8x1xi32>
    %231 = arith.andi %228, %230 : vector<4x8x1xi1>
    %c8_i32_105 = arith.constant 8 : i32
    %232 = vector.broadcast %c8_i32_105 : i32 to vector<4x8x1xi32>
    %233 = arith.cmpi sle, %223, %232 : vector<4x8x1xi32>
    %234 = arith.andi %231, %233 : vector<4x8x1xi1>
    %cst_106 = arith.constant 0.000000e+00 : f32
    %235 = vector.shape_cast %234 : vector<4x8x1xi1> to vector<4x8x1xi1>
    %236 = vector.broadcast %235 : vector<4x8x1xi1> to vector<4x8x8xi1>
    %237 = vector.broadcast %cst_106 : f32 to vector<4x8x8xf32>
    %238 = arith.select %236, %215, %237 : vector<4x8x8xi1>, vector<4x8x8xf32>
    %239 = vector.shape_cast %238 : vector<4x8x8xf32> to vector<32x8xf32>
    %c0_107 = arith.constant 0 : index
    %c48 = arith.constant 48 : index
    %240 = vector.load %arg8[%c0_107, %c48] : memref<32x72xf32, #tpu.memory_space<vmem>>, vector<32x8xf32>
    tpu.vector_store %arg8[%c0_107, %c48], %239 {strides = array<i32>} : memref<32x72xf32, #tpu.memory_space<vmem>>, vector<32x8xf32>,
    %c0_108 = arith.constant 0 : index
    %c2_109 = arith.constant 2 : index
    %c1_110 = arith.constant 1 : index
    %c0_111 = arith.constant 0 : index
    %241 = vector.load %arg1[%c0_108, %c2_109, %c1_110, %c0_111] : memref<1x10x10x8xf32, #tpu.memory_space<vmem>>, vector<1x4x8x8xf32>
    %242 = vector.shape_cast %241 : vector<1x4x8x8xf32> to vector<4x8x8xf32>
    %243 = vector.broadcast %3 : vector<1x1x8xf32> to vector<4x8x8xf32>
    %244 = arith.mulf %242, %243 : vector<4x8x8xf32>
    %245 = vector.broadcast %5 : vector<1x1x8xf32> to vector<4x8x8xf32>
    %246 = arith.addf %244, %245 : vector<4x8x8xf32>
    %cst_112 = arith.constant 0.000000e+00 : f32
    %247 = vector.broadcast %cst_112 : f32 to vector<4x8x8xf32>
    %248 = arith.maximumf %246, %247 : vector<4x8x8xf32>
    %c1_i32_113 = arith.constant 1 : i32
    %249 = vector.broadcast %c1_i32_113 : i32 to vector<4x8x1xi32>
    %250 = arith.muli %249, %8 : vector<4x8x1xi32>
    %c2_i32_114 = arith.constant 2 : i32
    %251 = vector.broadcast %c2_i32_114 : i32 to vector<4x8x1xi32>
    %252 = arith.addi %250, %251 : vector<4x8x1xi32>
    %c1_i32_115 = arith.constant 1 : i32
    %253 = vector.broadcast %c1_i32_115 : i32 to vector<4x8x1xi32>
    %254 = arith.muli %253, %9 : vector<4x8x1xi32>
    %c1_i32_116 = arith.constant 1 : i32
    %255 = vector.broadcast %c1_i32_116 : i32 to vector<4x8x1xi32>
    %256 = arith.addi %254, %255 : vector<4x8x1xi32>
    %c1_i32_117 = arith.constant 1 : i32
    %257 = vector.broadcast %c1_i32_117 : i32 to vector<4x8x1xi32>
    %258 = arith.cmpi sge, %252, %257 : vector<4x8x1xi32>
    %c8_i32_118 = arith.constant 8 : i32
    %259 = vector.broadcast %c8_i32_118 : i32 to vector<4x8x1xi32>
    %260 = arith.cmpi sle, %252, %259 : vector<4x8x1xi32>
    %261 = arith.andi %258, %260 : vector<4x8x1xi1>
    %c1_i32_119 = arith.constant 1 : i32
    %262 = vector.broadcast %c1_i32_119 : i32 to vector<4x8x1xi32>
    %263 = arith.cmpi sge, %256, %262 : vector<4x8x1xi32>
    %264 = arith.andi %261, %263 : vector<4x8x1xi1>
    %c8_i32_120 = arith.constant 8 : i32
    %265 = vector.broadcast %c8_i32_120 : i32 to vector<4x8x1xi32>
    %266 = arith.cmpi sle, %256, %265 : vector<4x8x1xi32>
    %267 = arith.andi %264, %266 : vector<4x8x1xi1>
    %cst_121 = arith.constant 0.000000e+00 : f32
    %268 = vector.shape_cast %267 : vector<4x8x1xi1> to vector<4x8x1xi1>
    %269 = vector.broadcast %268 : vector<4x8x1xi1> to vector<4x8x8xi1>
    %270 = vector.broadcast %cst_121 : f32 to vector<4x8x8xf32>
    %271 = arith.select %269, %248, %270 : vector<4x8x8xi1>, vector<4x8x8xf32>
    %272 = vector.shape_cast %271 : vector<4x8x8xf32> to vector<32x8xf32>
    %c0_122 = arith.constant 0 : index
    %c56 = arith.constant 56 : index
    %273 = vector.load %arg8[%c0_122, %c56] : memref<32x72xf32, #tpu.memory_space<vmem>>, vector<32x8xf32>
    tpu.vector_store %arg8[%c0_122, %c56], %272 {strides = array<i32>} : memref<32x72xf32, #tpu.memory_space<vmem>>, vector<32x8xf32>,
    %c0_123 = arith.constant 0 : index
    %c2_124 = arith.constant 2 : index
    %c2_125 = arith.constant 2 : index
    %c0_126 = arith.constant 0 : index
    %274 = vector.load %arg1[%c0_123, %c2_124, %c2_125, %c0_126] : memref<1x10x10x8xf32, #tpu.memory_space<vmem>>, vector<1x4x8x8xf32>
    %275 = vector.shape_cast %274 : vector<1x4x8x8xf32> to vector<4x8x8xf32>
    %276 = vector.broadcast %3 : vector<1x1x8xf32> to vector<4x8x8xf32>
    %277 = arith.mulf %275, %276 : vector<4x8x8xf32>
    %278 = vector.broadcast %5 : vector<1x1x8xf32> to vector<4x8x8xf32>
    %279 = arith.addf %277, %278 : vector<4x8x8xf32>
    %cst_127 = arith.constant 0.000000e+00 : f32
    %280 = vector.broadcast %cst_127 : f32 to vector<4x8x8xf32>
    %281 = arith.maximumf %279, %280 : vector<4x8x8xf32>
    %c1_i32_128 = arith.constant 1 : i32
    %282 = vector.broadcast %c1_i32_128 : i32 to vector<4x8x1xi32>
    %283 = arith.muli %282, %8 : vector<4x8x1xi32>
    %c2_i32_129 = arith.constant 2 : i32
    %284 = vector.broadcast %c2_i32_129 : i32 to vector<4x8x1xi32>
    %285 = arith.addi %283, %284 : vector<4x8x1xi32>
    %c1_i32_130 = arith.constant 1 : i32
    %286 = vector.broadcast %c1_i32_130 : i32 to vector<4x8x1xi32>
    %287 = arith.muli %286, %9 : vector<4x8x1xi32>
    %c2_i32_131 = arith.constant 2 : i32
    %288 = vector.broadcast %c2_i32_131 : i32 to vector<4x8x1xi32>
    %289 = arith.addi %287, %288 : vector<4x8x1xi32>
    %c1_i32_132 = arith.constant 1 : i32
    %290 = vector.broadcast %c1_i32_132 : i32 to vector<4x8x1xi32>
    %291 = arith.cmpi sge, %285, %290 : vector<4x8x1xi32>
    %c8_i32_133 = arith.constant 8 : i32
    %292 = vector.broadcast %c8_i32_133 : i32 to vector<4x8x1xi32>
    %293 = arith.cmpi sle, %285, %292 : vector<4x8x1xi32>
    %294 = arith.andi %291, %293 : vector<4x8x1xi1>
    %c1_i32_134 = arith.constant 1 : i32
    %295 = vector.broadcast %c1_i32_134 : i32 to vector<4x8x1xi32>
    %296 = arith.cmpi sge, %289, %295 : vector<4x8x1xi32>
    %297 = arith.andi %294, %296 : vector<4x8x1xi1>
    %c8_i32_135 = arith.constant 8 : i32
    %298 = vector.broadcast %c8_i32_135 : i32 to vector<4x8x1xi32>
    %299 = arith.cmpi sle, %289, %298 : vector<4x8x1xi32>
    %300 = arith.andi %297, %299 : vector<4x8x1xi1>
    %cst_136 = arith.constant 0.000000e+00 : f32
    %301 = vector.shape_cast %300 : vector<4x8x1xi1> to vector<4x8x1xi1>
    %302 = vector.broadcast %301 : vector<4x8x1xi1> to vector<4x8x8xi1>
    %303 = vector.broadcast %cst_136 : f32 to vector<4x8x8xf32>
    %304 = arith.select %302, %281, %303 : vector<4x8x8xi1>, vector<4x8x8xf32>
    %305 = vector.shape_cast %304 : vector<4x8x8xf32> to vector<32x8xf32>
    %c0_137 = arith.constant 0 : index
    %c64 = arith.constant 64 : index
    %306 = vector.load %arg8[%c0_137, %c64] : memref<32x72xf32, #tpu.memory_space<vmem>>, vector<32x8xf32>
    tpu.vector_store %arg8[%c0_137, %c64], %305 {strides = array<i32>} : memref<32x72xf32, #tpu.memory_space<vmem>>, vector<32x8xf32>,
    %c0_138 = arith.constant 0 : index
    %c0_139 = arith.constant 0 : index
    %307 = vector.load %arg8[%c0_138, %c0_139] : memref<32x72xf32, #tpu.memory_space<vmem>>, vector<32x72xf32>
    %308 = arith.truncf %307 : vector<32x72xf32> to vector<32x72xbf16>
    %c0_140 = arith.constant 0 : index
    %c0_141 = arith.constant 0 : index
    %309 = vector.load %arg6[%c0_140, %c0_141] : memref<72x8xbf16, #tpu.memory_space<vmem>>, vector<72x8xbf16>
    %cst_142 = arith.constant dense<0.000000e+00> : vector<32x8xf32>
    %310 = tpu.matmul %308, %309, %cst_142 {dimension_numbers = #tpu.dot_dimension_numbers<[1], [0], [0], [1], [0, 0, 1, 1], [], []>} : vector<32x72xbf16>, vector<72x8xbf16>, vector<32x8xf32> -> vector<32x8xf32>
    %c0_143 = arith.constant 0 : index
    %c0_144 = arith.constant 0 : index
    %311 = vector.load %arg4[%c0_143, %c0_144] : memref<1x8xf32, #tpu.memory_space<vmem>>, vector<1x8xf32>
    %312 = vector.broadcast %311 : vector<1x8xf32> to vector<32x8xf32>
    %313 = arith.mulf %310, %312 : vector<32x8xf32>
    %c0_145 = arith.constant 0 : index
    %c0_146 = arith.constant 0 : index
    %314 = vector.load %arg5[%c0_145, %c0_146] : memref<1x8xf32, #tpu.memory_space<vmem>>, vector<1x8xf32>
    %315 = vector.broadcast %314 : vector<1x8xf32> to vector<32x8xf32>
    %316 = arith.addf %313, %315 : vector<32x8xf32>
    %cst_147 = arith.constant 0.000000e+00 : f32
    %317 = vector.broadcast %cst_147 : f32 to vector<32x8xf32>
    %318 = arith.maximumf %316, %317 : vector<32x8xf32>
    %319 = vector.shape_cast %318 : vector<32x8xf32> to vector<4x8x8xf32>
    %c0_148 = arith.constant 0 : index
    %c1_149 = arith.constant 1 : index
    %c1_150 = arith.constant 1 : index
    %c0_151 = arith.constant 0 : index
    %320 = vector.load %arg7[%c0_148, %c1_149, %c1_150, %c0_151] : memref<1x10x10x8xf32, #tpu.memory_space<vmem>>, vector<1x4x8x8xf32>
    %321 = vector.shape_cast %320 : vector<1x4x8x8xf32> to vector<4x8x8xf32>
    %322 = vector.shape_cast %319 : vector<4x8x8xf32> to vector<1x4x8x8xf32>
    tpu.vector_store %arg7[%c0_148, %c1_149, %c1_150, %c0_151], %322 {strides = array<i32>} : memref<1x10x10x8xf32, #tpu.memory_space<vmem>>, vector<1x4x8x8xf32>,
    %323 = tpu.iota {dimensions = array<i32: 0>} : vector<4x8x1xi32>
    %c4_i32 = arith.constant 4 : i32
    %324 = vector.broadcast %c4_i32 : i32 to vector<4x8x1xi32>
    %325 = arith.addi %323, %324 : vector<4x8x1xi32>
    %326 = tpu.iota {dimensions = array<i32: 1>} : vector<4x8x1xi32>
    %c0_152 = arith.constant 0 : index
    %c4 = arith.constant 4 : index
    %c0_153 = arith.constant 0 : index
    %c0_154 = arith.constant 0 : index
    %327 = vector.load %arg1[%c0_152, %c4, %c0_153, %c0_154] : memref<1x10x10x8xf32, #tpu.memory_space<vmem>>, vector<1x4x8x8xf32>
    %328 = vector.shape_cast %327 : vector<1x4x8x8xf32> to vector<4x8x8xf32>
    %329 = vector.broadcast %3 : vector<1x1x8xf32> to vector<4x8x8xf32>
    %330 = arith.mulf %328, %329 : vector<4x8x8xf32>
    %331 = vector.broadcast %5 : vector<1x1x8xf32> to vector<4x8x8xf32>
    %332 = arith.addf %330, %331 : vector<4x8x8xf32>
    %cst_155 = arith.constant 0.000000e+00 : f32
    %333 = vector.broadcast %cst_155 : f32 to vector<4x8x8xf32>
    %334 = arith.maximumf %332, %333 : vector<4x8x8xf32>
    %c1_i32_156 = arith.constant 1 : i32
    %335 = vector.broadcast %c1_i32_156 : i32 to vector<4x8x1xi32>
    %336 = arith.muli %335, %325 : vector<4x8x1xi32>
    %c0_i32_157 = arith.constant 0 : i32
    %337 = vector.broadcast %c0_i32_157 : i32 to vector<4x8x1xi32>
    %338 = arith.addi %336, %337 : vector<4x8x1xi32>
    %c1_i32_158 = arith.constant 1 : i32
    %339 = vector.broadcast %c1_i32_158 : i32 to vector<4x8x1xi32>
    %340 = arith.muli %339, %326 : vector<4x8x1xi32>
    %c0_i32_159 = arith.constant 0 : i32
    %341 = vector.broadcast %c0_i32_159 : i32 to vector<4x8x1xi32>
    %342 = arith.addi %340, %341 : vector<4x8x1xi32>
    %c1_i32_160 = arith.constant 1 : i32
    %343 = vector.broadcast %c1_i32_160 : i32 to vector<4x8x1xi32>
    %344 = arith.cmpi sge, %338, %343 : vector<4x8x1xi32>
    %c8_i32_161 = arith.constant 8 : i32
    %345 = vector.broadcast %c8_i32_161 : i32 to vector<4x8x1xi32>
    %346 = arith.cmpi sle, %338, %345 : vector<4x8x1xi32>
    %347 = arith.andi %344, %346 : vector<4x8x1xi1>
    %c1_i32_162 = arith.constant 1 : i32
    %348 = vector.broadcast %c1_i32_162 : i32 to vector<4x8x1xi32>
    %349 = arith.cmpi sge, %342, %348 : vector<4x8x1xi32>
    %350 = arith.andi %347, %349 : vector<4x8x1xi1>
    %c8_i32_163 = arith.constant 8 : i32
    %351 = vector.broadcast %c8_i32_163 : i32 to vector<4x8x1xi32>
    %352 = arith.cmpi sle, %342, %351 : vector<4x8x1xi32>
    %353 = arith.andi %350, %352 : vector<4x8x1xi1>
    %cst_164 = arith.constant 0.000000e+00 : f32
    %354 = vector.shape_cast %353 : vector<4x8x1xi1> to vector<4x8x1xi1>
    %355 = vector.broadcast %354 : vector<4x8x1xi1> to vector<4x8x8xi1>
    %356 = vector.broadcast %cst_164 : f32 to vector<4x8x8xf32>
    %357 = arith.select %355, %334, %356 : vector<4x8x8xi1>, vector<4x8x8xf32>
    %358 = vector.shape_cast %357 : vector<4x8x8xf32> to vector<32x8xf32>
    %c0_165 = arith.constant 0 : index
    %c0_166 = arith.constant 0 : index
    %359 = vector.load %arg8[%c0_165, %c0_166] : memref<32x72xf32, #tpu.memory_space<vmem>>, vector<32x8xf32>
    tpu.vector_store %arg8[%c0_165, %c0_166], %358 {strides = array<i32>} : memref<32x72xf32, #tpu.memory_space<vmem>>, vector<32x8xf32>,
    %c0_167 = arith.constant 0 : index
    %c4_168 = arith.constant 4 : index
    %c1_169 = arith.constant 1 : index
    %c0_170 = arith.constant 0 : index
    %360 = vector.load %arg1[%c0_167, %c4_168, %c1_169, %c0_170] : memref<1x10x10x8xf32, #tpu.memory_space<vmem>>, vector<1x4x8x8xf32>
    %361 = vector.shape_cast %360 : vector<1x4x8x8xf32> to vector<4x8x8xf32>
    %362 = vector.broadcast %3 : vector<1x1x8xf32> to vector<4x8x8xf32>
    %363 = arith.mulf %361, %362 : vector<4x8x8xf32>
    %364 = vector.broadcast %5 : vector<1x1x8xf32> to vector<4x8x8xf32>
    %365 = arith.addf %363, %364 : vector<4x8x8xf32>
    %cst_171 = arith.constant 0.000000e+00 : f32
    %366 = vector.broadcast %cst_171 : f32 to vector<4x8x8xf32>
    %367 = arith.maximumf %365, %366 : vector<4x8x8xf32>
    %c1_i32_172 = arith.constant 1 : i32
    %368 = vector.broadcast %c1_i32_172 : i32 to vector<4x8x1xi32>
    %369 = arith.muli %368, %325 : vector<4x8x1xi32>
    %c0_i32_173 = arith.constant 0 : i32
    %370 = vector.broadcast %c0_i32_173 : i32 to vector<4x8x1xi32>
    %371 = arith.addi %369, %370 : vector<4x8x1xi32>
    %c1_i32_174 = arith.constant 1 : i32
    %372 = vector.broadcast %c1_i32_174 : i32 to vector<4x8x1xi32>
    %373 = arith.muli %372, %326 : vector<4x8x1xi32>
    %c1_i32_175 = arith.constant 1 : i32
    %374 = vector.broadcast %c1_i32_175 : i32 to vector<4x8x1xi32>
    %375 = arith.addi %373, %374 : vector<4x8x1xi32>
    %c1_i32_176 = arith.constant 1 : i32
    %376 = vector.broadcast %c1_i32_176 : i32 to vector<4x8x1xi32>
    %377 = arith.cmpi sge, %371, %376 : vector<4x8x1xi32>
    %c8_i32_177 = arith.constant 8 : i32
    %378 = vector.broadcast %c8_i32_177 : i32 to vector<4x8x1xi32>
    %379 = arith.cmpi sle, %371, %378 : vector<4x8x1xi32>
    %380 = arith.andi %377, %379 : vector<4x8x1xi1>
    %c1_i32_178 = arith.constant 1 : i32
    %381 = vector.broadcast %c1_i32_178 : i32 to vector<4x8x1xi32>
    %382 = arith.cmpi sge, %375, %381 : vector<4x8x1xi32>
    %383 = arith.andi %380, %382 : vector<4x8x1xi1>
    %c8_i32_179 = arith.constant 8 : i32
    %384 = vector.broadcast %c8_i32_179 : i32 to vector<4x8x1xi32>
    %385 = arith.cmpi sle, %375, %384 : vector<4x8x1xi32>
    %386 = arith.andi %383, %385 : vector<4x8x1xi1>
    %cst_180 = arith.constant 0.000000e+00 : f32
    %387 = vector.shape_cast %386 : vector<4x8x1xi1> to vector<4x8x1xi1>
    %388 = vector.broadcast %387 : vector<4x8x1xi1> to vector<4x8x8xi1>
    %389 = vector.broadcast %cst_180 : f32 to vector<4x8x8xf32>
    %390 = arith.select %388, %367, %389 : vector<4x8x8xi1>, vector<4x8x8xf32>
    %391 = vector.shape_cast %390 : vector<4x8x8xf32> to vector<32x8xf32>
    %c0_181 = arith.constant 0 : index
    %c8_182 = arith.constant 8 : index
    %392 = vector.load %arg8[%c0_181, %c8_182] : memref<32x72xf32, #tpu.memory_space<vmem>>, vector<32x8xf32>
    tpu.vector_store %arg8[%c0_181, %c8_182], %391 {strides = array<i32>} : memref<32x72xf32, #tpu.memory_space<vmem>>, vector<32x8xf32>,
    %c0_183 = arith.constant 0 : index
    %c4_184 = arith.constant 4 : index
    %c2_185 = arith.constant 2 : index
    %c0_186 = arith.constant 0 : index
    %393 = vector.load %arg1[%c0_183, %c4_184, %c2_185, %c0_186] : memref<1x10x10x8xf32, #tpu.memory_space<vmem>>, vector<1x4x8x8xf32>
    %394 = vector.shape_cast %393 : vector<1x4x8x8xf32> to vector<4x8x8xf32>
    %395 = vector.broadcast %3 : vector<1x1x8xf32> to vector<4x8x8xf32>
    %396 = arith.mulf %394, %395 : vector<4x8x8xf32>
    %397 = vector.broadcast %5 : vector<1x1x8xf32> to vector<4x8x8xf32>
    %398 = arith.addf %396, %397 : vector<4x8x8xf32>
    %cst_187 = arith.constant 0.000000e+00 : f32
    %399 = vector.broadcast %cst_187 : f32 to vector<4x8x8xf32>
    %400 = arith.maximumf %398, %399 : vector<4x8x8xf32>
    %c1_i32_188 = arith.constant 1 : i32
    %401 = vector.broadcast %c1_i32_188 : i32 to vector<4x8x1xi32>
    %402 = arith.muli %401, %325 : vector<4x8x1xi32>
    %c0_i32_189 = arith.constant 0 : i32
    %403 = vector.broadcast %c0_i32_189 : i32 to vector<4x8x1xi32>
    %404 = arith.addi %402, %403 : vector<4x8x1xi32>
    %c1_i32_190 = arith.constant 1 : i32
    %405 = vector.broadcast %c1_i32_190 : i32 to vector<4x8x1xi32>
    %406 = arith.muli %405, %326 : vector<4x8x1xi32>
    %c2_i32_191 = arith.constant 2 : i32
    %407 = vector.broadcast %c2_i32_191 : i32 to vector<4x8x1xi32>
    %408 = arith.addi %406, %407 : vector<4x8x1xi32>
    %c1_i32_192 = arith.constant 1 : i32
    %409 = vector.broadcast %c1_i32_192 : i32 to vector<4x8x1xi32>
    %410 = arith.cmpi sge, %404, %409 : vector<4x8x1xi32>
    %c8_i32_193 = arith.constant 8 : i32
    %411 = vector.broadcast %c8_i32_193 : i32 to vector<4x8x1xi32>
    %412 = arith.cmpi sle, %404, %411 : vector<4x8x1xi32>
    %413 = arith.andi %410, %412 : vector<4x8x1xi1>
    %c1_i32_194 = arith.constant 1 : i32
    %414 = vector.broadcast %c1_i32_194 : i32 to vector<4x8x1xi32>
    %415 = arith.cmpi sge, %408, %414 : vector<4x8x1xi32>
    %416 = arith.andi %413, %415 : vector<4x8x1xi1>
    %c8_i32_195 = arith.constant 8 : i32
    %417 = vector.broadcast %c8_i32_195 : i32 to vector<4x8x1xi32>
    %418 = arith.cmpi sle, %408, %417 : vector<4x8x1xi32>
    %419 = arith.andi %416, %418 : vector<4x8x1xi1>
    %cst_196 = arith.constant 0.000000e+00 : f32
    %420 = vector.shape_cast %419 : vector<4x8x1xi1> to vector<4x8x1xi1>
    %421 = vector.broadcast %420 : vector<4x8x1xi1> to vector<4x8x8xi1>
    %422 = vector.broadcast %cst_196 : f32 to vector<4x8x8xf32>
    %423 = arith.select %421, %400, %422 : vector<4x8x8xi1>, vector<4x8x8xf32>
    %424 = vector.shape_cast %423 : vector<4x8x8xf32> to vector<32x8xf32>
    %c0_197 = arith.constant 0 : index
    %c16_198 = arith.constant 16 : index
    %425 = vector.load %arg8[%c0_197, %c16_198] : memref<32x72xf32, #tpu.memory_space<vmem>>, vector<32x8xf32>
    tpu.vector_store %arg8[%c0_197, %c16_198], %424 {strides = array<i32>} : memref<32x72xf32, #tpu.memory_space<vmem>>, vector<32x8xf32>,
    %c0_199 = arith.constant 0 : index
    %c5 = arith.constant 5 : index
    %c0_200 = arith.constant 0 : index
    %c0_201 = arith.constant 0 : index
    %426 = vector.load %arg1[%c0_199, %c5, %c0_200, %c0_201] : memref<1x10x10x8xf32, #tpu.memory_space<vmem>>, vector<1x4x8x8xf32>
    %427 = vector.shape_cast %426 : vector<1x4x8x8xf32> to vector<4x8x8xf32>
    %428 = vector.broadcast %3 : vector<1x1x8xf32> to vector<4x8x8xf32>
    %429 = arith.mulf %427, %428 : vector<4x8x8xf32>
    %430 = vector.broadcast %5 : vector<1x1x8xf32> to vector<4x8x8xf32>
    %431 = arith.addf %429, %430 : vector<4x8x8xf32>
    %cst_202 = arith.constant 0.000000e+00 : f32
    %432 = vector.broadcast %cst_202 : f32 to vector<4x8x8xf32>
    %433 = arith.maximumf %431, %432 : vector<4x8x8xf32>
    %c1_i32_203 = arith.constant 1 : i32
    %434 = vector.broadcast %c1_i32_203 : i32 to vector<4x8x1xi32>
    %435 = arith.muli %434, %325 : vector<4x8x1xi32>
    %c1_i32_204 = arith.constant 1 : i32
    %436 = vector.broadcast %c1_i32_204 : i32 to vector<4x8x1xi32>
    %437 = arith.addi %435, %436 : vector<4x8x1xi32>
    %c1_i32_205 = arith.constant 1 : i32
    %438 = vector.broadcast %c1_i32_205 : i32 to vector<4x8x1xi32>
    %439 = arith.muli %438, %326 : vector<4x8x1xi32>
    %c0_i32_206 = arith.constant 0 : i32
    %440 = vector.broadcast %c0_i32_206 : i32 to vector<4x8x1xi32>
    %441 = arith.addi %439, %440 : vector<4x8x1xi32>
    %c1_i32_207 = arith.constant 1 : i32
    %442 = vector.broadcast %c1_i32_207 : i32 to vector<4x8x1xi32>
    %443 = arith.cmpi sge, %437, %442 : vector<4x8x1xi32>
    %c8_i32_208 = arith.constant 8 : i32
    %444 = vector.broadcast %c8_i32_208 : i32 to vector<4x8x1xi32>
    %445 = arith.cmpi sle, %437, %444 : vector<4x8x1xi32>
    %446 = arith.andi %443, %445 : vector<4x8x1xi1>
    %c1_i32_209 = arith.constant 1 : i32
    %447 = vector.broadcast %c1_i32_209 : i32 to vector<4x8x1xi32>
    %448 = arith.cmpi sge, %441, %447 : vector<4x8x1xi32>
    %449 = arith.andi %446, %448 : vector<4x8x1xi1>
    %c8_i32_210 = arith.constant 8 : i32
    %450 = vector.broadcast %c8_i32_210 : i32 to vector<4x8x1xi32>
    %451 = arith.cmpi sle, %441, %450 : vector<4x8x1xi32>
    %452 = arith.andi %449, %451 : vector<4x8x1xi1>
    %cst_211 = arith.constant 0.000000e+00 : f32
    %453 = vector.shape_cast %452 : vector<4x8x1xi1> to vector<4x8x1xi1>
    %454 = vector.broadcast %453 : vector<4x8x1xi1> to vector<4x8x8xi1>
    %455 = vector.broadcast %cst_211 : f32 to vector<4x8x8xf32>
    %456 = arith.select %454, %433, %455 : vector<4x8x8xi1>, vector<4x8x8xf32>
    %457 = vector.shape_cast %456 : vector<4x8x8xf32> to vector<32x8xf32>
    %c0_212 = arith.constant 0 : index
    %c24_213 = arith.constant 24 : index
    %458 = vector.load %arg8[%c0_212, %c24_213] : memref<32x72xf32, #tpu.memory_space<vmem>>, vector<32x8xf32>
    tpu.vector_store %arg8[%c0_212, %c24_213], %457 {strides = array<i32>} : memref<32x72xf32, #tpu.memory_space<vmem>>, vector<32x8xf32>,
    %c0_214 = arith.constant 0 : index
    %c5_215 = arith.constant 5 : index
    %c1_216 = arith.constant 1 : index
    %c0_217 = arith.constant 0 : index
    %459 = vector.load %arg1[%c0_214, %c5_215, %c1_216, %c0_217] : memref<1x10x10x8xf32, #tpu.memory_space<vmem>>, vector<1x4x8x8xf32>
    %460 = vector.shape_cast %459 : vector<1x4x8x8xf32> to vector<4x8x8xf32>
    %461 = vector.broadcast %3 : vector<1x1x8xf32> to vector<4x8x8xf32>
    %462 = arith.mulf %460, %461 : vector<4x8x8xf32>
    %463 = vector.broadcast %5 : vector<1x1x8xf32> to vector<4x8x8xf32>
    %464 = arith.addf %462, %463 : vector<4x8x8xf32>
    %cst_218 = arith.constant 0.000000e+00 : f32
    %465 = vector.broadcast %cst_218 : f32 to vector<4x8x8xf32>
    %466 = arith.maximumf %464, %465 : vector<4x8x8xf32>
    %c1_i32_219 = arith.constant 1 : i32
    %467 = vector.broadcast %c1_i32_219 : i32 to vector<4x8x1xi32>
    %468 = arith.muli %467, %325 : vector<4x8x1xi32>
    %c1_i32_220 = arith.constant 1 : i32
    %469 = vector.broadcast %c1_i32_220 : i32 to vector<4x8x1xi32>
    %470 = arith.addi %468, %469 : vector<4x8x1xi32>
    %c1_i32_221 = arith.constant 1 : i32
    %471 = vector.broadcast %c1_i32_221 : i32 to vector<4x8x1xi32>
    %472 = arith.muli %471, %326 : vector<4x8x1xi32>
    %c1_i32_222 = arith.constant 1 : i32
    %473 = vector.broadcast %c1_i32_222 : i32 to vector<4x8x1xi32>
    %474 = arith.addi %472, %473 : vector<4x8x1xi32>
    %c1_i32_223 = arith.constant 1 : i32
    %475 = vector.broadcast %c1_i32_223 : i32 to vector<4x8x1xi32>
    %476 = arith.cmpi sge, %470, %475 : vector<4x8x1xi32>
    %c8_i32_224 = arith.constant 8 : i32
    %477 = vector.broadcast %c8_i32_224 : i32 to vector<4x8x1xi32>
    %478 = arith.cmpi sle, %470, %477 : vector<4x8x1xi32>
    %479 = arith.andi %476, %478 : vector<4x8x1xi1>
    %c1_i32_225 = arith.constant 1 : i32
    %480 = vector.broadcast %c1_i32_225 : i32 to vector<4x8x1xi32>
    %481 = arith.cmpi sge, %474, %480 : vector<4x8x1xi32>
    %482 = arith.andi %479, %481 : vector<4x8x1xi1>
    %c8_i32_226 = arith.constant 8 : i32
    %483 = vector.broadcast %c8_i32_226 : i32 to vector<4x8x1xi32>
    %484 = arith.cmpi sle, %474, %483 : vector<4x8x1xi32>
    %485 = arith.andi %482, %484 : vector<4x8x1xi1>
    %cst_227 = arith.constant 0.000000e+00 : f32
    %486 = vector.shape_cast %485 : vector<4x8x1xi1> to vector<4x8x1xi1>
    %487 = vector.broadcast %486 : vector<4x8x1xi1> to vector<4x8x8xi1>
    %488 = vector.broadcast %cst_227 : f32 to vector<4x8x8xf32>
    %489 = arith.select %487, %466, %488 : vector<4x8x8xi1>, vector<4x8x8xf32>
    %490 = vector.shape_cast %489 : vector<4x8x8xf32> to vector<32x8xf32>
    %c0_228 = arith.constant 0 : index
    %c32_229 = arith.constant 32 : index
    %491 = vector.load %arg8[%c0_228, %c32_229] : memref<32x72xf32, #tpu.memory_space<vmem>>, vector<32x8xf32>
    tpu.vector_store %arg8[%c0_228, %c32_229], %490 {strides = array<i32>} : memref<32x72xf32, #tpu.memory_space<vmem>>, vector<32x8xf32>,
    %c0_230 = arith.constant 0 : index
    %c5_231 = arith.constant 5 : index
    %c2_232 = arith.constant 2 : index
    %c0_233 = arith.constant 0 : index
    %492 = vector.load %arg1[%c0_230, %c5_231, %c2_232, %c0_233] : memref<1x10x10x8xf32, #tpu.memory_space<vmem>>, vector<1x4x8x8xf32>
    %493 = vector.shape_cast %492 : vector<1x4x8x8xf32> to vector<4x8x8xf32>
    %494 = vector.broadcast %3 : vector<1x1x8xf32> to vector<4x8x8xf32>
    %495 = arith.mulf %493, %494 : vector<4x8x8xf32>
    %496 = vector.broadcast %5 : vector<1x1x8xf32> to vector<4x8x8xf32>
    %497 = arith.addf %495, %496 : vector<4x8x8xf32>
    %cst_234 = arith.constant 0.000000e+00 : f32
    %498 = vector.broadcast %cst_234 : f32 to vector<4x8x8xf32>
    %499 = arith.maximumf %497, %498 : vector<4x8x8xf32>
    %c1_i32_235 = arith.constant 1 : i32
    %500 = vector.broadcast %c1_i32_235 : i32 to vector<4x8x1xi32>
    %501 = arith.muli %500, %325 : vector<4x8x1xi32>
    %c1_i32_236 = arith.constant 1 : i32
    %502 = vector.broadcast %c1_i32_236 : i32 to vector<4x8x1xi32>
    %503 = arith.addi %501, %502 : vector<4x8x1xi32>
    %c1_i32_237 = arith.constant 1 : i32
    %504 = vector.broadcast %c1_i32_237 : i32 to vector<4x8x1xi32>
    %505 = arith.muli %504, %326 : vector<4x8x1xi32>
    %c2_i32_238 = arith.constant 2 : i32
    %506 = vector.broadcast %c2_i32_238 : i32 to vector<4x8x1xi32>
    %507 = arith.addi %505, %506 : vector<4x8x1xi32>
    %c1_i32_239 = arith.constant 1 : i32
    %508 = vector.broadcast %c1_i32_239 : i32 to vector<4x8x1xi32>
    %509 = arith.cmpi sge, %503, %508 : vector<4x8x1xi32>
    %c8_i32_240 = arith.constant 8 : i32
    %510 = vector.broadcast %c8_i32_240 : i32 to vector<4x8x1xi32>
    %511 = arith.cmpi sle, %503, %510 : vector<4x8x1xi32>
    %512 = arith.andi %509, %511 : vector<4x8x1xi1>
    %c1_i32_241 = arith.constant 1 : i32
    %513 = vector.broadcast %c1_i32_241 : i32 to vector<4x8x1xi32>
    %514 = arith.cmpi sge, %507, %513 : vector<4x8x1xi32>
    %515 = arith.andi %512, %514 : vector<4x8x1xi1>
    %c8_i32_242 = arith.constant 8 : i32
    %516 = vector.broadcast %c8_i32_242 : i32 to vector<4x8x1xi32>
    %517 = arith.cmpi sle, %507, %516 : vector<4x8x1xi32>
    %518 = arith.andi %515, %517 : vector<4x8x1xi1>
    %cst_243 = arith.constant 0.000000e+00 : f32
    %519 = vector.shape_cast %518 : vector<4x8x1xi1> to vector<4x8x1xi1>
    %520 = vector.broadcast %519 : vector<4x8x1xi1> to vector<4x8x8xi1>
    %521 = vector.broadcast %cst_243 : f32 to vector<4x8x8xf32>
    %522 = arith.select %520, %499, %521 : vector<4x8x8xi1>, vector<4x8x8xf32>
    %523 = vector.shape_cast %522 : vector<4x8x8xf32> to vector<32x8xf32>
    %c0_244 = arith.constant 0 : index
    %c40_245 = arith.constant 40 : index
    %524 = vector.load %arg8[%c0_244, %c40_245] : memref<32x72xf32, #tpu.memory_space<vmem>>, vector<32x8xf32>
    tpu.vector_store %arg8[%c0_244, %c40_245], %523 {strides = array<i32>} : memref<32x72xf32, #tpu.memory_space<vmem>>, vector<32x8xf32>,
    %c0_246 = arith.constant 0 : index
    %c6 = arith.constant 6 : index
    %c0_247 = arith.constant 0 : index
    %c0_248 = arith.constant 0 : index
    %525 = vector.load %arg1[%c0_246, %c6, %c0_247, %c0_248] : memref<1x10x10x8xf32, #tpu.memory_space<vmem>>, vector<1x4x8x8xf32>
    %526 = vector.shape_cast %525 : vector<1x4x8x8xf32> to vector<4x8x8xf32>
    %527 = vector.broadcast %3 : vector<1x1x8xf32> to vector<4x8x8xf32>
    %528 = arith.mulf %526, %527 : vector<4x8x8xf32>
    %529 = vector.broadcast %5 : vector<1x1x8xf32> to vector<4x8x8xf32>
    %530 = arith.addf %528, %529 : vector<4x8x8xf32>
    %cst_249 = arith.constant 0.000000e+00 : f32
    %531 = vector.broadcast %cst_249 : f32 to vector<4x8x8xf32>
    %532 = arith.maximumf %530, %531 : vector<4x8x8xf32>
    %c1_i32_250 = arith.constant 1 : i32
    %533 = vector.broadcast %c1_i32_250 : i32 to vector<4x8x1xi32>
    %534 = arith.muli %533, %325 : vector<4x8x1xi32>
    %c2_i32_251 = arith.constant 2 : i32
    %535 = vector.broadcast %c2_i32_251 : i32 to vector<4x8x1xi32>
    %536 = arith.addi %534, %535 : vector<4x8x1xi32>
    %c1_i32_252 = arith.constant 1 : i32
    %537 = vector.broadcast %c1_i32_252 : i32 to vector<4x8x1xi32>
    %538 = arith.muli %537, %326 : vector<4x8x1xi32>
    %c0_i32_253 = arith.constant 0 : i32
    %539 = vector.broadcast %c0_i32_253 : i32 to vector<4x8x1xi32>
    %540 = arith.addi %538, %539 : vector<4x8x1xi32>
    %c1_i32_254 = arith.constant 1 : i32
    %541 = vector.broadcast %c1_i32_254 : i32 to vector<4x8x1xi32>
    %542 = arith.cmpi sge, %536, %541 : vector<4x8x1xi32>
    %c8_i32_255 = arith.constant 8 : i32
    %543 = vector.broadcast %c8_i32_255 : i32 to vector<4x8x1xi32>
    %544 = arith.cmpi sle, %536, %543 : vector<4x8x1xi32>
    %545 = arith.andi %542, %544 : vector<4x8x1xi1>
    %c1_i32_256 = arith.constant 1 : i32
    %546 = vector.broadcast %c1_i32_256 : i32 to vector<4x8x1xi32>
    %547 = arith.cmpi sge, %540, %546 : vector<4x8x1xi32>
    %548 = arith.andi %545, %547 : vector<4x8x1xi1>
    %c8_i32_257 = arith.constant 8 : i32
    %549 = vector.broadcast %c8_i32_257 : i32 to vector<4x8x1xi32>
    %550 = arith.cmpi sle, %540, %549 : vector<4x8x1xi32>
    %551 = arith.andi %548, %550 : vector<4x8x1xi1>
    %cst_258 = arith.constant 0.000000e+00 : f32
    %552 = vector.shape_cast %551 : vector<4x8x1xi1> to vector<4x8x1xi1>
    %553 = vector.broadcast %552 : vector<4x8x1xi1> to vector<4x8x8xi1>
    %554 = vector.broadcast %cst_258 : f32 to vector<4x8x8xf32>
    %555 = arith.select %553, %532, %554 : vector<4x8x8xi1>, vector<4x8x8xf32>
    %556 = vector.shape_cast %555 : vector<4x8x8xf32> to vector<32x8xf32>
    %c0_259 = arith.constant 0 : index
    %c48_260 = arith.constant 48 : index
    %557 = vector.load %arg8[%c0_259, %c48_260] : memref<32x72xf32, #tpu.memory_space<vmem>>, vector<32x8xf32>
    tpu.vector_store %arg8[%c0_259, %c48_260], %556 {strides = array<i32>} : memref<32x72xf32, #tpu.memory_space<vmem>>, vector<32x8xf32>,
    %c0_261 = arith.constant 0 : index
    %c6_262 = arith.constant 6 : index
    %c1_263 = arith.constant 1 : index
    %c0_264 = arith.constant 0 : index
    %558 = vector.load %arg1[%c0_261, %c6_262, %c1_263, %c0_264] : memref<1x10x10x8xf32, #tpu.memory_space<vmem>>, vector<1x4x8x8xf32>
    %559 = vector.shape_cast %558 : vector<1x4x8x8xf32> to vector<4x8x8xf32>
    %560 = vector.broadcast %3 : vector<1x1x8xf32> to vector<4x8x8xf32>
    %561 = arith.mulf %559, %560 : vector<4x8x8xf32>
    %562 = vector.broadcast %5 : vector<1x1x8xf32> to vector<4x8x8xf32>
    %563 = arith.addf %561, %562 : vector<4x8x8xf32>
    %cst_265 = arith.constant 0.000000e+00 : f32
    %564 = vector.broadcast %cst_265 : f32 to vector<4x8x8xf32>
    %565 = arith.maximumf %563, %564 : vector<4x8x8xf32>
    %c1_i32_266 = arith.constant 1 : i32
    %566 = vector.broadcast %c1_i32_266 : i32 to vector<4x8x1xi32>
    %567 = arith.muli %566, %325 : vector<4x8x1xi32>
    %c2_i32_267 = arith.constant 2 : i32
    %568 = vector.broadcast %c2_i32_267 : i32 to vector<4x8x1xi32>
    %569 = arith.addi %567, %568 : vector<4x8x1xi32>
    %c1_i32_268 = arith.constant 1 : i32
    %570 = vector.broadcast %c1_i32_268 : i32 to vector<4x8x1xi32>
    %571 = arith.muli %570, %326 : vector<4x8x1xi32>
    %c1_i32_269 = arith.constant 1 : i32
    %572 = vector.broadcast %c1_i32_269 : i32 to vector<4x8x1xi32>
    %573 = arith.addi %571, %572 : vector<4x8x1xi32>
    %c1_i32_270 = arith.constant 1 : i32
    %574 = vector.broadcast %c1_i32_270 : i32 to vector<4x8x1xi32>
    %575 = arith.cmpi sge, %569, %574 : vector<4x8x1xi32>
    %c8_i32_271 = arith.constant 8 : i32
    %576 = vector.broadcast %c8_i32_271 : i32 to vector<4x8x1xi32>
    %577 = arith.cmpi sle, %569, %576 : vector<4x8x1xi32>
    %578 = arith.andi %575, %577 : vector<4x8x1xi1>
    %c1_i32_272 = arith.constant 1 : i32
    %579 = vector.broadcast %c1_i32_272 : i32 to vector<4x8x1xi32>
    %580 = arith.cmpi sge, %573, %579 : vector<4x8x1xi32>
    %581 = arith.andi %578, %580 : vector<4x8x1xi1>
    %c8_i32_273 = arith.constant 8 : i32
    %582 = vector.broadcast %c8_i32_273 : i32 to vector<4x8x1xi32>
    %583 = arith.cmpi sle, %573, %582 : vector<4x8x1xi32>
    %584 = arith.andi %581, %583 : vector<4x8x1xi1>
    %cst_274 = arith.constant 0.000000e+00 : f32
    %585 = vector.shape_cast %584 : vector<4x8x1xi1> to vector<4x8x1xi1>
    %586 = vector.broadcast %585 : vector<4x8x1xi1> to vector<4x8x8xi1>
    %587 = vector.broadcast %cst_274 : f32 to vector<4x8x8xf32>
    %588 = arith.select %586, %565, %587 : vector<4x8x8xi1>, vector<4x8x8xf32>
    %589 = vector.shape_cast %588 : vector<4x8x8xf32> to vector<32x8xf32>
    %c0_275 = arith.constant 0 : index
    %c56_276 = arith.constant 56 : index
    %590 = vector.load %arg8[%c0_275, %c56_276] : memref<32x72xf32, #tpu.memory_space<vmem>>, vector<32x8xf32>
    tpu.vector_store %arg8[%c0_275, %c56_276], %589 {strides = array<i32>} : memref<32x72xf32, #tpu.memory_space<vmem>>, vector<32x8xf32>,
    %c0_277 = arith.constant 0 : index
    %c6_278 = arith.constant 6 : index
    %c2_279 = arith.constant 2 : index
    %c0_280 = arith.constant 0 : index
    %591 = vector.load %arg1[%c0_277, %c6_278, %c2_279, %c0_280] : memref<1x10x10x8xf32, #tpu.memory_space<vmem>>, vector<1x4x8x8xf32>
    %592 = vector.shape_cast %591 : vector<1x4x8x8xf32> to vector<4x8x8xf32>
    %593 = vector.broadcast %3 : vector<1x1x8xf32> to vector<4x8x8xf32>
    %594 = arith.mulf %592, %593 : vector<4x8x8xf32>
    %595 = vector.broadcast %5 : vector<1x1x8xf32> to vector<4x8x8xf32>
    %596 = arith.addf %594, %595 : vector<4x8x8xf32>
    %cst_281 = arith.constant 0.000000e+00 : f32
    %597 = vector.broadcast %cst_281 : f32 to vector<4x8x8xf32>
    %598 = arith.maximumf %596, %597 : vector<4x8x8xf32>
    %c1_i32_282 = arith.constant 1 : i32
    %599 = vector.broadcast %c1_i32_282 : i32 to vector<4x8x1xi32>
    %600 = arith.muli %599, %325 : vector<4x8x1xi32>
    %c2_i32_283 = arith.constant 2 : i32
    %601 = vector.broadcast %c2_i32_283 : i32 to vector<4x8x1xi32>
    %602 = arith.addi %600, %601 : vector<4x8x1xi32>
    %c1_i32_284 = arith.constant 1 : i32
    %603 = vector.broadcast %c1_i32_284 : i32 to vector<4x8x1xi32>
    %604 = arith.muli %603, %326 : vector<4x8x1xi32>
    %c2_i32_285 = arith.constant 2 : i32
    %605 = vector.broadcast %c2_i32_285 : i32 to vector<4x8x1xi32>
    %606 = arith.addi %604, %605 : vector<4x8x1xi32>
    %c1_i32_286 = arith.constant 1 : i32
    %607 = vector.broadcast %c1_i32_286 : i32 to vector<4x8x1xi32>
    %608 = arith.cmpi sge, %602, %607 : vector<4x8x1xi32>
    %c8_i32_287 = arith.constant 8 : i32
    %609 = vector.broadcast %c8_i32_287 : i32 to vector<4x8x1xi32>
    %610 = arith.cmpi sle, %602, %609 : vector<4x8x1xi32>
    %611 = arith.andi %608, %610 : vector<4x8x1xi1>
    %c1_i32_288 = arith.constant 1 : i32
    %612 = vector.broadcast %c1_i32_288 : i32 to vector<4x8x1xi32>
    %613 = arith.cmpi sge, %606, %612 : vector<4x8x1xi32>
    %614 = arith.andi %611, %613 : vector<4x8x1xi1>
    %c8_i32_289 = arith.constant 8 : i32
    %615 = vector.broadcast %c8_i32_289 : i32 to vector<4x8x1xi32>
    %616 = arith.cmpi sle, %606, %615 : vector<4x8x1xi32>
    %617 = arith.andi %614, %616 : vector<4x8x1xi1>
    %cst_290 = arith.constant 0.000000e+00 : f32
    %618 = vector.shape_cast %617 : vector<4x8x1xi1> to vector<4x8x1xi1>
    %619 = vector.broadcast %618 : vector<4x8x1xi1> to vector<4x8x8xi1>
    %620 = vector.broadcast %cst_290 : f32 to vector<4x8x8xf32>
    %621 = arith.select %619, %598, %620 : vector<4x8x8xi1>, vector<4x8x8xf32>
    %622 = vector.shape_cast %621 : vector<4x8x8xf32> to vector<32x8xf32>
    %c0_291 = arith.constant 0 : index
    %c64_292 = arith.constant 64 : index
    %623 = vector.load %arg8[%c0_291, %c64_292] : memref<32x72xf32, #tpu.memory_space<vmem>>, vector<32x8xf32>
    tpu.vector_store %arg8[%c0_291, %c64_292], %622 {strides = array<i32>} : memref<32x72xf32, #tpu.memory_space<vmem>>, vector<32x8xf32>,
    %c0_293 = arith.constant 0 : index
    %c0_294 = arith.constant 0 : index
    %624 = vector.load %arg8[%c0_293, %c0_294] : memref<32x72xf32, #tpu.memory_space<vmem>>, vector<32x72xf32>
    %625 = arith.truncf %624 : vector<32x72xf32> to vector<32x72xbf16>
    %c0_295 = arith.constant 0 : index
    %c0_296 = arith.constant 0 : index
    %626 = vector.load %arg6[%c0_295, %c0_296] : memref<72x8xbf16, #tpu.memory_space<vmem>>, vector<72x8xbf16>
    %cst_297 = arith.constant dense<0.000000e+00> : vector<32x8xf32>
    %627 = tpu.matmul %625, %626, %cst_297 {dimension_numbers = #tpu.dot_dimension_numbers<[1], [0], [0], [1], [0, 0, 1, 1], [], []>} : vector<32x72xbf16>, vector<72x8xbf16>, vector<32x8xf32> -> vector<32x8xf32>
    %c0_298 = arith.constant 0 : index
    %c0_299 = arith.constant 0 : index
    %628 = vector.load %arg4[%c0_298, %c0_299] : memref<1x8xf32, #tpu.memory_space<vmem>>, vector<1x8xf32>
    %629 = vector.broadcast %628 : vector<1x8xf32> to vector<32x8xf32>
    %630 = arith.mulf %627, %629 : vector<32x8xf32>
    %c0_300 = arith.constant 0 : index
    %c0_301 = arith.constant 0 : index
    %631 = vector.load %arg5[%c0_300, %c0_301] : memref<1x8xf32, #tpu.memory_space<vmem>>, vector<1x8xf32>
    %632 = vector.broadcast %631 : vector<1x8xf32> to vector<32x8xf32>
    %633 = arith.addf %630, %632 : vector<32x8xf32>
    %cst_302 = arith.constant 0.000000e+00 : f32
    %634 = vector.broadcast %cst_302 : f32 to vector<32x8xf32>
    %635 = arith.maximumf %633, %634 : vector<32x8xf32>
    %636 = vector.shape_cast %635 : vector<32x8xf32> to vector<4x8x8xf32>
    %c0_303 = arith.constant 0 : index
    %c5_304 = arith.constant 5 : index
    %c1_305 = arith.constant 1 : index
    %c0_306 = arith.constant 0 : index
    %637 = vector.load %arg7[%c0_303, %c5_304, %c1_305, %c0_306] : memref<1x10x10x8xf32, #tpu.memory_space<vmem>>, vector<1x4x8x8xf32>
    %638 = vector.shape_cast %637 : vector<1x4x8x8xf32> to vector<4x8x8xf32>
    %639 = vector.shape_cast %636 : vector<4x8x8xf32> to vector<1x4x8x8xf32>
    tpu.vector_store %arg7[%c0_303, %c5_304, %c1_305, %c0_306], %639 {strides = array<i32>} : memref<1x10x10x8xf32, #tpu.memory_space<vmem>>, vector<1x4x8x8xf32>,
    return
  }
  func.func @transform_0(%arg0: i32) -> (i32, i32, i32, i32) {
    %c0_i32 = arith.constant 0 : i32
    %c0_i32_0 = arith.constant 0 : i32
    %c0_i32_1 = arith.constant 0 : i32
    %c0_i32_2 = arith.constant 0 : i32
    return %arg0, %c0_i32, %c0_i32_0, %c0_i32_1 : i32, i32, i32, i32
  }
  func.func @transform_1(%arg0: i32) -> (i32, i32) {
    %c0_i32 = arith.constant 0 : i32
    %c0_i32_0 = arith.constant 0 : i32
    %c0_i32_1 = arith.constant 0 : i32
    return %c0_i32, %c0_i32_0 : i32, i32
  }
  func.func @transform_2(%arg0: i32) -> (i32, i32) {
    %c0_i32 = arith.constant 0 : i32
    %c0_i32_0 = arith.constant 0 : i32
    %c0_i32_1 = arith.constant 0 : i32
    return %c0_i32, %c0_i32_0 : i32, i32
  }
  func.func @transform_3(%arg0: i32) -> (i32, i32) {
    %c0_i32 = arith.constant 0 : i32
    %c0_i32_0 = arith.constant 0 : i32
    %c0_i32_1 = arith.constant 0 : i32
    return %c0_i32, %c0_i32_0 : i32, i32
  }
  func.func @transform_4(%arg0: i32) -> (i32, i32) {
    %c0_i32 = arith.constant 0 : i32
    %c0_i32_0 = arith.constant 0 : i32
    %c0_i32_1 = arith.constant 0 : i32
    return %c0_i32, %c0_i32_0 : i32, i32
  }
  func.func @transform_5(%arg0: i32) -> (i32, i32) {
    %c0_i32 = arith.constant 0 : i32
    %c0_i32_0 = arith.constant 0 : i32
    %c0_i32_1 = arith.constant 0 : i32
    return %c0_i32, %c0_i32_0 : i32, i32
  }
  func.func @transform_6(%arg0: i32) -> (i32, i32, i32, i32) {
    %c0_i32 = arith.constant 0 : i32
    %c0_i32_0 = arith.constant 0 : i32
    %c0_i32_1 = arith.constant 0 : i32
    %c0_i32_2 = arith.constant 0 : i32
    return %arg0, %c0_i32, %c0_i32_0, %c0_i32_1 : i32, i32, i32, i32
  }
}

</mosaic_0001>

<llo_original>
// kernel: network_block_forward.5
$region0: #{network_block_forward.5}
  #allocation0 [shape = 'u32[]', space=smem, size = 0x4, offset = 0x4, fixed_abs, tag = 'smem constant byte address 0x4 - core index']
  #allocation1 [shape = 'u32[72,128]{1,0:T(1,128)}', space=vmem, size = 0x9000, scoped, tag = 'internal scratch']
  #allocation2 [shape = 'f32[32,72]{1,0:T(8,128)}', space=vmem, size = 0x4000, scoped, tag = 'scratch operand']
  %s0 = inlined_call_operand.vmem [shape: f32[2,10,10,8], index: 0, kind: input, shape index: {}]
  %s1 = inlined_call_operand.vmem [shape: bf16[72,8], index: 1, kind: input, shape index: {}]
  %s2 = inlined_call_operand.vmem [shape: f32[2,64,8], index: 2, kind: input, shape index: {}]
  %s3 = inlined_call_operand.vmem [shape: f32[2,64,8], index: 3, kind: output, shape index: {}]
  %s4 = sld [smem:[#allocation0]]
  $region45: #{network_block_forward.5} parent=0
    _
  %s6 = ssub.s32 1, %s4
  %s7 = scalar_select 0, %s6, %s4
  loop: start=0, step=1, limit=4
  $region2: #{network_block_forward.5} parent=0 // loop_pre_header
    _
  $region3: #{network_block_forward.5} parent=0 // loop_header
    %s9 = sphi 0, %s13
    %p10 = scmp.ge.s32.totalorder %s9, 4
    %s19 = sphi 0, %s21
    %s22 = sphi 0, %s19
    %s23 = sphi 0, %s22
    %s39 = sphi 0, %s23
    %s43 = sphi 0, %s43
    %s45 = sphi 0, %s43
    %s46 = sphi 0, %s45
    %s60 = sphi 0, %s46
    %s66 = sphi 0, %s68
    %s69 = sphi 0, %s66
    %s70 = sphi 0, %s69
    %s86 = sphi 0, %s70
    %s92 = sphi 0, %s94
    %s95 = sphi 0, %s92
    %s96 = sphi 0, %s95
    %s112 = sphi 0, %s96
  $region4: #{network_block_forward.5} parent=0 // loop_header_branch
    %12 = sbr.rel (%p10) target = $region8
  $region5: #{network_block_forward.5} parent=0 // loop_body
    %s14 = ssub.s32 %s9, 1
    %s15 = ssub.s32 %s9, 2
    %s16 = sadd.s32 %s9, 1
    %s17 = ssub.s32 %s9, %s16
    %p18 = scmp.eq.s32.totalorder %s17, 0
    %s20 = sadd.s32 %s19, 1
    %s21 = scalar_select %p18, %s19, %s20
    %p24 = pneg %p18
    %p25 = scmp.eq.s32.totalorder %s9, 1
    %p26 = por %p24, %p25
    %p27 = scmp.ne.s32.totalorder %s19, %s22
    %p28 = scmp.eq.s32.totalorder %s9, 0
    %p29 = por %p27, %p28
    %p30 = scmp.ne.s32.totalorder %s19, %s22
    %p31 = scmp.eq.s32.totalorder %s14, 1
    %p32 = por %p30, %p31
    %p33 = scmp.ne.s32.totalorder %s22, %s23
    %p34 = scmp.eq.s32.totalorder %s14, 0
    %p35 = por %p33, %p34
    %p36 = scmp.ne.s32.totalorder %s22, %s23
    %p37 = scmp.eq.s32.totalorder %s15, 1
    %p38 = por %p36, %p37
    %p40 = scmp.ne.s32.totalorder %s23, %s39
    %p41 = scmp.eq.s32.totalorder %s15, 0
    %p42 = por %p40, %p41
    %s44 = sadd.s32 %s43, 1
    %p47 = scmp.eq.s32.totalorder %s9, 1
    %p48 = scmp.ne.s32.totalorder %s43, %s45
    %p49 = scmp.eq.s32.totalorder %s9, 0
    %p50 = por %p48, %p49
    %p51 = scmp.ne.s32.totalorder %s43, %s45
    %p52 = scmp.eq.s32.totalorder %s14, 1
    %p53 = por %p51, %p52
    %p54 = scmp.ne.s32.totalorder %s45, %s46
    %p55 = scmp.eq.s32.totalorder %s14, 0
    %p56 = por %p54, %p55
    %p57 = scmp.ne.s32.totalorder %s45, %s46
    %p58 = scmp.eq.s32.totalorder %s15, 1
    %p59 = por %p57, %p58
    %p61 = scmp.ne.s32.totalorder %s46, %s60
    %p62 = scmp.eq.s32.totalorder %s15, 0
    %p63 = por %p61, %p62
    %s64 = ssub.s32 %s9, %s16
    %p65 = scmp.eq.s32.totalorder %s64, 0
    %s67 = sadd.s32 %s66, 1
    %s68 = scalar_select %p65, %s66, %s67
    %p71 = pneg %p65
    %p72 = scmp.eq.s32.totalorder %s9, 1
    %p73 = por %p71, %p72
    %p74 = scmp.ne.s32.totalorder %s66, %s69
    %p75 = scmp.eq.s32.totalorder %s9, 0
    %p76 = por %p74, %p75
    %p77 = scmp.ne.s32.totalorder %s66, %s69
    %p78 = scmp.eq.s32.totalorder %s14, 1
    %p79 = por %p77, %p78
    %p80 = scmp.ne.s32.totalorder %s69, %s70
    %p81 = scmp.eq.s32.totalorder %s14, 0
    %p82 = por %p80, %p81
    %p83 = scmp.ne.s32.totalorder %s69, %s70
    %p84 = scmp.eq.s32.totalorder %s15, 1
    %p85 = por %p83, %p84
    %p87 = scmp.ne.s32.totalorder %s70, %s86
    %p88 = scmp.eq.s32.totalorder %s15, 0
    %p89 = por %p87, %p88
    %s90 = ssub.s32 %s9, %s16
    %p91 = scmp.eq.s32.totalorder %s90, 0
    %s93 = sadd.s32 %s92, 1
    %s94 = scalar_select %p91, %s92, %s93
    %p97 = pneg %p91
    %p98 = scmp.eq.s32.totalorder %s9, 1
    %p99 = por %p97, %p98
    %p100 = scmp.ne.s32.totalorder %s92, %s95
    %p101 = scmp.eq.s32.totalorder %s9, 0
    %p102 = por %p100, %p101
    %p103 = scmp.ne.s32.totalorder %s92, %s95
    %p104 = scmp.eq.s32.totalorder %s14, 1
    %p105 = por %p103, %p104
    %p106 = scmp.ne.s32.totalorder %s95, %s96
    %p107 = scmp.eq.s32.totalorder %s14, 0
    %p108 = por %p106, %p107
    %p109 = scmp.ne.s32.totalorder %s95, %s96
    %p110 = scmp.eq.s32.totalorder %s15, 1
    %p111 = por %p109, %p110
    %p113 = scmp.ne.s32.totalorder %s96, %s112
    %p114 = scmp.eq.s32.totalorder %s15, 0
    %p115 = por %p113, %p114
    %p116 = scmp.le.s32.totalorder 1, %s9
    %p117 = scmp.lt.s32.totalorder %s9, 3
    %p118 = pnand %p116, %p117
    %p119 = pneg %p118
    // Predicated region
    $region9: #{network_block_forward.5} parent=5 // pred_check
      _
    $region10: #{network_block_forward.5} parent=5 // pred_check_branch
      %121 = sbr.rel (%p118) target = $region12
    $region11: #{network_block_forward.5} parent=5 // pred_region
      %s122 = ssub.s32 %s9, 1
      // Predicated region
      $region13: #{network_block_forward.5} parent=11 // pred_check
        %p123 = pneg %p56
      $region14: #{network_block_forward.5} parent=11 // pred_check_branch
        %125 = sbr.rel (%p123) target = $region16
      $region15: #{network_block_forward.5} parent=11 // pred_region
        _
      $region16: #{network_block_forward.5} parent=11 // pred_fallthru
        _
    $region12: #{network_block_forward.5} parent=5 // pred_fallthru
      _
    %p126 = scmp.lt.s32.totalorder %s9, 2
    // Predicated region
    $region17: #{network_block_forward.5} parent=5 // pred_check
      %p127 = pneg %p126
    $region18: #{network_block_forward.5} parent=5 // pred_check_branch
      %129 = sbr.rel (%p127) target = $region20
    $region19: #{network_block_forward.5} parent=5 // pred_region
      // Predicated region
      $region21: #{network_block_forward.5} parent=19 // pred_check
        %p130 = pneg %p29
      $region22: #{network_block_forward.5} parent=19 // pred_check_branch
        %132 = sbr.rel (%p130) target = $region24
      $region23: #{network_block_forward.5} parent=19 // pred_region
        %p133 = scmp.lt.s32.totalorder %s9, 1
        %s134 = scalar_select %p133, %s9, 1
        %s135 = smul.addr %s134, 20
        %s136 = smul.addr %s135, 8
        %s137 = scalar_lea.vmem %s0, %s136
      $region24: #{network_block_forward.5} parent=19 // pred_fallthru
        _
      // Predicated region
      $region25: #{network_block_forward.5} parent=19 // pred_check
        %p138 = pneg %p76
      $region26: #{network_block_forward.5} parent=19 // pred_check_branch
        %140 = sbr.rel (%p138) target = $region28
      $region27: #{network_block_forward.5} parent=19 // pred_region
        %p141 = scmp.lt.s32.totalorder %s9, 1
        %s142 = scalar_select %p141, %s9, 1
        %s143 = smul.addr %s142, 8
        %s144 = smul.addr %s143, 8
        %s145 = scalar_lea.vmem %s2, %s144
      $region28: #{network_block_forward.5} parent=19 // pred_fallthru
        _
    $region20: #{network_block_forward.5} parent=5 // pred_fallthru
      _
    %p146 = scmp.le.s32.totalorder 1, %s9
    %p147 = scmp.lt.s32.totalorder %s9, 3
    %p148 = pnand %p146, %p147
    %p149 = pneg %p148
    // Predicated region
    $region29: #{network_block_forward.5} parent=5 // pred_check
      _
    $region30: #{network_block_forward.5} parent=5 // pred_check_branch
      %151 = sbr.rel (%p148) target = $region32
    $region31: #{network_block_forward.5} parent=5 // pred_region
      %s152 = ssub.s32 %s9, 1
      %p153 = scmp.lt.s32.totalorder %s14, 1
      %s154 = scalar_select %p153, %s14, 1
      %s155 = smul.addr %s154, 20
      %s156 = smul.addr %s155, 8
      %s157 = scalar_lea.vmem %s0, %s156
      %p158 = pneg %p35
      %p159 = pneg %p32
      %p160 = pneg %p56
      %p161 = pneg %p53
      %p162 = scmp.lt.s32.totalorder %s14, 1
      %s163 = scalar_select %p162, %s14, 1
      %s164 = smul.addr %s163, 8
      %s165 = smul.addr %s164, 8
      %s166 = scalar_lea.vmem %s2, %s165
      %p167 = pneg %p82
      %p168 = pneg %p79
      %p169 = pneg %p108
      %p170 = pneg %p105
      %p171 = scmp.lt.s32.totalorder %s14, 1
      %s172 = scalar_select %p171, %s14, 1
      %s173 = smul.addr %s172, 8
      %s174 = smul.addr %s173, 8
      %s175 = scalar_lea.vmem %s3, %s174
      %p176 = scmp.lt.s32.totalorder %s14, 1
      %s177 = scalar_select %p176, %s14, 1
      %s178 = smul.addr %s177, 20
      %s179 = smul.addr %s178, 8
      %s180 = scalar_lea.vmem %s0, %s179
      %p181 = scmp.lt.s32.totalorder %s14, 1
      %s182 = scalar_select %p181, %s14, 1
      %s183 = smul.addr %s182, 8
      %s184 = smul.addr %s183, 8
      %s185 = scalar_lea.vmem %s2, %s184
      %p186 = scmp.lt.s32.totalorder %s14, 1
      %s187 = scalar_select %p186, %s14, 1
      %s188 = smul.addr %s187, 8
      %s189 = smul.addr %s188, 8
      %s190 = scalar_lea.vmem %s3, %s189
      %v192 = vld [vmem:[%s180] sm:$0xff]
      %v193 = vld [vmem:[%s180 + $0x10] sm:$0xff]
      %v194 = vld [vmem:[%s180 + $0x20] sm:$0xff]
      %v195 = vld [vmem:[%s180 + $0x30] sm:$0xff]
      %vm196 = vcmask 64512
      %197 = vst.msk [vmem:[#allocation2] sm:$0xff] %vm196, %v192
      %198 = vst.msk [vmem:[#allocation2 + $0x8] sm:$0xff] %vm196, %v193
      %199 = vst.msk [vmem:[#allocation2 + $0x10] sm:$0xff] %vm196, %v194
      %200 = vst.msk [vmem:[#allocation2 + $0x18] sm:$0xff] %vm196, %v195
      %v201 = vld [vmem:[%s180 + $0x1] sm:$0xff]
      %v202 = vld [vmem:[%s180 + $0x11] sm:$0xff]
      %v203 = vld [vmem:[%s180 + $0x21] sm:$0xff]
      %v204 = vld [vmem:[%s180 + $0x31] sm:$0xff]
      %209 = vrot.lane.b32.xlu0 %v201, 8
      %v210 = vpop.permute.xlu0 %209
      %211 = vrot.lane.b32.xlu0 %v202, 8
      %v212 = vpop.permute.xlu0 %211
      %213 = vrot.lane.b32.xlu0 %v203, 8
      %v214 = vpop.permute.xlu0 %213
      %215 = vrot.lane.b32.xlu0 %v204, 8
      %v216 = vpop.permute.xlu0 %215
      %vm221 = vcmask 130112
      %222 = vst.msk [vmem:[#allocation2] sm:$0xff] %vm221, %v210
      %223 = vst.msk [vmem:[#allocation2 + $0x8] sm:$0xff] %vm221, %v212
      %224 = vst.msk [vmem:[#allocation2 + $0x10] sm:$0xff] %vm221, %v214
      %225 = vst.msk [vmem:[#allocation2 + $0x18] sm:$0xff] %vm221, %v216
      %v226 = vld [vmem:[%s180 + $0x2] sm:$0xff]
      %v227 = vld [vmem:[%s180 + $0x12] sm:$0xff]
      %v228 = vld [vmem:[%s180 + $0x22] sm:$0xff]
      %v229 = vld [vmem:[%s180 + $0x32] sm:$0xff]
      %234 = vrot.lane.b32.xlu0 %v226, 16
      %v235 = vpop.permute.xlu0 %234
      %236 = vrot.lane.b32.xlu0 %v227, 16
      %v237 = vpop.permute.xlu0 %236
      %238 = vrot.lane.b32.xlu0 %v228, 16
      %v239 = vpop.permute.xlu0 %238
      %240 = vrot.lane.b32.xlu0 %v229, 16
      %v241 = vpop.permute.xlu0 %240
      %vm246 = vcmask 195712
      %247 = vst.msk [vmem:[#allocation2] sm:$0xff] %vm246, %v235
      %248 = vst.msk [vmem:[#allocation2 + $0x8] sm:$0xff] %vm246, %v237
      %249 = vst.msk [vmem:[#allocation2 + $0x10] sm:$0xff] %vm246, %v239
      %250 = vst.msk [vmem:[#allocation2 + $0x18] sm:$0xff] %vm246, %v241
      %s251 = scalar_lea.vmem %s180, 16
      %v252 = vld [vmem:[%s251] sm:$0xff]
      %v253 = vld [vmem:[%s251 + $0x10] sm:$0xff]
      %v254 = vld [vmem:[%s251 + $0x20] sm:$0xff]
      %v255 = vld [vmem:[%s251 + $0x30] sm:$0xff]
      %260 = vrot.lane.b32.xlu0 %v252, 24
      %v261 = vpop.permute.xlu0 %260
      %262 = vrot.lane.b32.xlu0 %v253, 24
      %v263 = vpop.permute.xlu0 %262
      %264 = vrot.lane.b32.xlu0 %v254, 24
      %v265 = vpop.permute.xlu0 %264
      %266 = vrot.lane.b32.xlu0 %v255, 24
      %v267 = vpop.permute.xlu0 %266
      %vm272 = vcmask 261312
      %273 = vst.msk [vmem:[#allocation2] sm:$0xff] %vm272, %v261
      %274 = vst.msk [vmem:[#allocation2 + $0x8] sm:$0xff] %vm272, %v263
      %275 = vst.msk [vmem:[#allocation2 + $0x10] sm:$0xff] %vm272, %v265
      %276 = vst.msk [vmem:[#allocation2 + $0x18] sm:$0xff] %vm272, %v267
      %v277 = vld [vmem:[%s251 + $0x1] sm:$0xff]
      %v278 = vld [vmem:[%s251 + $0x11] sm:$0xff]
      %v279 = vld [vmem:[%s251 + $0x21] sm:$0xff]
      %v280 = vld [vmem:[%s251 + $0x31] sm:$0xff]
      %285 = vrot.lane.b32.xlu0 %v277, 32
      %v286 = vpop.permute.xlu0 %285
      %287 = vrot.lane.b32.xlu0 %v278, 32
      %v288 = vpop.permute.xlu0 %287
      %289 = vrot.lane.b32.xlu0 %v279, 32
      %v290 = vpop.permute.xlu0 %289
      %291 = vrot.lane.b32.xlu0 %v280, 32
      %v292 = vpop.permute.xlu0 %291
      %vm297 = vcmask 326912
      %298 = vst.msk [vmem:[#allocation2] sm:$0xff] %vm297, %v286
      %299 = vst.msk [vmem:[#allocation2 + $0x8] sm:$0xff] %vm297, %v288
      %300 = vst.msk [vmem:[#allocation2 + $0x10] sm:$0xff] %vm297, %v290
      %301 = vst.msk [vmem:[#allocation2 + $0x18] sm:$0xff] %vm297, %v292
      %v302 = vld [vmem:[%s251 + $0x2] sm:$0xff]
      %v303 = vld [vmem:[%s251 + $0x12] sm:$0xff]
      %v304 = vld [vmem:[%s251 + $0x22] sm:$0xff]
      %v305 = vld [vmem:[%s251 + $0x32] sm:$0xff]
      %310 = vrot.lane.b32.xlu0 %v302, 40
      %v311 = vpop.permute.xlu0 %310
      %312 = vrot.lane.b32.xlu0 %v303, 40
      %v313 = vpop.permute.xlu0 %312
      %314 = vrot.lane.b32.xlu0 %v304, 40
      %v315 = vpop.permute.xlu0 %314
      %316 = vrot.lane.b32.xlu0 %v305, 40
      %v317 = vpop.permute.xlu0 %316
      %vm322 = vcmask 392512
      %323 = vst.msk [vmem:[#allocation2] sm:$0xff] %vm322, %v311
      %324 = vst.msk [vmem:[#allocation2 + $0x8] sm:$0xff] %vm322, %v313
      %325 = vst.msk [vmem:[#allocation2 + $0x10] sm:$0xff] %vm322, %v315
      %326 = vst.msk [vmem:[#allocation2 + $0x18] sm:$0xff] %vm322, %v317
      %s327 = scalar_lea.vmem %s180, 32
      %v328 = vld [vmem:[%s327] sm:$0xff]
      %v329 = vld [vmem:[%s327 + $0x10] sm:$0xff]
      %v330 = vld [vmem:[%s327 + $0x20] sm:$0xff]
      %v331 = vld [vmem:[%s327 + $0x30] sm:$0xff]
      %336 = vrot.lane.b32.xlu0 %v328, 48
      %v337 = vpop.permute.xlu0 %336
      %338 = vrot.lane.b32.xlu0 %v329, 48
      %v339 = vpop.permute.xlu0 %338
      %340 = vrot.lane.b32.xlu0 %v330, 48
      %v341 = vpop.permute.xlu0 %340
      %342 = vrot.lane.b32.xlu0 %v331, 48
      %v343 = vpop.permute.xlu0 %342
      %vm348 = vcmask 458112
      %349 = vst.msk [vmem:[#allocation2] sm:$0xff] %vm348, %v337
      %350 = vst.msk [vmem:[#allocation2 + $0x8] sm:$0xff] %vm348, %v339
      %351 = vst.msk [vmem:[#allocation2 + $0x10] sm:$0xff] %vm348, %v341
      %352 = vst.msk [vmem:[#allocation2 + $0x18] sm:$0xff] %vm348, %v343
      %v353 = vld [vmem:[%s327 + $0x1] sm:$0xff]
      %v354 = vld [vmem:[%s327 + $0x11] sm:$0xff]
      %v355 = vld [vmem:[%s327 + $0x21] sm:$0xff]
      %v356 = vld [vmem:[%s327 + $0x31] sm:$0xff]
      %361 = vrot.lane.b32.xlu0 %v353, 56
      %v362 = vpop.permute.xlu0 %361
      %363 = vrot.lane.b32.xlu0 %v354, 56
      %v364 = vpop.permute.xlu0 %363
      %365 = vrot.lane.b32.xlu0 %v355, 56
      %v366 = vpop.permute.xlu0 %365
      %367 = vrot.lane.b32.xlu0 %v356, 56
      %v368 = vpop.permute.xlu0 %367
      %vm373 = vcmask 523712
      %374 = vst.msk [vmem:[#allocation2] sm:$0xff] %vm373, %v362
      %375 = vst.msk [vmem:[#allocation2 + $0x8] sm:$0xff] %vm373, %v364
      %376 = vst.msk [vmem:[#allocation2 + $0x10] sm:$0xff] %vm373, %v366
      %377 = vst.msk [vmem:[#allocation2 + $0x18] sm:$0xff] %vm373, %v368
      %v378 = vld [vmem:[%s327 + $0x2] sm:$0xff]
      %v379 = vld [vmem:[%s327 + $0x12] sm:$0xff]
      %v380 = vld [vmem:[%s327 + $0x22] sm:$0xff]
      %v381 = vld [vmem:[%s327 + $0x32] sm:$0xff]
      %386 = vrot.lane.b32.xlu0 %v378, 64
      %v387 = vpop.permute.xlu0 %386
      %388 = vrot.lane.b32.xlu0 %v379, 64
      %v389 = vpop.permute.xlu0 %388
      %390 = vrot.lane.b32.xlu0 %v380, 64
      %v391 = vpop.permute.xlu0 %390
      %392 = vrot.lane.b32.xlu0 %v381, 64
      %v393 = vpop.permute.xlu0 %392
      %vm398 = vcmask 589312
      %399 = vst.msk [vmem:[#allocation2] sm:$0xff] %vm398, %v387
      %400 = vst.msk [vmem:[#allocation2 + $0x8] sm:$0xff] %vm398, %v389
      %401 = vst.msk [vmem:[#allocation2 + $0x10] sm:$0xff] %vm398, %v391
      %402 = vst.msk [vmem:[#allocation2 + $0x18] sm:$0xff] %vm398, %v393
      %v403 = vld [vmem:[#allocation2] sm:$0xff]
      %v404 = vld [vmem:[#allocation2 + $0x8] sm:$0xff]
      %v405 = vld [vmem:[#allocation2 + $0x10] sm:$0xff]
      %v406 = vld [vmem:[#allocation2 + $0x18] sm:$0xff]
      %v407 = vpack.c.bf16 %v404, %v403
      %v408 = vpack.c.bf16 %v406, %v405
      %v409 = vld [vmem:[%s1] sm:$0xf]
      %v410 = vld [vmem:[%s1 + $0x4] sm:$0xf]
      %v411 = vld [vmem:[%s1 + $0x8] sm:$0xf]
      %v412 = vld [vmem:[%s1 + $0xc] sm:$0xf]
      %v413 = vld [vmem:[%s1 + $0x10] sm:$0xf]
      %v414 = vld [vmem:[%s1 + $0x14] sm:$0xf]
      %v415 = vld [vmem:[%s1 + $0x18] sm:$0xf]
      %v416 = vld [vmem:[%s1 + $0x1c] sm:$0xf]
      %v417 = vld [vmem:[%s1 + $0x20] sm:$0xf]
      %v418 = vld [vmem:[%s185] sm:$0xff]
      %v419 = vld [vmem:[%s185 + $0x8] sm:$0xff]
      %v420 = vld [vmem:[%s185 + $0x10] sm:$0xff]
      %v421 = vld [vmem:[%s185 + $0x18] sm:$0xff]
      %v431 = vunpack.c.l.b16 %v409
      %v432 = vunpack.c.l.b16 %v410
      %v433 = vunpack.c.l.b16 %v411
      %v434 = vunpack.c.l.b16 %v412
      %v435 = vunpack.c.l.b16 %v413
      %v436 = vunpack.c.l.b16 %v414
      %v437 = vunpack.c.l.b16 %v415
      %v438 = vunpack.c.l.b16 %v416
      %v439 = vunpack.c.l.b16 %v417
      %v440 = vpack.c.b16 %v432, %v431
      %v441 = vpack.c.b16 %v434, %v433
      %v442 = vpack.c.b16 %v436, %v435
      %v443 = vpack.c.b16 %v438, %v437
      %v444 = vpack.c.b16 %v439, %v439
      %vm449 = vcmask 588800
      %v451 = vsel %vm449, %v407, 0
      %v454 = vsel %vm449, %v408, 0
      %vm456 = vcmask 1043456
      %v458 = vsel %vm456, %v444, 0
      %460 = vmatpush.bf16.msra.mxu0 0
      %461 = vmatpush.bf16.msra.mxu0 0
      %462 = vmatpush.bf16.msra.mxu0 0
      %463 = vmatpush.bf16.msra.mxu0 %v458
      %464 = vmatpush.bf16.msra.mxu0 %v443
      %465 = vmatpush.bf16.msra.mxu0 %v442
      %466 = vmatpush.bf16.msra.mxu0 %v441
      %467 = vmatpush.bf16.msra.mxu0 %v440
      %468 = vmatmul.bf16.gmra.mxu0 %v451
      %v469 = vpop.f32.mrf.mxu0
      %v470 = vadd.f32 %v418, %v469
      %v471 = vpop.f32.mrf.mxu0
      %v472 = vadd.f32 %v419, %v471
      %473 = vmatmul.bf16.gmra.mxu0 %v454
      %v474 = vpop.f32.mrf.mxu0
      %v475 = vadd.f32 %v420, %v474
      %v476 = vpop.f32.mrf.mxu0
      %v477 = vadd.f32 %v421, %v476
      %478 = vdwg.mxu0
      %479 = vst.msk [vmem:[%s190] sm:$0xff] %vm196, %v470
      %480 = vst.msk [vmem:[%s190 + $0x8] sm:$0xff] %vm196, %v472
      %481 = vst.msk [vmem:[%s190 + $0x10] sm:$0xff] %vm196, %v475
      %482 = vst.msk [vmem:[%s190 + $0x18] sm:$0xff] %vm196, %v477
      %s483 = scalar_lea.vmem %s180, 64
      %v484 = vld [vmem:[%s483] sm:$0xff]
      %v485 = vld [vmem:[%s483 + $0x10] sm:$0xff]
      %v486 = vld [vmem:[%s483 + $0x20] sm:$0xff]
      %v487 = vld [vmem:[%s483 + $0x30] sm:$0xff]
      %488 = vst.msk [vmem:[#allocation2] sm:$0xff] %vm196, %v484
      %489 = vst.msk [vmem:[#allocation2 + $0x8] sm:$0xff] %vm196, %v485
      %490 = vst.msk [vmem:[#allocation2 + $0x10] sm:$0xff] %vm196, %v486
      %491 = vst.msk [vmem:[#allocation2 + $0x18] sm:$0xff] %vm196, %v487
      %v492 = vld [vmem:[%s483 + $0x1] sm:$0xff]
      %v493 = vld [vmem:[%s483 + $0x11] sm:$0xff]
      %v494 = vld [vmem:[%s483 + $0x21] sm:$0xff]
      %v495 = vld [vmem:[%s483 + $0x31] sm:$0xff]
      %500 = vrot.lane.b32.xlu0 %v492, 8
      %v501 = vpop.permute.xlu0 %500
      %502 = vrot.lane.b32.xlu0 %v493, 8
      %v503 = vpop.permute.xlu0 %502
      %504 = vrot.lane.b32.xlu0 %v494, 8
      %v505 = vpop.permute.xlu0 %504
      %506 = vrot.lane.b32.xlu0 %v495, 8
      %v507 = vpop.permute.xlu0 %506
      %512 = vst.msk [vmem:[#allocation2] sm:$0xff] %vm221, %v501
      %513 = vst.msk [vmem:[#allocation2 + $0x8] sm:$0xff] %vm221, %v503
      %514 = vst.msk [vmem:[#allocation2 + $0x10] sm:$0xff] %vm221, %v505
      %515 = vst.msk [vmem:[#allocation2 + $0x18] sm:$0xff] %vm221, %v507
      %v516 = vld [vmem:[%s483 + $0x2] sm:$0xff]
      %v517 = vld [vmem:[%s483 + $0x12] sm:$0xff]
      %v518 = vld [vmem:[%s483 + $0x22] sm:$0xff]
      %v519 = vld [vmem:[%s483 + $0x32] sm:$0xff]
      %524 = vrot.lane.b32.xlu0 %v516, 16
      %v525 = vpop.permute.xlu0 %524
      %526 = vrot.lane.b32.xlu0 %v517, 16
      %v527 = vpop.permute.xlu0 %526
      %528 = vrot.lane.b32.xlu0 %v518, 16
      %v529 = vpop.permute.xlu0 %528
      %530 = vrot.lane.b32.xlu0 %v519, 16
      %v531 = vpop.permute.xlu0 %530
      %536 = vst.msk [vmem:[#allocation2] sm:$0xff] %vm246, %v525
      %537 = vst.msk [vmem:[#allocation2 + $0x8] sm:$0xff] %vm246, %v527
      %538 = vst.msk [vmem:[#allocation2 + $0x10] sm:$0xff] %vm246, %v529
      %539 = vst.msk [vmem:[#allocation2 + $0x18] sm:$0xff] %vm246, %v531
      %s540 = scalar_lea.vmem %s180, 80
      %v541 = vld [vmem:[%s540] sm:$0xff]
      %v542 = vld [vmem:[%s540 + $0x10] sm:$0xff]
      %v543 = vld [vmem:[%s540 + $0x20] sm:$0xff]
      %v544 = vld [vmem:[%s540 + $0x30] sm:$0xff]
      %549 = vrot.lane.b32.xlu0 %v541, 24
      %v550 = vpop.permute.xlu0 %549
      %551 = vrot.lane.b32.xlu0 %v542, 24
      %v552 = vpop.permute.xlu0 %551
      %553 = vrot.lane.b32.xlu0 %v543, 24
      %v554 = vpop.permute.xlu0 %553
      %555 = vrot.lane.b32.xlu0 %v544, 24
      %v556 = vpop.permute.xlu0 %555
      %561 = vst.msk [vmem:[#allocation2] sm:$0xff] %vm272, %v550
      %562 = vst.msk [vmem:[#allocation2 + $0x8] sm:$0xff] %vm272, %v552
      %563 = vst.msk [vmem:[#allocation2 + $0x10] sm:$0xff] %vm272, %v554
      %564 = vst.msk [vmem:[#allocation2 + $0x18] sm:$0xff] %vm272, %v556
      %v565 = vld [vmem:[%s540 + $0x1] sm:$0xff]
      %v566 = vld [vmem:[%s540 + $0x11] sm:$0xff]
      %v567 = vld [vmem:[%s540 + $0x21] sm:$0xff]
      %v568 = vld [vmem:[%s540 + $0x31] sm:$0xff]
      %573 = vrot.lane.b32.xlu0 %v565, 32
      %v574 = vpop.permute.xlu0 %573
      %575 = vrot.lane.b32.xlu0 %v566, 32
      %v576 = vpop.permute.xlu0 %575
      %577 = vrot.lane.b32.xlu0 %v567, 32
      %v578 = vpop.permute.xlu0 %577
      %579 = vrot.lane.b32.xlu0 %v568, 32
      %v580 = vpop.permute.xlu0 %579
      %585 = vst.msk [vmem:[#allocation2] sm:$0xff] %vm297, %v574
      %586 = vst.msk [vmem:[#allocation2 + $0x8] sm:$0xff] %vm297, %v576
      %587 = vst.msk [vmem:[#allocation2 + $0x10] sm:$0xff] %vm297, %v578
      %588 = vst.msk [vmem:[#allocation2 + $0x18] sm:$0xff] %vm297, %v580
      %v589 = vld [vmem:[%s540 + $0x2] sm:$0xff]
      %v590 = vld [vmem:[%s540 + $0x12] sm:$0xff]
      %v591 = vld [vmem:[%s540 + $0x22] sm:$0xff]
      %v592 = vld [vmem:[%s540 + $0x32] sm:$0xff]
      %597 = vrot.lane.b32.xlu0 %v589, 40
      %v598 = vpop.permute.xlu0 %597
      %599 = vrot.lane.b32.xlu0 %v590, 40
      %v600 = vpop.permute.xlu0 %599
      %601 = vrot.lane.b32.xlu0 %v591, 40
      %v602 = vpop.permute.xlu0 %601
      %603 = vrot.lane.b32.xlu0 %v592, 40
      %v604 = vpop.permute.xlu0 %603
      %609 = vst.msk [vmem:[#allocation2] sm:$0xff] %vm322, %v598
      %610 = vst.msk [vmem:[#allocation2 + $0x8] sm:$0xff] %vm322, %v600
      %611 = vst.msk [vmem:[#allocation2 + $0x10] sm:$0xff] %vm322, %v602
      %612 = vst.msk [vmem:[#allocation2 + $0x18] sm:$0xff] %vm322, %v604
      %s613 = scalar_lea.vmem %s180, 96
      %v614 = vld [vmem:[%s613] sm:$0xff]
      %v615 = vld [vmem:[%s613 + $0x10] sm:$0xff]
      %v616 = vld [vmem:[%s613 + $0x20] sm:$0xff]
      %v617 = vld [vmem:[%s613 + $0x30] sm:$0xff]
      %622 = vrot.lane.b32.xlu0 %v614, 48
      %v623 = vpop.permute.xlu0 %622
      %624 = vrot.lane.b32.xlu0 %v615, 48
      %v625 = vpop.permute.xlu0 %624
      %626 = vrot.lane.b32.xlu0 %v616, 48
      %v627 = vpop.permute.xlu0 %626
      %628 = vrot.lane.b32.xlu0 %v617, 48
      %v629 = vpop.permute.xlu0 %628
      %634 = vst.msk [vmem:[#allocation2] sm:$0xff] %vm348, %v623
      %635 = vst.msk [vmem:[#allocation2 + $0x8] sm:$0xff] %vm348, %v625
      %636 = vst.msk [vmem:[#allocation2 + $0x10] sm:$0xff] %vm348, %v627
      %637 = vst.msk [vmem:[#allocation2 + $0x18] sm:$0xff] %vm348, %v629
      %v638 = vld [vmem:[%s613 + $0x1] sm:$0xff]
      %v639 = vld [vmem:[%s613 + $0x11] sm:$0xff]
      %v640 = vld [vmem:[%s613 + $0x21] sm:$0xff]
      %v641 = vld [vmem:[%s613 + $0x31] sm:$0xff]
      %646 = vrot.lane.b32.xlu0 %v638, 56
      %v647 = vpop.permute.xlu0 %646
      %648 = vrot.lane.b32.xlu0 %v639, 56
      %v649 = vpop.permute.xlu0 %648
      %650 = vrot.lane.b32.xlu0 %v640, 56
      %v651 = vpop.permute.xlu0 %650
      %652 = vrot.lane.b32.xlu0 %v641, 56
      %v653 = vpop.permute.xlu0 %652
      %658 = vst.msk [vmem:[#allocation2] sm:$0xff] %vm373, %v647
      %659 = vst.msk [vmem:[#allocation2 + $0x8] sm:$0xff] %vm373, %v649
      %660 = vst.msk [vmem:[#allocation2 + $0x10] sm:$0xff] %vm373, %v651
      %661 = vst.msk [vmem:[#allocation2 + $0x18] sm:$0xff] %vm373, %v653
      %v662 = vld [vmem:[%s613 + $0x2] sm:$0xff]
      %v663 = vld [vmem:[%s613 + $0x12] sm:$0xff]
      %v664 = vld [vmem:[%s613 + $0x22] sm:$0xff]
      %v665 = vld [vmem:[%s613 + $0x32] sm:$0xff]
      %670 = vrot.lane.b32.xlu0 %v662, 64
      %v671 = vpop.permute.xlu0 %670
      %672 = vrot.lane.b32.xlu0 %v663, 64
      %v673 = vpop.permute.xlu0 %672
      %674 = vrot.lane.b32.xlu0 %v664, 64
      %v675 = vpop.permute.xlu0 %674
      %676 = vrot.lane.b32.xlu0 %v665, 64
      %v677 = vpop.permute.xlu0 %676
      %682 = vst.msk [vmem:[#allocation2] sm:$0xff] %vm398, %v671
      %683 = vst.msk [vmem:[#allocation2 + $0x8] sm:$0xff] %vm398, %v673
      %684 = vst.msk [vmem:[#allocation2 + $0x10] sm:$0xff] %vm398, %v675
      %685 = vst.msk [vmem:[#allocation2 + $0x18] sm:$0xff] %vm398, %v677
      %v686 = vld [vmem:[#allocation2] sm:$0xff]
      %v687 = vld [vmem:[#allocation2 + $0x8] sm:$0xff]
      %v688 = vld [vmem:[#allocation2 + $0x10] sm:$0xff]
      %v689 = vld [vmem:[#allocation2 + $0x18] sm:$0xff]
      %v690 = vpack.c.bf16 %v687, %v686
      %v691 = vpack.c.bf16 %v689, %v688
      %v692 = vld [vmem:[%s1] sm:$0xf]
      %v693 = vld [vmem:[%s1 + $0x4] sm:$0xf]
      %v694 = vld [vmem:[%s1 + $0x8] sm:$0xf]
      %v695 = vld [vmem:[%s1 + $0xc] sm:$0xf]
      %v696 = vld [vmem:[%s1 + $0x10] sm:$0xf]
      %v697 = vld [vmem:[%s1 + $0x14] sm:$0xf]
      %v698 = vld [vmem:[%s1 + $0x18] sm:$0xf]
      %v699 = vld [vmem:[%s1 + $0x1c] sm:$0xf]
      %v700 = vld [vmem:[%s1 + $0x20] sm:$0xf]
      %v701 = vld [vmem:[%s185 + $0x20] sm:$0xff]
      %v702 = vld [vmem:[%s185 + $0x28] sm:$0xff]
      %v703 = vld [vmem:[%s185 + $0x30] sm:$0xff]
      %v704 = vld [vmem:[%s185 + $0x38] sm:$0xff]
      %v714 = vunpack.c.l.b16 %v692
      %v715 = vunpack.c.l.b16 %v693
      %v716 = vunpack.c.l.b16 %v694
      %v717 = vunpack.c.l.b16 %v695
      %v718 = vunpack.c.l.b16 %v696
      %v719 = vunpack.c.l.b16 %v697
      %v720 = vunpack.c.l.b16 %v698
      %v721 = vunpack.c.l.b16 %v699
      %v722 = vunpack.c.l.b16 %v700
      %v723 = vpack.c.b16 %v715, %v714
      %v724 = vpack.c.b16 %v717, %v716
      %v725 = vpack.c.b16 %v719, %v718
      %v726 = vpack.c.b16 %v721, %v720
      %v727 = vpack.c.b16 %v722, %v722
      %v733 = vsel %vm449, %v690, 0
      %v736 = vsel %vm449, %v691, 0
      %v739 = vsel %vm456, %v727, 0
      %741 = vmatpush.bf16.msra.mxu0 0
      %742 = vmatpush.bf16.msra.mxu0 0
      %743 = vmatpush.bf16.msra.mxu0 0
      %744 = vmatpush.bf16.msra.mxu0 %v739
      %745 = vmatpush.bf16.msra.mxu0 %v726
      %746 = vmatpush.bf16.msra.mxu0 %v725
      %747 = vmatpush.bf16.msra.mxu0 %v724
      %748 = vmatpush.bf16.msra.mxu0 %v723
      %749 = vmatmul.bf16.gmra.mxu0 %v733
      %v750 = vpop.f32.mrf.mxu0
      %v751 = vadd.f32 %v701, %v750
      %v752 = vpop.f32.mrf.mxu0
      %v753 = vadd.f32 %v702, %v752
      %754 = vmatmul.bf16.gmra.mxu0 %v736
      %v755 = vpop.f32.mrf.mxu0
      %v756 = vadd.f32 %v703, %v755
      %v757 = vpop.f32.mrf.mxu0
      %v758 = vadd.f32 %v704, %v757
      %759 = vdwg.mxu0
      %760 = vst.msk [vmem:[%s190 + $0x20] sm:$0xff] %vm196, %v751
      %761 = vst.msk [vmem:[%s190 + $0x28] sm:$0xff] %vm196, %v753
      %762 = vst.msk [vmem:[%s190 + $0x30] sm:$0xff] %vm196, %v756
      %763 = vst.msk [vmem:[%s190 + $0x38] sm:$0xff] %vm196, %v758
      %p764 = scmp.lt.s32.totalorder %s14, 1
      %s765 = scalar_select %p764, %s14, 1
      %s766 = smul.addr %s765, 8
      %s767 = smul.addr %s766, 8
      %s768 = scalar_lea.vmem %s3, %s767
      // Predicated region
      $region33: #{network_block_forward.5} parent=31 // pred_check
        %p769 = pneg %p105
      $region34: #{network_block_forward.5} parent=31 // pred_check_branch
        %771 = sbr.rel (%p769) target = $region36
      $region35: #{network_block_forward.5} parent=31 // pred_region
        _
      $region36: #{network_block_forward.5} parent=31 // pred_fallthru
        _
    $region32: #{network_block_forward.5} parent=5 // pred_fallthru
      _
    %p772 = scmp.le.s32.totalorder 2, %s9
    // Predicated region
    $region37: #{network_block_forward.5} parent=5 // pred_check
      %p773 = pneg %p772
    $region38: #{network_block_forward.5} parent=5 // pred_check_branch
      %775 = sbr.rel (%p773) target = $region40
    $region39: #{network_block_forward.5} parent=5 // pred_region
      %s776 = ssub.s32 %s9, 2
      // Predicated region
      $region41: #{network_block_forward.5} parent=39 // pred_check
        %p777 = pneg %p111
      $region42: #{network_block_forward.5} parent=39 // pred_check_branch
        %779 = sbr.rel (%p777) target = $region44
      $region43: #{network_block_forward.5} parent=39 // pred_region
        %p780 = scmp.lt.s32.totalorder %s15, 1
        %s781 = scalar_select %p780, %s15, 1
        %s782 = smul.addr %s781, 8
        %s783 = smul.addr %s782, 8
        %s784 = scalar_lea.vmem %s3, %s783
      $region44: #{network_block_forward.5} parent=39 // pred_fallthru
        _
    $region40: #{network_block_forward.5} parent=5 // pred_fallthru
      _
  $region6: #{network_block_forward.5} parent=0 // loop_footer
    %s13 = sadd.s32 1, %s9
  $region7: #{network_block_forward.5} parent=0 // loop_footer_branch
    %8 = sbr.rel target = $region3
  $region8: #{network_block_forward.5} parent=0 // loop_exit
    _

// kernel: network_block_forward.4
$region0: #{network_block_forward.4}
  #allocation0 [shape = 'u32[]', space=smem, size = 0x4, offset = 0x4, fixed_abs, tag = 'smem constant byte address 0x4 - core index']
  #allocation1 [shape = 'u32[72,128]{1,0:T(1,128)}', space=vmem, size = 0x9000, scoped, tag = 'internal scratch']
  #allocation2 [shape = 'f32[32,36]{1,0:T(8,128)}', space=vmem, size = 0x4000, scoped, tag = 'scratch operand']
  %s0 = inlined_call_operand.vmem [shape: f32[2,36,9,4], index: 0, kind: input, shape index: {}]
  %s1 = inlined_call_operand.vmem [shape: f32[1,4], index: 1, kind: input, shape index: {}]
  %s2 = inlined_call_operand.vmem [shape: f32[1,4], index: 2, kind: input, shape index: {}]
  %s3 = inlined_call_operand.vmem [shape: f32[1,8], index: 3, kind: input, shape index: {}]
  %s4 = inlined_call_operand.vmem [shape: f32[1,8], index: 4, kind: input, shape index: {}]
  %s5 = inlined_call_operand.vmem [shape: bf16[36,8], index: 5, kind: input, shape index: {}]
  %s6 = inlined_call_operand.vmem [shape: bf16[4,8], index: 6, kind: input, shape index: {}]
  %s7 = inlined_call_operand.vmem [shape: f32[2,10,10,8], index: 7, kind: output, shape index: {0}]
  %s8 = inlined_call_operand.vmem [shape: f32[2,64,8], index: 8, kind: output, shape index: {1}]
  %9 = xla_tuple %s7, %s8
  %s10 = sld [smem:[#allocation0]]
  $region69: #{network_block_forward.4} parent=0
    _
  %s12 = ssub.s32 1, %s10
  %s13 = scalar_select 0, %s12, %s10
  loop: start=0, step=1, limit=4
  $region2: #{network_block_forward.4} parent=0 // loop_pre_header
    _
  $region3: #{network_block_forward.4} parent=0 // loop_header
    %s15 = sphi 0, %s19
    %p16 = scmp.ge.s32.totalorder %s15, 4
    %s25 = sphi 0, %s27
    %s28 = sphi 0, %s25
    %s29 = sphi 0, %s28
    %s45 = sphi 0, %s29
    %s49 = sphi 0, %s49
    %s51 = sphi 0, %s49
    %s52 = sphi 0, %s51
    %s66 = sphi 0, %s52
    %s70 = sphi 0, %s70
    %s72 = sphi 0, %s70
    %s73 = sphi 0, %s72
    %s87 = sphi 0, %s73
    %s91 = sphi 0, %s91
    %s93 = sphi 0, %s91
    %s94 = sphi 0, %s93
    %s108 = sphi 0, %s94
    %s112 = sphi 0, %s112
    %s114 = sphi 0, %s112
    %s115 = sphi 0, %s114
    %s129 = sphi 0, %s115
    %s133 = sphi 0, %s133
    %s135 = sphi 0, %s133
    %s136 = sphi 0, %s135
    %s150 = sphi 0, %s136
    %s154 = sphi 0, %s154
    %s156 = sphi 0, %s154
    %s157 = sphi 0, %s156
    %s171 = sphi 0, %s157
    %s177 = sphi 0, %s179
    %s180 = sphi 0, %s177
    %s181 = sphi 0, %s180
    %s197 = sphi 0, %s181
    %s203 = sphi 0, %s205
    %s206 = sphi 0, %s203
    %s207 = sphi 0, %s206
    %s223 = sphi 0, %s207
  $region4: #{network_block_forward.4} parent=0 // loop_header_branch
    %18 = sbr.rel (%p16) target = $region8
  $region5: #{network_block_forward.4} parent=0 // loop_body
    %s20 = ssub.s32 %s15, 1
    %s21 = ssub.s32 %s15, 2
    %s22 = sadd.s32 %s15, 1
    %s23 = ssub.s32 %s15, %s22
    %p24 = scmp.eq.s32.totalorder %s23, 0
    %s26 = sadd.s32 %s25, 1
    %s27 = scalar_select %p24, %s25, %s26
    %p30 = pneg %p24
    %p31 = scmp.eq.s32.totalorder %s15, 1
    %p32 = por %p30, %p31
    %p33 = scmp.ne.s32.totalorder %s25, %s28
    %p34 = scmp.eq.s32.totalorder %s15, 0
    %p35 = por %p33, %p34
    %p36 = scmp.ne.s32.totalorder %s25, %s28
    %p37 = scmp.eq.s32.totalorder %s20, 1
    %p38 = por %p36, %p37
    %p39 = scmp.ne.s32.totalorder %s28, %s29
    %p40 = scmp.eq.s32.totalorder %s20, 0
    %p41 = por %p39, %p40
    %p42 = scmp.ne.s32.totalorder %s28, %s29
    %p43 = scmp.eq.s32.totalorder %s21, 1
    %p44 = por %p42, %p43
    %p46 = scmp.ne.s32.totalorder %s29, %s45
    %p47 = scmp.eq.s32.totalorder %s21, 0
    %p48 = por %p46, %p47
    %s50 = sadd.s32 %s49, 1
    %p53 = scmp.eq.s32.totalorder %s15, 1
    %p54 = scmp.ne.s32.totalorder %s49, %s51
    %p55 = scmp.eq.s32.totalorder %s15, 0
    %p56 = por %p54, %p55
    %p57 = scmp.ne.s32.totalorder %s49, %s51
    %p58 = scmp.eq.s32.totalorder %s20, 1
    %p59 = por %p57, %p58
    %p60 = scmp.ne.s32.totalorder %s51, %s52
    %p61 = scmp.eq.s32.totalorder %s20, 0
    %p62 = por %p60, %p61
    %p63 = scmp.ne.s32.totalorder %s51, %s52
    %p64 = scmp.eq.s32.totalorder %s21, 1
    %p65 = por %p63, %p64
    %p67 = scmp.ne.s32.totalorder %s52, %s66
    %p68 = scmp.eq.s32.totalorder %s21, 0
    %p69 = por %p67, %p68
    %s71 = sadd.s32 %s70, 1
    %p74 = scmp.eq.s32.totalorder %s15, 1
    %p75 = scmp.ne.s32.totalorder %s70, %s72
    %p76 = scmp.eq.s32.totalorder %s15, 0
    %p77 = por %p75, %p76
    %p78 = scmp.ne.s32.totalorder %s70, %s72
    %p79 = scmp.eq.s32.totalorder %s20, 1
    %p80 = por %p78, %p79
    %p81 = scmp.ne.s32.totalorder %s72, %s73
    %p82 = scmp.eq.s32.totalorder %s20, 0
    %p83 = por %p81, %p82
    %p84 = scmp.ne.s32.totalorder %s72, %s73
    %p85 = scmp.eq.s32.totalorder %s21, 1
    %p86 = por %p84, %p85
    %p88 = scmp.ne.s32.totalorder %s73, %s87
    %p89 = scmp.eq.s32.totalorder %s21, 0
    %p90 = por %p88, %p89
    %s92 = sadd.s32 %s91, 1
    %p95 = scmp.eq.s32.totalorder %s15, 1
    %p96 = scmp.ne.s32.totalorder %s91, %s93
    %p97 = scmp.eq.s32.totalorder %s15, 0
    %p98 = por %p96, %p97
    %p99 = scmp.ne.s32.totalorder %s91, %s93
    %p100 = scmp.eq.s32.totalorder %s20, 1
    %p101 = por %p99, %p100
    %p102 = scmp.ne.s32.totalorder %s93, %s94
    %p103 = scmp.eq.s32.totalorder %s20, 0
    %p104 = por %p102, %p103
    %p105 = scmp.ne.s32.totalorder %s93, %s94
    %p106 = scmp.eq.s32.totalorder %s21, 1
    %p107 = por %p105, %p106
    %p109 = scmp.ne.s32.totalorder %s94, %s108
    %p110 = scmp.eq.s32.totalorder %s21, 0
    %p111 = por %p109, %p110
    %s113 = sadd.s32 %s112, 1
    %p116 = scmp.eq.s32.totalorder %s15, 1
    %p117 = scmp.ne.s32.totalorder %s112, %s114
    %p118 = scmp.eq.s32.totalorder %s15, 0
    %p119 = por %p117, %p118
    %p120 = scmp.ne.s32.totalorder %s112, %s114
    %p121 = scmp.eq.s32.totalorder %s20, 1
    %p122 = por %p120, %p121
    %p123 = scmp.ne.s32.totalorder %s114, %s115
    %p124 = scmp.eq.s32.totalorder %s20, 0
    %p125 = por %p123, %p124
    %p126 = scmp.ne.s32.totalorder %s114, %s115
    %p127 = scmp.eq.s32.totalorder %s21, 1
    %p128 = por %p126, %p127
    %p130 = scmp.ne.s32.totalorder %s115, %s129
    %p131 = scmp.eq.s32.totalorder %s21, 0
    %p132 = por %p130, %p131
    %s134 = sadd.s32 %s133, 1
    %p137 = scmp.eq.s32.totalorder %s15, 1
    %p138 = scmp.ne.s32.totalorder %s133, %s135
    %p139 = scmp.eq.s32.totalorder %s15, 0
    %p140 = por %p138, %p139
    %p141 = scmp.ne.s32.totalorder %s133, %s135
    %p142 = scmp.eq.s32.totalorder %s20, 1
    %p143 = por %p141, %p142
    %p144 = scmp.ne.s32.totalorder %s135, %s136
    %p145 = scmp.eq.s32.totalorder %s20, 0
    %p146 = por %p144, %p145
    %p147 = scmp.ne.s32.totalorder %s135, %s136
    %p148 = scmp.eq.s32.totalorder %s21, 1
    %p149 = por %p147, %p148
    %p151 = scmp.ne.s32.totalorder %s136, %s150
    %p152 = scmp.eq.s32.totalorder %s21, 0
    %p153 = por %p151, %p152
    %s155 = sadd.s32 %s154, 1
    %p158 = scmp.eq.s32.totalorder %s15, 1
    %p159 = scmp.ne.s32.totalorder %s154, %s156
    %p160 = scmp.eq.s32.totalorder %s15, 0
    %p161 = por %p159, %p160
    %p162 = scmp.ne.s32.totalorder %s154, %s156
    %p163 = scmp.eq.s32.totalorder %s20, 1
    %p164 = por %p162, %p163
    %p165 = scmp.ne.s32.totalorder %s156, %s157
    %p166 = scmp.eq.s32.totalorder %s20, 0
    %p167 = por %p165, %p166
    %p168 = scmp.ne.s32.totalorder %s156, %s157
    %p169 = scmp.eq.s32.totalorder %s21, 1
    %p170 = por %p168, %p169
    %p172 = scmp.ne.s32.totalorder %s157, %s171
    %p173 = scmp.eq.s32.totalorder %s21, 0
    %p174 = por %p172, %p173
    %s175 = ssub.s32 %s15, %s22
    %p176 = scmp.eq.s32.totalorder %s175, 0
    %s178 = sadd.s32 %s177, 1
    %s179 = scalar_select %p176, %s177, %s178
    %p182 = pneg %p176
    %p183 = scmp.eq.s32.totalorder %s15, 1
    %p184 = por %p182, %p183
    %p185 = scmp.ne.s32.totalorder %s177, %s180
    %p186 = scmp.eq.s32.totalorder %s15, 0
    %p187 = por %p185, %p186
    %p188 = scmp.ne.s32.totalorder %s177, %s180
    %p189 = scmp.eq.s32.totalorder %s20, 1
    %p190 = por %p188, %p189
    %p191 = scmp.ne.s32.totalorder %s180, %s181
    %p192 = scmp.eq.s32.totalorder %s20, 0
    %p193 = por %p191, %p192
    %p194 = scmp.ne.s32.totalorder %s180, %s181
    %p195 = scmp.eq.s32.totalorder %s21, 1
    %p196 = por %p194, %p195
    %p198 = scmp.ne.s32.totalorder %s181, %s197
    %p199 = scmp.eq.s32.totalorder %s21, 0
    %p200 = por %p198, %p199
    %s201 = ssub.s32 %s15, %s22
    %p202 = scmp.eq.s32.totalorder %s201, 0
    %s204 = sadd.s32 %s203, 1
    %s205 = scalar_select %p202, %s203, %s204
    %p208 = pneg %p202
    %p209 = scmp.eq.s32.totalorder %s15, 1
    %p210 = por %p208, %p209
    %p211 = scmp.ne.s32.totalorder %s203, %s206
    %p212 = scmp.eq.s32.totalorder %s15, 0
    %p213 = por %p211, %p212
    %p214 = scmp.ne.s32.totalorder %s203, %s206
    %p215 = scmp.eq.s32.totalorder %s20, 1
    %p216 = por %p214, %p215
    %p217 = scmp.ne.s32.totalorder %s206, %s207
    %p218 = scmp.eq.s32.totalorder %s20, 0
    %p219 = por %p217, %p218
    %p220 = scmp.ne.s32.totalorder %s206, %s207
    %p221 = scmp.eq.s32.totalorder %s21, 1
    %p222 = por %p220, %p221
    %p224 = scmp.ne.s32.totalorder %s207, %s223
    %p225 = scmp.eq.s32.totalorder %s21, 0
    %p226 = por %p224, %p225
    %p227 = scmp.le.s32.totalorder 1, %s15
    %p228 = scmp.lt.s32.totalorder %s15, 3
    %p229 = pnand %p227, %p228
    %p230 = pneg %p229
    // Predicated region
    $region9: #{network_block_forward.4} parent=5 // pred_check
      _
    $region10: #{network_block_forward.4} parent=5 // pred_check_branch
      %232 = sbr.rel (%p229) target = $region12
    $region11: #{network_block_forward.4} parent=5 // pred_region
      %s233 = ssub.s32 %s15, 1
      // Predicated region
      $region13: #{network_block_forward.4} parent=11 // pred_check
        %p234 = pneg %p62
      $region14: #{network_block_forward.4} parent=11 // pred_check_branch
        %236 = sbr.rel (%p234) target = $region16
      $region15: #{network_block_forward.4} parent=11 // pred_region
        _
      $region16: #{network_block_forward.4} parent=11 // pred_fallthru
        _
      // Predicated region
      $region17: #{network_block_forward.4} parent=11 // pred_check
        %p237 = pneg %p83
      $region18: #{network_block_forward.4} parent=11 // pred_check_branch
        %239 = sbr.rel (%p237) target = $region20
      $region19: #{network_block_forward.4} parent=11 // pred_region
        _
      $region20: #{network_block_forward.4} parent=11 // pred_fallthru
        _
      // Predicated region
      $region21: #{network_block_forward.4} parent=11 // pred_check
        %p240 = pneg %p104
      $region22: #{network_block_forward.4} parent=11 // pred_check_branch
        %242 = sbr.rel (%p240) target = $region24
      $region23: #{network_block_forward.4} parent=11 // pred_region
        _
      $region24: #{network_block_forward.4} parent=11 // pred_fallthru
        _
      // Predicated region
      $region25: #{network_block_forward.4} parent=11 // pred_check
        %p243 = pneg %p125
      $region26: #{network_block_forward.4} parent=11 // pred_check_branch
        %245 = sbr.rel (%p243) target = $region28
      $region27: #{network_block_forward.4} parent=11 // pred_region
        _
      $region28: #{network_block_forward.4} parent=11 // pred_fallthru
        _
      // Predicated region
      $region29: #{network_block_forward.4} parent=11 // pred_check
        %p246 = pneg %p146
      $region30: #{network_block_forward.4} parent=11 // pred_check_branch
        %248 = sbr.rel (%p246) target = $region32
      $region31: #{network_block_forward.4} parent=11 // pred_region
        _
      $region32: #{network_block_forward.4} parent=11 // pred_fallthru
        _
      // Predicated region
      $region33: #{network_block_forward.4} parent=11 // pred_check
        %p249 = pneg %p167
      $region34: #{network_block_forward.4} parent=11 // pred_check_branch
        %251 = sbr.rel (%p249) target = $region36
      $region35: #{network_block_forward.4} parent=11 // pred_region
        _
      $region36: #{network_block_forward.4} parent=11 // pred_fallthru
        _
    $region12: #{network_block_forward.4} parent=5 // pred_fallthru
      _
    %p252 = scmp.lt.s32.totalorder %s15, 2
    // Predicated region
    $region37: #{network_block_forward.4} parent=5 // pred_check
      %p253 = pneg %p252
    $region38: #{network_block_forward.4} parent=5 // pred_check_branch
      %255 = sbr.rel (%p253) target = $region40
    $region39: #{network_block_forward.4} parent=5 // pred_region
      // Predicated region
      $region41: #{network_block_forward.4} parent=39 // pred_check
        %p256 = pneg %p35
      $region42: #{network_block_forward.4} parent=39 // pred_check_branch
        %258 = sbr.rel (%p256) target = $region44
      $region43: #{network_block_forward.4} parent=39 // pred_region
        %p259 = scmp.lt.s32.totalorder %s15, 1
        %s260 = scalar_select %p259, %s15, 1
        %s261 = smul.addr %s260, 72
        %s262 = smul.addr %s261, 8
        %s263 = scalar_lea.vmem %s0, %s262
      $region44: #{network_block_forward.4} parent=39 // pred_fallthru
        _
    $region40: #{network_block_forward.4} parent=5 // pred_fallthru
      _
    %p264 = scmp.le.s32.totalorder 1, %s15
    %p265 = scmp.lt.s32.totalorder %s15, 3
    %p266 = pnand %p264, %p265
    %p267 = pneg %p266
    // Predicated region
    $region45: #{network_block_forward.4} parent=5 // pred_check
      _
    $region46: #{network_block_forward.4} parent=5 // pred_check_branch
      %269 = sbr.rel (%p266) target = $region48
    $region47: #{network_block_forward.4} parent=5 // pred_region
      %s270 = ssub.s32 %s15, 1
      %p271 = scmp.lt.s32.totalorder %s20, 1
      %s272 = scalar_select %p271, %s20, 1
      %s273 = smul.addr %s272, 72
      %s274 = smul.addr %s273, 8
      %s275 = scalar_lea.vmem %s0, %s274
      %p276 = pneg %p41
      %p277 = pneg %p38
      %p278 = pneg %p62
      %p279 = pneg %p59
      %p280 = pneg %p83
      %p281 = pneg %p80
      %p282 = pneg %p104
      %p283 = pneg %p101
      %p284 = pneg %p125
      %p285 = pneg %p122
      %p286 = pneg %p146
      %p287 = pneg %p143
      %p288 = pneg %p167
      %p289 = pneg %p164
      %p290 = pneg %p193
      %p291 = pneg %p190
      %p292 = scmp.lt.s32.totalorder %s20, 1
      %s293 = scalar_select %p292, %s20, 1
      %s294 = smul.addr %s293, 20
      %s295 = smul.addr %s294, 8
      %s296 = scalar_lea.vmem %s7, %s295
      %p297 = pneg %p219
      %p298 = pneg %p216
      %p299 = scmp.lt.s32.totalorder %s20, 1
      %s300 = scalar_select %p299, %s20, 1
      %s301 = smul.addr %s300, 8
      %s302 = smul.addr %s301, 8
      %s303 = scalar_lea.vmem %s8, %s302
      %p304 = scmp.lt.s32.totalorder %s20, 1
      %s305 = scalar_select %p304, %s20, 1
      %s306 = smul.addr %s305, 72
      %s307 = smul.addr %s306, 8
      %s308 = scalar_lea.vmem %s0, %s307
      %p309 = scmp.lt.s32.totalorder %s20, 1
      %s310 = scalar_select %p309, %s20, 1
      %s311 = smul.addr %s310, 20
      %s312 = smul.addr %s311, 8
      %s313 = scalar_lea.vmem %s7, %s312
      %p314 = scmp.lt.s32.totalorder %s20, 1
      %s315 = scalar_select %p314, %s20, 1
      %s316 = smul.addr %s315, 8
      %s317 = smul.addr %s316, 8
      %s318 = scalar_lea.vmem %s8, %s317
      %vm320 = vcmask 64512
      %321 = vst.msk [vmem:[%s313] sm:$0xff] %vm320, 0.0
      %vm322 = vcmask 58368
      %323 = vst.msk [vmem:[%s313 + $0x8] sm:$0x3] %vm322, 0.0
      %324 = vst.msk [vmem:[%s313 + $0x10] sm:$0xff] %vm320, 0.0
      %325 = vst.msk [vmem:[%s313 + $0x18] sm:$0x3] %vm322, 0.0
      %326 = vst.msk [vmem:[%s313 + $0x20] sm:$0xff] %vm320, 0.0
      %327 = vst.msk [vmem:[%s313 + $0x28] sm:$0x3] %vm322, 0.0
      %328 = vst.msk [vmem:[%s313 + $0x30] sm:$0xff] %vm320, 0.0
      %329 = vst.msk [vmem:[%s313 + $0x38] sm:$0x3] %vm322, 0.0
      %330 = vst.msk [vmem:[%s313 + $0x40] sm:$0xff] %vm320, 0.0
      %331 = vst.msk [vmem:[%s313 + $0x48] sm:$0x3] %vm322, 0.0
      %332 = vst.msk [vmem:[%s313 + $0x50] sm:$0xff] %vm320, 0.0
      %333 = vst.msk [vmem:[%s313 + $0x58] sm:$0x3] %vm322, 0.0
      %334 = vst.msk [vmem:[%s313 + $0x60] sm:$0xff] %vm320, 0.0
      %335 = vst.msk [vmem:[%s313 + $0x68] sm:$0x3] %vm322, 0.0
      %336 = vst.msk [vmem:[%s313 + $0x70] sm:$0xff] %vm320, 0.0
      %337 = vst.msk [vmem:[%s313 + $0x78] sm:$0x3] %vm322, 0.0
      %338 = vst.msk [vmem:[%s313 + $0x80] sm:$0xff] %vm320, 0.0
      %339 = vst.msk [vmem:[%s313 + $0x88] sm:$0x3] %vm322, 0.0
      %340 = vst.msk [vmem:[%s313 + $0x90] sm:$0xff] %vm320, 0.0
      %341 = vst.msk [vmem:[%s313 + $0x98] sm:$0x3] %vm322, 0.0
      %v342 = vld [vmem:[%s1] sm:$0x1]
      %v343 = vld [vmem:[%s2] sm:$0x1]
      %v344 = vlaneseq
      %v345 = vshrl.u32 %v344, 7
      %v346 = vld [vmem:[%s308] sm:$0xff]
      %v347 = vld [vmem:[%s308 + $0x10] sm:$0xff]
      %v348 = vld [vmem:[%s308 + $0x20] sm:$0xff]
      %v349 = vld [vmem:[%s308 + $0x30] sm:$0xff]
      %v351 = vperm.slane %v342, 0
      %v353 = vmul.f32 %v346, %v351
      %v354 = vmul.f32 %v347, %v351
      %v355 = vmul.f32 %v348, %v351
      %v356 = vmul.f32 %v349, %v351
      %v358 = vperm.slane %v343, 0
      %v360 = vadd.f32 %v353, %v358
      %v361 = vadd.f32 %v354, %v358
      %v362 = vadd.f32 %v355, %v358
      %v363 = vadd.f32 %v356, %v358
      %v364 = vmax.f32 %v360, 0.0
      %v365 = vmax.f32 %v361, 0.0
      %v366 = vmax.f32 %v362, 0.0
      %v367 = vmax.f32 %v363, 0.0
      %v368 = vmul.u32 %v345, 2
      %vm369 = vcmp.ge.s32.totalorder %v368, 1
      %vm370 = vmand 0, %vm369
      %vm371 = vmand 1, %vm369
      %vm372 = vcmp.le.s32.totalorder %v368, 16
      %vm373 = vmand %vm370, %vm372
      %vm374 = vmand %vm371, %vm372
      %v375 = vsel %vm373, 1, 0
      %v376 = vsel %vm374, 1, 0
      %vm377 = vcmp.eq.s32.totalorder %v375, 1
      %vm378 = vcmp.eq.s32.totalorder %v376, 1
      %v379 = vsel %vm377, %v364, 0.0
      %v380 = vsel %vm378, %v365, 0.0
      %v381 = vsel %vm378, %v366, 0.0
      %v382 = vsel %vm378, %v367, 0.0
      %vm383 = vcmask 31744
      %384 = vst.msk [vmem:[#allocation2] sm:$0xff] %vm383, %v379
      %385 = vst.msk [vmem:[#allocation2 + $0x8] sm:$0xff] %vm383, %v380
      %386 = vst.msk [vmem:[#allocation2 + $0x10] sm:$0xff] %vm383, %v381
      %387 = vst.msk [vmem:[#allocation2 + $0x18] sm:$0xff] %vm383, %v382
      %s388 = scalar_lea.vmem %s308, 144
      %v389 = vld [vmem:[%s388] sm:$0xff]
      %v390 = vld [vmem:[%s388 + $0x10] sm:$0xff]
      %v391 = vld [vmem:[%s388 + $0x20] sm:$0xff]
      %v392 = vld [vmem:[%s388 + $0x30] sm:$0xff]
      %v393 = vmul.f32 %v389, %v351
      %v394 = vmul.f32 %v390, %v351
      %v395 = vmul.f32 %v391, %v351
      %v396 = vmul.f32 %v392, %v351
      %v397 = vadd.f32 %v393, %v358
      %v398 = vadd.f32 %v394, %v358
      %v399 = vadd.f32 %v395, %v358
      %v400 = vadd.f32 %v396, %v358
      %v401 = vmax.f32 %v397, 0.0
      %v402 = vmax.f32 %v398, 0.0
      %v403 = vmax.f32 %v399, 0.0
      %v404 = vmax.f32 %v400, 0.0
      %v405 = vadd.s32 %v368, 1
      %vm406 = vcmp.ge.s32.totalorder %v405, 1
      %vm407 = vmand 0, %vm406
      %vm408 = vmand 1, %vm406
      %vm409 = vcmp.le.s32.totalorder %v405, 16
      %vm410 = vmand %vm407, %vm409
      %vm411 = vmand %vm408, %vm409
      %v412 = vsel %vm410, 1, 0
      %v413 = vsel %vm411, 1, 0
      %vm414 = vcmp.eq.s32.totalorder %v412, 1
      %vm415 = vcmp.eq.s32.totalorder %v413, 1
      %v416 = vsel %vm414, %v401, 0.0
      %v417 = vsel %vm415, %v402, 0.0
      %v418 = vsel %vm415, %v403, 0.0
      %v419 = vsel %vm415, %v404, 0.0
      %424 = vrot.lane.b32.xlu0 %v416, 4
      %v425 = vpop.permute.xlu0 %424
      %426 = vrot.lane.b32.xlu0 %v417, 4
      %v427 = vpop.permute.xlu0 %426
      %428 = vrot.lane.b32.xlu0 %v418, 4
      %v429 = vpop.permute.xlu0 %428
      %430 = vrot.lane.b32.xlu0 %v419, 4
      %v431 = vpop.permute.xlu0 %430
      %vm436 = vcmask 64544
      %437 = vst.msk [vmem:[#allocation2] sm:$0xff] %vm436, %v425
      %438 = vst.msk [vmem:[#allocation2 + $0x8] sm:$0xff] %vm436, %v427
      %439 = vst.msk [vmem:[#allocation2 + $0x10] sm:$0xff] %vm436, %v429
      %440 = vst.msk [vmem:[#allocation2 + $0x18] sm:$0xff] %vm436, %v431
      %v441 = vld [vmem:[%s308 + $0x1] sm:$0xff]
      %v442 = vld [vmem:[%s308 + $0x11] sm:$0xff]
      %v443 = vld [vmem:[%s308 + $0x21] sm:$0xff]
      %v444 = vld [vmem:[%s308 + $0x31] sm:$0xff]
      %v445 = vmul.f32 %v441, %v351
      %v446 = vmul.f32 %v442, %v351
      %v447 = vmul.f32 %v443, %v351
      %v448 = vmul.f32 %v444, %v351
      %v449 = vadd.f32 %v445, %v358
      %v450 = vadd.f32 %v446, %v358
      %v451 = vadd.f32 %v447, %v358
      %v452 = vadd.f32 %v448, %v358
      %v453 = vmax.f32 %v449, 0.0
      %v454 = vmax.f32 %v450, 0.0
      %v455 = vmax.f32 %v451, 0.0
      %v456 = vmax.f32 %v452, 0.0
      %v457 = vadd.s32 %v368, 2
      %vm458 = vcmp.ge.s32.totalorder %v457, 1
      %vm459 = vmand 0, %vm458
      %vm460 = vmand 1, %vm458
      %vm461 = vcmp.le.s32.totalorder %v457, 16
      %vm462 = vmand %vm459, %vm461
      %vm463 = vmand %vm460, %vm461
      %v464 = vsel %vm462, 1, 0
      %v465 = vsel %vm463, 1, 0
      %vm466 = vcmp.eq.s32.totalorder %v464, 1
      %vm467 = vcmp.eq.s32.totalorder %v465, 1
      %v468 = vsel %vm466, %v453, 0.0
      %v469 = vsel %vm467, %v454, 0.0
      %v470 = vsel %vm467, %v455, 0.0
      %v471 = vsel %vm467, %v456, 0.0
      %476 = vrot.lane.b32.xlu0 %v468, 8
      %v477 = vpop.permute.xlu0 %476
      %478 = vrot.lane.b32.xlu0 %v469, 8
      %v479 = vpop.permute.xlu0 %478
      %480 = vrot.lane.b32.xlu0 %v470, 8
      %v481 = vpop.permute.xlu0 %480
      %482 = vrot.lane.b32.xlu0 %v471, 8
      %v483 = vpop.permute.xlu0 %482
      %vm488 = vcmask 97344
      %489 = vst.msk [vmem:[#allocation2] sm:$0xff] %vm488, %v477
      %490 = vst.msk [vmem:[#allocation2 + $0x8] sm:$0xff] %vm488, %v479
      %491 = vst.msk [vmem:[#allocation2 + $0x10] sm:$0xff] %vm488, %v481
      %492 = vst.msk [vmem:[#allocation2 + $0x18] sm:$0xff] %vm488, %v483
      %s493 = scalar_lea.vmem %s308, 288
      %v494 = vld [vmem:[%s493] sm:$0xff]
      %v495 = vld [vmem:[%s493 + $0x10] sm:$0xff]
      %v496 = vld [vmem:[%s493 + $0x20] sm:$0xff]
      %v497 = vld [vmem:[%s493 + $0x30] sm:$0xff]
      %v498 = vmul.f32 %v494, %v351
      %v499 = vmul.f32 %v495, %v351
      %v500 = vmul.f32 %v496, %v351
      %v501 = vmul.f32 %v497, %v351
      %v502 = vadd.f32 %v498, %v358
      %v503 = vadd.f32 %v499, %v358
      %v504 = vadd.f32 %v500, %v358
      %v505 = vadd.f32 %v501, %v358
      %v506 = vmax.f32 %v502, 0.0
      %v507 = vmax.f32 %v503, 0.0
      %v508 = vmax.f32 %v504, 0.0
      %v509 = vmax.f32 %v505, 0.0
      %v510 = vsel %vm378, %v506, 0.0
      %v511 = vsel %vm378, %v507, 0.0
      %v512 = vsel %vm378, %v508, 0.0
      %v513 = vsel %vm378, %v509, 0.0
      %518 = vrot.lane.b32.xlu0 %v510, 12
      %v519 = vpop.permute.xlu0 %518
      %520 = vrot.lane.b32.xlu0 %v511, 12
      %v521 = vpop.permute.xlu0 %520
      %522 = vrot.lane.b32.xlu0 %v512, 12
      %v523 = vpop.permute.xlu0 %522
      %524 = vrot.lane.b32.xlu0 %v513, 12
      %v525 = vpop.permute.xlu0 %524
      %vm530 = vcmask 130144
      %531 = vst.msk [vmem:[#allocation2] sm:$0xff] %vm530, %v519
      %532 = vst.msk [vmem:[#allocation2 + $0x8] sm:$0xff] %vm530, %v521
      %533 = vst.msk [vmem:[#allocation2 + $0x10] sm:$0xff] %vm530, %v523
      %534 = vst.msk [vmem:[#allocation2 + $0x18] sm:$0xff] %vm530, %v525
      %s535 = scalar_lea.vmem %s308, 432
      %v536 = vld [vmem:[%s535] sm:$0xff]
      %v537 = vld [vmem:[%s535 + $0x10] sm:$0xff]
      %v538 = vld [vmem:[%s535 + $0x20] sm:$0xff]
      %v539 = vld [vmem:[%s535 + $0x30] sm:$0xff]
      %v540 = vmul.f32 %v536, %v351
      %v541 = vmul.f32 %v537, %v351
      %v542 = vmul.f32 %v538, %v351
      %v543 = vmul.f32 %v539, %v351
      %v544 = vadd.f32 %v540, %v358
      %v545 = vadd.f32 %v541, %v358
      %v546 = vadd.f32 %v542, %v358
      %v547 = vadd.f32 %v543, %v358
      %v548 = vmax.f32 %v544, 0.0
      %v549 = vmax.f32 %v545, 0.0
      %v550 = vmax.f32 %v546, 0.0
      %v551 = vmax.f32 %v547, 0.0
      %v552 = vsel %vm415, %v548, 0.0
      %v553 = vsel %vm415, %v549, 0.0
      %v554 = vsel %vm415, %v550, 0.0
      %v555 = vsel %vm415, %v551, 0.0
      %560 = vrot.lane.b32.xlu0 %v552, 16
      %v561 = vpop.permute.xlu0 %560
      %562 = vrot.lane.b32.xlu0 %v553, 16
      %v563 = vpop.permute.xlu0 %562
      %564 = vrot.lane.b32.xlu0 %v554, 16
      %v565 = vpop.permute.xlu0 %564
      %566 = vrot.lane.b32.xlu0 %v555, 16
      %v567 = vpop.permute.xlu0 %566
      %vm572 = vcmask 162944
      %573 = vst.msk [vmem:[#allocation2] sm:$0xff] %vm572, %v561
      %574 = vst.msk [vmem:[#allocation2 + $0x8] sm:$0xff] %vm572, %v563
      %575 = vst.msk [vmem:[#allocation2 + $0x10] sm:$0xff] %vm572, %v565
      %576 = vst.msk [vmem:[#allocation2 + $0x18] sm:$0xff] %vm572, %v567
      %v577 = vld [vmem:[%s493 + $0x1] sm:$0xff]
      %v578 = vld [vmem:[%s493 + $0x11] sm:$0xff]
      %v579 = vld [vmem:[%s493 + $0x21] sm:$0xff]
      %v580 = vld [vmem:[%s493 + $0x31] sm:$0xff]
      %v581 = vmul.f32 %v577, %v351
      %v582 = vmul.f32 %v578, %v351
      %v583 = vmul.f32 %v579, %v351
      %v584 = vmul.f32 %v580, %v351
      %v585 = vadd.f32 %v581, %v358
      %v586 = vadd.f32 %v582, %v358
      %v587 = vadd.f32 %v583, %v358
      %v588 = vadd.f32 %v584, %v358
      %v589 = vmax.f32 %v585, 0.0
      %v590 = vmax.f32 %v586, 0.0
      %v591 = vmax.f32 %v587, 0.0
      %v592 = vmax.f32 %v588, 0.0
      %v593 = vsel %vm467, %v589, 0.0
      %v594 = vsel %vm467, %v590, 0.0
      %v595 = vsel %vm467, %v591, 0.0
      %v596 = vsel %vm467, %v592, 0.0
      %601 = vrot.lane.b32.xlu0 %v593, 20
      %v602 = vpop.permute.xlu0 %601
      %603 = vrot.lane.b32.xlu0 %v594, 20
      %v604 = vpop.permute.xlu0 %603
      %605 = vrot.lane.b32.xlu0 %v595, 20
      %v606 = vpop.permute.xlu0 %605
      %607 = vrot.lane.b32.xlu0 %v596, 20
      %v608 = vpop.permute.xlu0 %607
      %vm613 = vcmask 195744
      %614 = vst.msk [vmem:[#allocation2] sm:$0xff] %vm613, %v602
      %615 = vst.msk [vmem:[#allocation2 + $0x8] sm:$0xff] %vm613, %v604
      %616 = vst.msk [vmem:[#allocation2 + $0x10] sm:$0xff] %vm613, %v606
      %617 = vst.msk [vmem:[#allocation2 + $0x18] sm:$0xff] %vm613, %v608
      %s618 = scalar_lea.vmem %s308, 16
      %v619 = vld [vmem:[%s618] sm:$0xff]
      %v620 = vld [vmem:[%s618 + $0x10] sm:$0xff]
      %v621 = vld [vmem:[%s618 + $0x20] sm:$0xff]
      %v622 = vld [vmem:[%s618 + $0x30] sm:$0xff]
      %v623 = vmul.f32 %v619, %v351
      %v624 = vmul.f32 %v620, %v351
      %v625 = vmul.f32 %v621, %v351
      %v626 = vmul.f32 %v622, %v351
      %v627 = vadd.f32 %v623, %v358
      %v628 = vadd.f32 %v624, %v358
      %v629 = vadd.f32 %v625, %v358
      %v630 = vadd.f32 %v626, %v358
      %v631 = vmax.f32 %v627, 0.0
      %v632 = vmax.f32 %v628, 0.0
      %v633 = vmax.f32 %v629, 0.0
      %v634 = vmax.f32 %v630, 0.0
      %v635 = vsel %vm378, %v631, 0.0
      %v636 = vsel %vm378, %v632, 0.0
      %v637 = vsel %vm378, %v633, 0.0
      %v638 = vsel %vm378, %v634, 0.0
      %643 = vrot.lane.b32.xlu0 %v635, 24
      %v644 = vpop.permute.xlu0 %643
      %645 = vrot.lane.b32.xlu0 %v636, 24
      %v646 = vpop.permute.xlu0 %645
      %647 = vrot.lane.b32.xlu0 %v637, 24
      %v648 = vpop.permute.xlu0 %647
      %649 = vrot.lane.b32.xlu0 %v638, 24
      %v650 = vpop.permute.xlu0 %649
      %vm655 = vcmask 228544
      %656 = vst.msk [vmem:[#allocation2] sm:$0xff] %vm655, %v644
      %657 = vst.msk [vmem:[#allocation2 + $0x8] sm:$0xff] %vm655, %v646
      %658 = vst.msk [vmem:[#allocation2 + $0x10] sm:$0xff] %vm655, %v648
      %659 = vst.msk [vmem:[#allocation2 + $0x18] sm:$0xff] %vm655, %v650
      %s660 = scalar_lea.vmem %s308, 160
      %v661 = vld [vmem:[%s660] sm:$0xff]
      %v662 = vld [vmem:[%s660 + $0x10] sm:$0xff]
      %v663 = vld [vmem:[%s660 + $0x20] sm:$0xff]
      %v664 = vld [vmem:[%s660 + $0x30] sm:$0xff]
      %v665 = vmul.f32 %v661, %v351
      %v666 = vmul.f32 %v662, %v351
      %v667 = vmul.f32 %v663, %v351
      %v668 = vmul.f32 %v664, %v351
      %v669 = vadd.f32 %v665, %v358
      %v670 = vadd.f32 %v666, %v358
      %v671 = vadd.f32 %v667, %v358
      %v672 = vadd.f32 %v668, %v358
      %v673 = vmax.f32 %v669, 0.0
      %v674 = vmax.f32 %v670, 0.0
      %v675 = vmax.f32 %v671, 0.0
      %v676 = vmax.f32 %v672, 0.0
      %v677 = vsel %vm415, %v673, 0.0
      %v678 = vsel %vm415, %v674, 0.0
      %v679 = vsel %vm415, %v675, 0.0
      %v680 = vsel %vm415, %v676, 0.0
      %685 = vrot.lane.b32.xlu0 %v677, 28
      %v686 = vpop.permute.xlu0 %685
      %687 = vrot.lane.b32.xlu0 %v678, 28
      %v688 = vpop.permute.xlu0 %687
      %689 = vrot.lane.b32.xlu0 %v679, 28
      %v690 = vpop.permute.xlu0 %689
      %691 = vrot.lane.b32.xlu0 %v680, 28
      %v692 = vpop.permute.xlu0 %691
      %vm697 = vcmask 261344
      %698 = vst.msk [vmem:[#allocation2] sm:$0xff] %vm697, %v686
      %699 = vst.msk [vmem:[#allocation2 + $0x8] sm:$0xff] %vm697, %v688
      %700 = vst.msk [vmem:[#allocation2 + $0x10] sm:$0xff] %vm697, %v690
      %701 = vst.msk [vmem:[#allocation2 + $0x18] sm:$0xff] %vm697, %v692
      %v702 = vld [vmem:[%s618 + $0x1] sm:$0xff]
      %v703 = vld [vmem:[%s618 + $0x11] sm:$0xff]
      %v704 = vld [vmem:[%s618 + $0x21] sm:$0xff]
      %v705 = vld [vmem:[%s618 + $0x31] sm:$0xff]
      %v706 = vmul.f32 %v702, %v351
      %v707 = vmul.f32 %v703, %v351
      %v708 = vmul.f32 %v704, %v351
      %v709 = vmul.f32 %v705, %v351
      %v710 = vadd.f32 %v706, %v358
      %v711 = vadd.f32 %v707, %v358
      %v712 = vadd.f32 %v708, %v358
      %v713 = vadd.f32 %v709, %v358
      %v714 = vmax.f32 %v710, 0.0
      %v715 = vmax.f32 %v711, 0.0
      %v716 = vmax.f32 %v712, 0.0
      %v717 = vmax.f32 %v713, 0.0
      %v718 = vsel %vm467, %v714, 0.0
      %v719 = vsel %vm467, %v715, 0.0
      %v720 = vsel %vm467, %v716, 0.0
      %v721 = vsel %vm467, %v717, 0.0
      %726 = vrot.lane.b32.xlu0 %v718, 32
      %v727 = vpop.permute.xlu0 %726
      %728 = vrot.lane.b32.xlu0 %v719, 32
      %v729 = vpop.permute.xlu0 %728
      %730 = vrot.lane.b32.xlu0 %v720, 32
      %v731 = vpop.permute.xlu0 %730
      %732 = vrot.lane.b32.xlu0 %v721, 32
      %v733 = vpop.permute.xlu0 %732
      %vm738 = vcmask 294144
      %739 = vst.msk [vmem:[#allocation2] sm:$0xff] %vm738, %v727
      %740 = vst.msk [vmem:[#allocation2 + $0x8] sm:$0xff] %vm738, %v729
      %741 = vst.msk [vmem:[#allocation2 + $0x10] sm:$0xff] %vm738, %v731
      %742 = vst.msk [vmem:[#allocation2 + $0x18] sm:$0xff] %vm738, %v733
      %v743 = vld [vmem:[#allocation2] sm:$0xff]
      %v744 = vld [vmem:[#allocation2 + $0x8] sm:$0xff]
      %v745 = vld [vmem:[#allocation2 + $0x10] sm:$0xff]
      %v746 = vld [vmem:[#allocation2 + $0x18] sm:$0xff]
      %v747 = vpack.c.bf16 %v744, %v743
      %v748 = vpack.c.bf16 %v746, %v745
      %v749 = vld [vmem:[%s5] sm:$0xf]
      %v750 = vld [vmem:[%s5 + $0x4] sm:$0xf]
      %v751 = vld [vmem:[%s5 + $0x8] sm:$0xf]
      %v752 = vld [vmem:[%s5 + $0xc] sm:$0xf]
      %v753 = vld [vmem:[%s5 + $0x10] sm:$0x3]
      %v759 = vunpack.c.l.b16 %v749
      %v760 = vunpack.c.l.b16 %v750
      %v761 = vunpack.c.l.b16 %v751
      %v762 = vunpack.c.l.b16 %v752
      %v763 = vunpack.c.l.b16 %v753
      %v764 = vpack.c.b16 %v760, %v759
      %v765 = vpack.c.b16 %v762, %v761
      %v766 = vpack.c.b16 %v763, %v763
      %vm769 = vcmask 293888
      %v771 = vsel %vm769, %v747, 0
      %v774 = vsel %vm769, %v748, 0
      %vm776 = vcmask 1041408
      %v778 = vsel %vm776, %v766, 0
      %780 = vmatpush.bf16.msra.mxu0 0
      %781 = vmatpush.bf16.msra.mxu0 0
      %782 = vmatpush.bf16.msra.mxu0 0
      %783 = vmatpush.bf16.msra.mxu0 0
      %784 = vmatpush.bf16.msra.mxu0 0
      %785 = vmatpush.bf16.msra.mxu0 %v778
      %786 = vmatpush.bf16.msra.mxu0 %v765
      %787 = vmatpush.bf16.msra.mxu0 %v764
      %788 = vmatmul.bf16.gmra.mxu0 %v771
      %v789 = vpop.f32.mrf.mxu0
      %v790 = vadd.f32 0.0, %v789
      %v791 = vpop.f32.mrf.mxu0
      %v792 = vadd.f32 0.0, %v791
      %793 = vmatmul.bf16.gmra.mxu0 %v774
      %v794 = vpop.f32.mrf.mxu0
      %v795 = vadd.f32 0.0, %v794
      %v796 = vpop.f32.mrf.mxu0
      %v797 = vadd.f32 0.0, %v796
      %798 = vdwg.mxu0
      %v799 = vld [vmem:[%s3] sm:$0x1]
      %v801 = vperm.slane %v799, 0
      %v803 = vmul.f32 %v790, %v801
      %v804 = vmul.f32 %v792, %v801
      %v805 = vmul.f32 %v795, %v801
      %v806 = vmul.f32 %v797, %v801
      %v807 = vld [vmem:[%s4] sm:$0x1]
      %v809 = vperm.slane %v807, 0
      %v811 = vadd.f32 %v803, %v809
      %v812 = vadd.f32 %v804, %v809
      %v813 = vadd.f32 %v805, %v809
      %v814 = vadd.f32 %v806, %v809
      %v815 = vmax.f32 %v811, 0.0
      %v816 = vmax.f32 %v812, 0.0
      %v817 = vmax.f32 %v813, 0.0
      %v818 = vmax.f32 %v814, 0.0
      %s819 = scalar_lea.vmem %s313, 16
      %820 = vst.msk [vmem:[%s819 + $0x1] sm:$0xff] %vm320, %v815
      %821 = vst.msk [vmem:[%s819 + $0x11] sm:$0xff] %vm320, %v816
      %822 = vst.msk [vmem:[%s819 + $0x21] sm:$0xff] %vm320, %v817
      %823 = vst.msk [vmem:[%s819 + $0x31] sm:$0xff] %vm320, %v818
      %v824 = vpack.c.bf16 %v553, %v552
      %v825 = vpack.c.bf16 %v555, %v554
      %v826 = vld [vmem:[%s6] sm:$0x3]
      %v828 = vsel %vm383, %v824, 0
      %v831 = vsel %vm383, %v825, 0
      %v834 = vsel %vm776, %v826, 0
      %836 = vmatpush.bf16.msra.mxu0 0
      %837 = vmatpush.bf16.msra.mxu0 0
      %838 = vmatpush.bf16.msra.mxu0 0
      %839 = vmatpush.bf16.msra.mxu0 0
      %840 = vmatpush.bf16.msra.mxu0 0
      %841 = vmatpush.bf16.msra.mxu0 0
      %842 = vmatpush.bf16.msra.mxu0 0
      %843 = vmatpush.bf16.msra.mxu0 %v834
      %844 = vmatmul.bf16.gmra.mxu0 %v828
      %v845 = vpop.f32.mrf.mxu0
      %v846 = vadd.f32 0.0, %v845
      %v847 = vpop.f32.mrf.mxu0
      %v848 = vadd.f32 0.0, %v847
      %849 = vmatmul.bf16.gmra.mxu0 %v831
      %v850 = vpop.f32.mrf.mxu0
      %v851 = vadd.f32 0.0, %v850
      %v852 = vpop.f32.mrf.mxu0
      %v853 = vadd.f32 0.0, %v852
      %854 = vdwg.mxu0
      %855 = vst.msk [vmem:[%s318] sm:$0xff] %vm320, %v846
      %856 = vst.msk [vmem:[%s318 + $0x8] sm:$0xff] %vm320, %v848
      %857 = vst.msk [vmem:[%s318 + $0x10] sm:$0xff] %vm320, %v851
      %858 = vst.msk [vmem:[%s318 + $0x18] sm:$0xff] %vm320, %v853
      %s859 = scalar_lea.vmem %s308, 64
      %v860 = vld [vmem:[%s859] sm:$0xff]
      %v861 = vld [vmem:[%s859 + $0x10] sm:$0xff]
      %v862 = vld [vmem:[%s859 + $0x20] sm:$0xff]
      %v863 = vld [vmem:[%s859 + $0x30] sm:$0xff]
      %v864 = vmul.f32 %v860, %v351
      %v865 = vmul.f32 %v861, %v351
      %v866 = vmul.f32 %v862, %v351
      %v867 = vmul.f32 %v863, %v351
      %v868 = vadd.f32 %v864, %v358
      %v869 = vadd.f32 %v865, %v358
      %v870 = vadd.f32 %v866, %v358
      %v871 = vadd.f32 %v867, %v358
      %v872 = vmax.f32 %v868, 0.0
      %v873 = vmax.f32 %v869, 0.0
      %v874 = vmax.f32 %v870, 0.0
      %v875 = vmax.f32 %v871, 0.0
      %v876 = vsel %vm378, %v872, 0.0
      %v877 = vsel %vm378, %v873, 0.0
      %v878 = vsel %vm378, %v874, 0.0
      %v879 = vsel %vm378, %v875, 0.0
      %880 = vst.msk [vmem:[#allocation2] sm:$0xff] %vm383, %v876
      %881 = vst.msk [vmem:[#allocation2 + $0x8] sm:$0xff] %vm383, %v877
      %882 = vst.msk [vmem:[#allocation2 + $0x10] sm:$0xff] %vm383, %v878
      %883 = vst.msk [vmem:[#allocation2 + $0x18] sm:$0xff] %vm383, %v879
      %s884 = scalar_lea.vmem %s308, 208
      %v885 = vld [vmem:[%s884] sm:$0xff]
      %v886 = vld [vmem:[%s884 + $0x10] sm:$0xff]
      %v887 = vld [vmem:[%s884 + $0x20] sm:$0xff]
      %v888 = vld [vmem:[%s884 + $0x30] sm:$0xff]
      %v889 = vmul.f32 %v885, %v351
      %v890 = vmul.f32 %v886, %v351
      %v891 = vmul.f32 %v887, %v351
      %v892 = vmul.f32 %v888, %v351
      %v893 = vadd.f32 %v889, %v358
      %v894 = vadd.f32 %v890, %v358
      %v895 = vadd.f32 %v891, %v358
      %v896 = vadd.f32 %v892, %v358
      %v897 = vmax.f32 %v893, 0.0
      %v898 = vmax.f32 %v894, 0.0
      %v899 = vmax.f32 %v895, 0.0
      %v900 = vmax.f32 %v896, 0.0
      %v901 = vsel %vm415, %v897, 0.0
      %v902 = vsel %vm415, %v898, 0.0
      %v903 = vsel %vm415, %v899, 0.0
      %v904 = vsel %vm415, %v900, 0.0
      %909 = vrot.lane.b32.xlu0 %v901, 4
      %v910 = vpop.permute.xlu0 %909
      %911 = vrot.lane.b32.xlu0 %v902, 4
      %v912 = vpop.permute.xlu0 %911
      %913 = vrot.lane.b32.xlu0 %v903, 4
      %v914 = vpop.permute.xlu0 %913
      %915 = vrot.lane.b32.xlu0 %v904, 4
      %v916 = vpop.permute.xlu0 %915
      %921 = vst.msk [vmem:[#allocation2] sm:$0xff] %vm436, %v910
      %922 = vst.msk [vmem:[#allocation2 + $0x8] sm:$0xff] %vm436, %v912
      %923 = vst.msk [vmem:[#allocation2 + $0x10] sm:$0xff] %vm436, %v914
      %924 = vst.msk [vmem:[#allocation2 + $0x18] sm:$0xff] %vm436, %v916
      %v925 = vld [vmem:[%s859 + $0x1] sm:$0xff]
      %v926 = vld [vmem:[%s859 + $0x11] sm:$0xff]
      %v927 = vld [vmem:[%s859 + $0x21] sm:$0xff]
      %v928 = vld [vmem:[%s859 + $0x31] sm:$0xff]
      %v929 = vmul.f32 %v925, %v351
      %v930 = vmul.f32 %v926, %v351
      %v931 = vmul.f32 %v927, %v351
      %v932 = vmul.f32 %v928, %v351
      %v933 = vadd.f32 %v929, %v358
      %v934 = vadd.f32 %v930, %v358
      %v935 = vadd.f32 %v931, %v358
      %v936 = vadd.f32 %v932, %v358
      %v937 = vmax.f32 %v933, 0.0
      %v938 = vmax.f32 %v934, 0.0
      %v939 = vmax.f32 %v935, 0.0
      %v940 = vmax.f32 %v936, 0.0
      %v941 = vsel %vm467, %v937, 0.0
      %v942 = vsel %vm467, %v938, 0.0
      %v943 = vsel %vm467, %v939, 0.0
      %v944 = vsel %vm467, %v940, 0.0
      %949 = vrot.lane.b32.xlu0 %v941, 8
      %v950 = vpop.permute.xlu0 %949
      %951 = vrot.lane.b32.xlu0 %v942, 8
      %v952 = vpop.permute.xlu0 %951
      %953 = vrot.lane.b32.xlu0 %v943, 8
      %v954 = vpop.permute.xlu0 %953
      %955 = vrot.lane.b32.xlu0 %v944, 8
      %v956 = vpop.permute.xlu0 %955
      %961 = vst.msk [vmem:[#allocation2] sm:$0xff] %vm488, %v950
      %962 = vst.msk [vmem:[#allocation2 + $0x8] sm:$0xff] %vm488, %v952
      %963 = vst.msk [vmem:[#allocation2 + $0x10] sm:$0xff] %vm488, %v954
      %964 = vst.msk [vmem:[#allocation2 + $0x18] sm:$0xff] %vm488, %v956
      %s965 = scalar_lea.vmem %s308, 352
      %v966 = vld [vmem:[%s965] sm:$0xff]
      %v967 = vld [vmem:[%s965 + $0x10] sm:$0xff]
      %v968 = vld [vmem:[%s965 + $0x20] sm:$0xff]
      %v969 = vld [vmem:[%s965 + $0x30] sm:$0xff]
      %v970 = vmul.f32 %v966, %v351
      %v971 = vmul.f32 %v967, %v351
      %v972 = vmul.f32 %v968, %v351
      %v973 = vmul.f32 %v969, %v351
      %v974 = vadd.f32 %v970, %v358
      %v975 = vadd.f32 %v971, %v358
      %v976 = vadd.f32 %v972, %v358
      %v977 = vadd.f32 %v973, %v358
      %v978 = vmax.f32 %v974, 0.0
      %v979 = vmax.f32 %v975, 0.0
      %v980 = vmax.f32 %v976, 0.0
      %v981 = vmax.f32 %v977, 0.0
      %v982 = vsel %vm378, %v978, 0.0
      %v983 = vsel %vm378, %v979, 0.0
      %v984 = vsel %vm378, %v980, 0.0
      %v985 = vsel %vm378, %v981, 0.0
      %990 = vrot.lane.b32.xlu0 %v982, 12
      %v991 = vpop.permute.xlu0 %990
      %992 = vrot.lane.b32.xlu0 %v983, 12
      %v993 = vpop.permute.xlu0 %992
      %994 = vrot.lane.b32.xlu0 %v984, 12
      %v995 = vpop.permute.xlu0 %994
      %996 = vrot.lane.b32.xlu0 %v985, 12
      %v997 = vpop.permute.xlu0 %996
      %1002 = vst.msk [vmem:[#allocation2] sm:$0xff] %vm530, %v991
      %1003 = vst.msk [vmem:[#allocation2 + $0x8] sm:$0xff] %vm530, %v993
      %1004 = vst.msk [vmem:[#allocation2 + $0x10] sm:$0xff] %vm530, %v995
      %1005 = vst.msk [vmem:[#allocation2 + $0x18] sm:$0xff] %vm530, %v997
      %s1006 = scalar_lea.vmem %s308, 496
      %v1007 = vld [vmem:[%s1006] sm:$0xff]
      %v1008 = vld [vmem:[%s1006 + $0x10] sm:$0xff]
      %v1009 = vld [vmem:[%s1006 + $0x20] sm:$0xff]
      %v1010 = vld [vmem:[%s1006 + $0x30] sm:$0xff]
      %v1011 = vmul.f32 %v1007, %v351
      %v1012 = vmul.f32 %v1008, %v351
      %v1013 = vmul.f32 %v1009, %v351
      %v1014 = vmul.f32 %v1010, %v351
      %v1015 = vadd.f32 %v1011, %v358
      %v1016 = vadd.f32 %v1012, %v358
      %v1017 = vadd.f32 %v1013, %v358
      %v1018 = vadd.f32 %v1014, %v358
      %v1019 = vmax.f32 %v1015, 0.0
      %v1020 = vmax.f32 %v1016, 0.0
      %v1021 = vmax.f32 %v1017, 0.0
      %v1022 = vmax.f32 %v1018, 0.0
      %v1023 = vsel %vm415, %v1019, 0.0
      %v1024 = vsel %vm415, %v1020, 0.0
      %v1025 = vsel %vm415, %v1021, 0.0
      %v1026 = vsel %vm415, %v1022, 0.0
      %1031 = vrot.lane.b32.xlu0 %v1023, 16
      %v1032 = vpop.permute.xlu0 %1031
      %1033 = vrot.lane.b32.xlu0 %v1024, 16
      %v1034 = vpop.permute.xlu0 %1033
      %1035 = vrot.lane.b32.xlu0 %v1025, 16
      %v1036 = vpop.permute.xlu0 %1035
      %1037 = vrot.lane.b32.xlu0 %v1026, 16
      %v1038 = vpop.permute.xlu0 %1037
      %1043 = vst.msk [vmem:[#allocation2] sm:$0xff] %vm572, %v1032
      %1044 = vst.msk [vmem:[#allocation2 + $0x8] sm:$0xff] %vm572, %v1034
      %1045 = vst.msk [vmem:[#allocation2 + $0x10] sm:$0xff] %vm572, %v1036
      %1046 = vst.msk [vmem:[#allocation2 + $0x18] sm:$0xff] %vm572, %v1038
      %v1047 = vld [vmem:[%s965 + $0x1] sm:$0xff]
      %v1048 = vld [vmem:[%s965 + $0x11] sm:$0xff]
      %v1049 = vld [vmem:[%s965 + $0x21] sm:$0xff]
      %v1050 = vld [vmem:[%s965 + $0x31] sm:$0xff]
      %v1051 = vmul.f32 %v1047, %v351
      %v1052 = vmul.f32 %v1048, %v351
      %v1053 = vmul.f32 %v1049, %v351
      %v1054 = vmul.f32 %v1050, %v351
      %v1055 = vadd.f32 %v1051, %v358
      %v1056 = vadd.f32 %v1052, %v358
      %v1057 = vadd.f32 %v1053, %v358
      %v1058 = vadd.f32 %v1054, %v358
      %v1059 = vmax.f32 %v1055, 0.0
      %v1060 = vmax.f32 %v1056, 0.0
      %v1061 = vmax.f32 %v1057, 0.0
      %v1062 = vmax.f32 %v1058, 0.0
      %v1063 = vsel %vm467, %v1059, 0.0
      %v1064 = vsel %vm467, %v1060, 0.0
      %v1065 = vsel %vm467, %v1061, 0.0
      %v1066 = vsel %vm467, %v1062, 0.0
      %1071 = vrot.lane.b32.xlu0 %v1063, 20
      %v1072 = vpop.permute.xlu0 %1071
      %1073 = vrot.lane.b32.xlu0 %v1064, 20
      %v1074 = vpop.permute.xlu0 %1073
      %1075 = vrot.lane.b32.xlu0 %v1065, 20
      %v1076 = vpop.permute.xlu0 %1075
      %1077 = vrot.lane.b32.xlu0 %v1066, 20
      %v1078 = vpop.permute.xlu0 %1077
      %1083 = vst.msk [vmem:[#allocation2] sm:$0xff] %vm613, %v1072
      %1084 = vst.msk [vmem:[#allocation2 + $0x8] sm:$0xff] %vm613, %v1074
      %1085 = vst.msk [vmem:[#allocation2 + $0x10] sm:$0xff] %vm613, %v1076
      %1086 = vst.msk [vmem:[#allocation2 + $0x18] sm:$0xff] %vm613, %v1078
      %s1087 = scalar_lea.vmem %s308, 80
      %v1088 = vld [vmem:[%s1087] sm:$0xff]
      %v1089 = vld [vmem:[%s1087 + $0x10] sm:$0xff]
      %v1090 = vld [vmem:[%s1087 + $0x20] sm:$0xff]
      %v1091 = vld [vmem:[%s1087 + $0x30] sm:$0xff]
      %v1092 = vmul.f32 %v1088, %v351
      %v1093 = vmul.f32 %v1089, %v351
      %v1094 = vmul.f32 %v1090, %v351
      %v1095 = vmul.f32 %v1091, %v351
      %v1096 = vadd.f32 %v1092, %v358
      %v1097 = vadd.f32 %v1093, %v358
      %v1098 = vadd.f32 %v1094, %v358
      %v1099 = vadd.f32 %v1095, %v358
      %v1100 = vmax.f32 %v1096, 0.0
      %v1101 = vmax.f32 %v1097, 0.0
      %v1102 = vmax.f32 %v1098, 0.0
      %v1103 = vmax.f32 %v1099, 0.0
      %v1104 = vsel %vm378, %v1100, 0.0
      %v1105 = vsel %vm378, %v1101, 0.0
      %v1106 = vsel %vm378, %v1102, 0.0
      %v1107 = vsel %vm378, %v1103, 0.0
      %1112 = vrot.lane.b32.xlu0 %v1104, 24
      %v1113 = vpop.permute.xlu0 %1112
      %1114 = vrot.lane.b32.xlu0 %v1105, 24
      %v1115 = vpop.permute.xlu0 %1114
      %1116 = vrot.lane.b32.xlu0 %v1106, 24
      %v1117 = vpop.permute.xlu0 %1116
      %1118 = vrot.lane.b32.xlu0 %v1107, 24
      %v1119 = vpop.permute.xlu0 %1118
      %1124 = vst.msk [vmem:[#allocation2] sm:$0xff] %vm655, %v1113
      %1125 = vst.msk [vmem:[#allocation2 + $0x8] sm:$0xff] %vm655, %v1115
      %1126 = vst.msk [vmem:[#allocation2 + $0x10] sm:$0xff] %vm655, %v1117
      %1127 = vst.msk [vmem:[#allocation2 + $0x18] sm:$0xff] %vm655, %v1119
      %s1128 = scalar_lea.vmem %s308, 224
      %v1129 = vld [vmem:[%s1128] sm:$0xff]
      %v1130 = vld [vmem:[%s1128 + $0x10] sm:$0xff]
      %v1131 = vld [vmem:[%s1128 + $0x20] sm:$0xff]
      %v1132 = vld [vmem:[%s1128 + $0x30] sm:$0xff]
      %v1133 = vmul.f32 %v1129, %v351
      %v1134 = vmul.f32 %v1130, %v351
      %v1135 = vmul.f32 %v1131, %v351
      %v1136 = vmul.f32 %v1132, %v351
      %v1137 = vadd.f32 %v1133, %v358
      %v1138 = vadd.f32 %v1134, %v358
      %v1139 = vadd.f32 %v1135, %v358
      %v1140 = vadd.f32 %v1136, %v358
      %v1141 = vmax.f32 %v1137, 0.0
      %v1142 = vmax.f32 %v1138, 0.0
      %v1143 = vmax.f32 %v1139, 0.0
      %v1144 = vmax.f32 %v1140, 0.0
      %v1145 = vsel %vm415, %v1141, 0.0
      %v1146 = vsel %vm415, %v1142, 0.0
      %v1147 = vsel %vm415, %v1143, 0.0
      %v1148 = vsel %vm415, %v1144, 0.0
      %1153 = vrot.lane.b32.xlu0 %v1145, 28
      %v1154 = vpop.permute.xlu0 %1153
      %1155 = vrot.lane.b32.xlu0 %v1146, 28
      %v1156 = vpop.permute.xlu0 %1155
      %1157 = vrot.lane.b32.xlu0 %v1147, 28
      %v1158 = vpop.permute.xlu0 %1157
      %1159 = vrot.lane.b32.xlu0 %v1148, 28
      %v1160 = vpop.permute.xlu0 %1159
      %1165 = vst.msk [vmem:[#allocation2] sm:$0xff] %vm697, %v1154
      %1166 = vst.msk [vmem:[#allocation2 + $0x8] sm:$0xff] %vm697, %v1156
      %1167 = vst.msk [vmem:[#allocation2 + $0x10] sm:$0xff] %vm697, %v1158
      %1168 = vst.msk [vmem:[#allocation2 + $0x18] sm:$0xff] %vm697, %v1160
      %v1169 = vld [vmem:[%s1087 + $0x1] sm:$0xff]
      %v1170 = vld [vmem:[%s1087 + $0x11] sm:$0xff]
      %v1171 = vld [vmem:[%s1087 + $0x21] sm:$0xff]
      %v1172 = vld [vmem:[%s1087 + $0x31] sm:$0xff]
      %v1173 = vmul.f32 %v1169, %v351
      %v1174 = vmul.f32 %v1170, %v351
      %v1175 = vmul.f32 %v1171, %v351
      %v1176 = vmul.f32 %v1172, %v351
      %v1177 = vadd.f32 %v1173, %v358
      %v1178 = vadd.f32 %v1174, %v358
      %v1179 = vadd.f32 %v1175, %v358
      %v1180 = vadd.f32 %v1176, %v358
      %v1181 = vmax.f32 %v1177, 0.0
      %v1182 = vmax.f32 %v1178, 0.0
      %v1183 = vmax.f32 %v1179, 0.0
      %v1184 = vmax.f32 %v1180, 0.0
      %v1185 = vsel %vm467, %v1181, 0.0
      %v1186 = vsel %vm467, %v1182, 0.0
      %v1187 = vsel %vm467, %v1183, 0.0
      %v1188 = vsel %vm467, %v1184, 0.0
      %1193 = vrot.lane.b32.xlu0 %v1185, 32
      %v1194 = vpop.permute.xlu0 %1193
      %1195 = vrot.lane.b32.xlu0 %v1186, 32
      %v1196 = vpop.permute.xlu0 %1195
      %1197 = vrot.lane.b32.xlu0 %v1187, 32
      %v1198 = vpop.permute.xlu0 %1197
      %1199 = vrot.lane.b32.xlu0 %v1188, 32
      %v1200 = vpop.permute.xlu0 %1199
      %1205 = vst.msk [vmem:[#allocation2] sm:$0xff] %vm738, %v1194
      %1206 = vst.msk [vmem:[#allocation2 + $0x8] sm:$0xff] %vm738, %v1196
      %1207 = vst.msk [vmem:[#allocation2 + $0x10] sm:$0xff] %vm738, %v1198
      %1208 = vst.msk [vmem:[#allocation2 + $0x18] sm:$0xff] %vm738, %v1200
      %v1209 = vld [vmem:[#allocation2] sm:$0xff]
      %v1210 = vld [vmem:[#allocation2 + $0x8] sm:$0xff]
      %v1211 = vld [vmem:[#allocation2 + $0x10] sm:$0xff]
      %v1212 = vld [vmem:[#allocation2 + $0x18] sm:$0xff]
      %v1213 = vpack.c.bf16 %v1210, %v1209
      %v1214 = vpack.c.bf16 %v1212, %v1211
      %v1215 = vld [vmem:[%s5] sm:$0xf]
      %v1216 = vld [vmem:[%s5 + $0x4] sm:$0xf]
      %v1217 = vld [vmem:[%s5 + $0x8] sm:$0xf]
      %v1218 = vld [vmem:[%s5 + $0xc] sm:$0xf]
      %v1219 = vld [vmem:[%s5 + $0x10] sm:$0x3]
      %v1225 = vunpack.c.l.b16 %v1215
      %v1226 = vunpack.c.l.b16 %v1216
      %v1227 = vunpack.c.l.b16 %v1217
      %v1228 = vunpack.c.l.b16 %v1218
      %v1229 = vunpack.c.l.b16 %v1219
      %v1230 = vpack.c.b16 %v1226, %v1225
      %v1231 = vpack.c.b16 %v1228, %v1227
      %v1232 = vpack.c.b16 %v1229, %v1229
      %v1236 = vsel %vm769, %v1213, 0
      %v1239 = vsel %vm769, %v1214, 0
      %v1242 = vsel %vm776, %v1232, 0
      %1244 = vmatpush.bf16.msra.mxu0 0
      %1245 = vmatpush.bf16.msra.mxu0 0
      %1246 = vmatpush.bf16.msra.mxu0 0
      %1247 = vmatpush.bf16.msra.mxu0 0
      %1248 = vmatpush.bf16.msra.mxu0 0
      %1249 = vmatpush.bf16.msra.mxu0 %v1242
      %1250 = vmatpush.bf16.msra.mxu0 %v1231
      %1251 = vmatpush.bf16.msra.mxu0 %v1230
      %1252 = vmatmul.bf16.gmra.mxu0 %v1236
      %v1253 = vpop.f32.mrf.mxu0
      %v1254 = vadd.f32 0.0, %v1253
      %v1255 = vpop.f32.mrf.mxu0
      %v1256 = vadd.f32 0.0, %v1255
      %1257 = vmatmul.bf16.gmra.mxu0 %v1239
      %v1258 = vpop.f32.mrf.mxu0
      %v1259 = vadd.f32 0.0, %v1258
      %v1260 = vpop.f32.mrf.mxu0
      %v1261 = vadd.f32 0.0, %v1260
      %1262 = vdwg.mxu0
      %v1263 = vld [vmem:[%s3] sm:$0x1]
      %v1265 = vperm.slane %v1263, 0
      %v1267 = vmul.f32 %v1254, %v1265
      %v1268 = vmul.f32 %v1256, %v1265
      %v1269 = vmul.f32 %v1259, %v1265
      %v1270 = vmul.f32 %v1261, %v1265
      %v1271 = vld [vmem:[%s4] sm:$0x1]
      %v1273 = vperm.slane %v1271, 0
      %v1275 = vadd.f32 %v1267, %v1273
      %v1276 = vadd.f32 %v1268, %v1273
      %v1277 = vadd.f32 %v1269, %v1273
      %v1278 = vadd.f32 %v1270, %v1273
      %v1279 = vmax.f32 %v1275, 0.0
      %v1280 = vmax.f32 %v1276, 0.0
      %v1281 = vmax.f32 %v1277, 0.0
      %v1282 = vmax.f32 %v1278, 0.0
      %s1283 = scalar_lea.vmem %s313, 80
      %1284 = vst.msk [vmem:[%s1283 + $0x1] sm:$0xff] %vm320, %v1279
      %1285 = vst.msk [vmem:[%s1283 + $0x11] sm:$0xff] %vm320, %v1280
      %1286 = vst.msk [vmem:[%s1283 + $0x21] sm:$0xff] %vm320, %v1281
      %1287 = vst.msk [vmem:[%s1283 + $0x31] sm:$0xff] %vm320, %v1282
      %v1288 = vpack.c.bf16 %v1024, %v1023
      %v1289 = vpack.c.bf16 %v1026, %v1025
      %v1290 = vld [vmem:[%s6] sm:$0x3]
      %v1292 = vsel %vm383, %v1288, 0
      %v1295 = vsel %vm383, %v1289, 0
      %v1298 = vsel %vm776, %v1290, 0
      %1300 = vmatpush.bf16.msra.mxu0 0
      %1301 = vmatpush.bf16.msra.mxu0 0
      %1302 = vmatpush.bf16.msra.mxu0 0
      %1303 = vmatpush.bf16.msra.mxu0 0
      %1304 = vmatpush.bf16.msra.mxu0 0
      %1305 = vmatpush.bf16.msra.mxu0 0
      %1306 = vmatpush.bf16.msra.mxu0 0
      %1307 = vmatpush.bf16.msra.mxu0 %v1298
      %1308 = vmatmul.bf16.gmra.mxu0 %v1292
      %v1309 = vpop.f32.mrf.mxu0
      %v1310 = vadd.f32 0.0, %v1309
      %v1311 = vpop.f32.mrf.mxu0
      %v1312 = vadd.f32 0.0, %v1311
      %1313 = vmatmul.bf16.gmra.mxu0 %v1295
      %v1314 = vpop.f32.mrf.mxu0
      %v1315 = vadd.f32 0.0, %v1314
      %v1316 = vpop.f32.mrf.mxu0
      %v1317 = vadd.f32 0.0, %v1316
      %1318 = vdwg.mxu0
      %1319 = vst.msk [vmem:[%s318 + $0x20] sm:$0xff] %vm320, %v1310
      %1320 = vst.msk [vmem:[%s318 + $0x28] sm:$0xff] %vm320, %v1312
      %1321 = vst.msk [vmem:[%s318 + $0x30] sm:$0xff] %vm320, %v1315
      %1322 = vst.msk [vmem:[%s318 + $0x38] sm:$0xff] %vm320, %v1317
      %p1323 = scmp.lt.s32.totalorder %s20, 1
      %s1324 = scalar_select %p1323, %s20, 1
      %s1325 = smul.addr %s1324, 20
      %s1326 = smul.addr %s1325, 8
      %s1327 = scalar_lea.vmem %s7, %s1326
      %p1328 = scmp.lt.s32.totalorder %s20, 1
      %s1329 = scalar_select %p1328, %s20, 1
      %s1330 = smul.addr %s1329, 8
      %s1331 = smul.addr %s1330, 8
      %s1332 = scalar_lea.vmem %s8, %s1331
      // Predicated region
      $region49: #{network_block_forward.4} parent=47 // pred_check
        %p1333 = pneg %p190
      $region50: #{network_block_forward.4} parent=47 // pred_check_branch
        %1335 = sbr.rel (%p1333) target = $region52
      $region51: #{network_block_forward.4} parent=47 // pred_region
        _
      $region52: #{network_block_forward.4} parent=47 // pred_fallthru
        _
      // Predicated region
      $region53: #{network_block_forward.4} parent=47 // pred_check
        %p1336 = pneg %p216
      $region54: #{network_block_forward.4} parent=47 // pred_check_branch
        %1338 = sbr.rel (%p1336) target = $region56
      $region55: #{network_block_forward.4} parent=47 // pred_region
        _
      $region56: #{network_block_forward.4} parent=47 // pred_fallthru
        _
    $region48: #{network_block_forward.4} parent=5 // pred_fallthru
      _
    %p1339 = scmp.le.s32.totalorder 2, %s15
    // Predicated region
    $region57: #{network_block_forward.4} parent=5 // pred_check
      %p1340 = pneg %p1339
    $region58: #{network_block_forward.4} parent=5 // pred_check_branch
      %1342 = sbr.rel (%p1340) target = $region60
    $region59: #{network_block_forward.4} parent=5 // pred_region
      %s1343 = ssub.s32 %s15, 2
      // Predicated region
      $region61: #{network_block_forward.4} parent=59 // pred_check
        %p1344 = pneg %p196
      $region62: #{network_block_forward.4} parent=59 // pred_check_branch
        %1346 = sbr.rel (%p1344) target = $region64
      $region63: #{network_block_forward.4} parent=59 // pred_region
        %p1347 = scmp.lt.s32.totalorder %s21, 1
        %s1348 = scalar_select %p1347, %s21, 1
        %s1349 = smul.addr %s1348, 20
        %s1350 = smul.addr %s1349, 8
        %s1351 = scalar_lea.vmem %s7, %s1350
      $region64: #{network_block_forward.4} parent=59 // pred_fallthru
        _
      // Predicated region
      $region65: #{network_block_forward.4} parent=59 // pred_check
        %p1352 = pneg %p222
      $region66: #{network_block_forward.4} parent=59 // pred_check_branch
        %1354 = sbr.rel (%p1352) target = $region68
      $region67: #{network_block_forward.4} parent=59 // pred_region
        %p1355 = scmp.lt.s32.totalorder %s21, 1
        %s1356 = scalar_select %p1355, %s21, 1
        %s1357 = smul.addr %s1356, 8
        %s1358 = smul.addr %s1357, 8
        %s1359 = scalar_lea.vmem %s8, %s1358
      $region68: #{network_block_forward.4} parent=59 // pred_fallthru
        _
    $region60: #{network_block_forward.4} parent=5 // pred_fallthru
      _
  $region6: #{network_block_forward.4} parent=0 // loop_footer
    %s19 = sadd.s32 1, %s15
  $region7: #{network_block_forward.4} parent=0 // loop_footer_branch
    %14 = sbr.rel target = $region3
  $region8: #{network_block_forward.4} parent=0 // loop_exit
    _

// kernel: network_block_forward.6
$region0: #{network_block_forward.6}
  #allocation0 [shape = 'u32[]', space=smem, size = 0x4, offset = 0x4, fixed_abs, tag = 'smem constant byte address 0x4 - core index']
  #allocation1 [shape = 'u32[72,128]{1,0:T(1,128)}', space=vmem, size = 0x9000, scoped, tag = 'internal scratch']
  #allocation2 [shape = 'f32[32,72]{1,0:T(8,128)}', space=vmem, size = 0x4000, scoped, tag = 'scratch operand']
  %s0 = inlined_call_operand.vmem [shape: f32[2,10,10,8], index: 0, kind: input, shape index: {}]
  %s1 = inlined_call_operand.vmem [shape: f32[1,8], index: 1, kind: input, shape index: {}]
  %s2 = inlined_call_operand.vmem [shape: f32[1,8], index: 2, kind: input, shape index: {}]
  %s3 = inlined_call_operand.vmem [shape: f32[1,8], index: 3, kind: input, shape index: {}]
  %s4 = inlined_call_operand.vmem [shape: f32[1,8], index: 4, kind: input, shape index: {}]
  %s5 = inlined_call_operand.vmem [shape: bf16[72,8], index: 5, kind: input, shape index: {}]
  %s6 = inlined_call_operand.vmem [shape: f32[2,10,10,8], index: 6, kind: output, shape index: {}]
  %s7 = sld [smem:[#allocation0]]
  $region57: #{network_block_forward.6} parent=0
    _
  %s9 = ssub.s32 1, %s7
  %s10 = scalar_select 0, %s9, %s7
  loop: start=0, step=1, limit=4
  $region2: #{network_block_forward.6} parent=0 // loop_pre_header
    _
  $region3: #{network_block_forward.6} parent=0 // loop_header
    %s12 = sphi 0, %s16
    %p13 = scmp.ge.s32.totalorder %s12, 4
    %s22 = sphi 0, %s24
    %s25 = sphi 0, %s22
    %s26 = sphi 0, %s25
    %s42 = sphi 0, %s26
    %s46 = sphi 0, %s46
    %s48 = sphi 0, %s46
    %s49 = sphi 0, %s48
    %s63 = sphi 0, %s49
    %s67 = sphi 0, %s67
    %s69 = sphi 0, %s67
    %s70 = sphi 0, %s69
    %s84 = sphi 0, %s70
    %s88 = sphi 0, %s88
    %s90 = sphi 0, %s88
    %s91 = sphi 0, %s90
    %s105 = sphi 0, %s91
    %s109 = sphi 0, %s109
    %s111 = sphi 0, %s109
    %s112 = sphi 0, %s111
    %s126 = sphi 0, %s112
    %s130 = sphi 0, %s130
    %s132 = sphi 0, %s130
    %s133 = sphi 0, %s132
    %s147 = sphi 0, %s133
    %s153 = sphi 0, %s155
    %s156 = sphi 0, %s153
    %s157 = sphi 0, %s156
    %s173 = sphi 0, %s157
  $region4: #{network_block_forward.6} parent=0 // loop_header_branch
    %15 = sbr.rel (%p13) target = $region8
  $region5: #{network_block_forward.6} parent=0 // loop_body
    %s17 = ssub.s32 %s12, 1
    %s18 = ssub.s32 %s12, 2
    %s19 = sadd.s32 %s12, 1
    %s20 = ssub.s32 %s12, %s19
    %p21 = scmp.eq.s32.totalorder %s20, 0
    %s23 = sadd.s32 %s22, 1
    %s24 = scalar_select %p21, %s22, %s23
    %p27 = pneg %p21
    %p28 = scmp.eq.s32.totalorder %s12, 1
    %p29 = por %p27, %p28
    %p30 = scmp.ne.s32.totalorder %s22, %s25
    %p31 = scmp.eq.s32.totalorder %s12, 0
    %p32 = por %p30, %p31
    %p33 = scmp.ne.s32.totalorder %s22, %s25
    %p34 = scmp.eq.s32.totalorder %s17, 1
    %p35 = por %p33, %p34
    %p36 = scmp.ne.s32.totalorder %s25, %s26
    %p37 = scmp.eq.s32.totalorder %s17, 0
    %p38 = por %p36, %p37
    %p39 = scmp.ne.s32.totalorder %s25, %s26
    %p40 = scmp.eq.s32.totalorder %s18, 1
    %p41 = por %p39, %p40
    %p43 = scmp.ne.s32.totalorder %s26, %s42
    %p44 = scmp.eq.s32.totalorder %s18, 0
    %p45 = por %p43, %p44
    %s47 = sadd.s32 %s46, 1
    %p50 = scmp.eq.s32.totalorder %s12, 1
    %p51 = scmp.ne.s32.totalorder %s46, %s48
    %p52 = scmp.eq.s32.totalorder %s12, 0
    %p53 = por %p51, %p52
    %p54 = scmp.ne.s32.totalorder %s46, %s48
    %p55 = scmp.eq.s32.totalorder %s17, 1
    %p56 = por %p54, %p55
    %p57 = scmp.ne.s32.totalorder %s48, %s49
    %p58 = scmp.eq.s32.totalorder %s17, 0
    %p59 = por %p57, %p58
    %p60 = scmp.ne.s32.totalorder %s48, %s49
    %p61 = scmp.eq.s32.totalorder %s18, 1
    %p62 = por %p60, %p61
    %p64 = scmp.ne.s32.totalorder %s49, %s63
    %p65 = scmp.eq.s32.totalorder %s18, 0
    %p66 = por %p64, %p65
    %s68 = sadd.s32 %s67, 1
    %p71 = scmp.eq.s32.totalorder %s12, 1
    %p72 = scmp.ne.s32.totalorder %s67, %s69
    %p73 = scmp.eq.s32.totalorder %s12, 0
    %p74 = por %p72, %p73
    %p75 = scmp.ne.s32.totalorder %s67, %s69
    %p76 = scmp.eq.s32.totalorder %s17, 1
    %p77 = por %p75, %p76
    %p78 = scmp.ne.s32.totalorder %s69, %s70
    %p79 = scmp.eq.s32.totalorder %s17, 0
    %p80 = por %p78, %p79
    %p81 = scmp.ne.s32.totalorder %s69, %s70
    %p82 = scmp.eq.s32.totalorder %s18, 1
    %p83 = por %p81, %p82
    %p85 = scmp.ne.s32.totalorder %s70, %s84
    %p86 = scmp.eq.s32.totalorder %s18, 0
    %p87 = por %p85, %p86
    %s89 = sadd.s32 %s88, 1
    %p92 = scmp.eq.s32.totalorder %s12, 1
    %p93 = scmp.ne.s32.totalorder %s88, %s90
    %p94 = scmp.eq.s32.totalorder %s12, 0
    %p95 = por %p93, %p94
    %p96 = scmp.ne.s32.totalorder %s88, %s90
    %p97 = scmp.eq.s32.totalorder %s17, 1
    %p98 = por %p96, %p97
    %p99 = scmp.ne.s32.totalorder %s90, %s91
    %p100 = scmp.eq.s32.totalorder %s17, 0
    %p101 = por %p99, %p100
    %p102 = scmp.ne.s32.totalorder %s90, %s91
    %p103 = scmp.eq.s32.totalorder %s18, 1
    %p104 = por %p102, %p103
    %p106 = scmp.ne.s32.totalorder %s91, %s105
    %p107 = scmp.eq.s32.totalorder %s18, 0
    %p108 = por %p106, %p107
    %s110 = sadd.s32 %s109, 1
    %p113 = scmp.eq.s32.totalorder %s12, 1
    %p114 = scmp.ne.s32.totalorder %s109, %s111
    %p115 = scmp.eq.s32.totalorder %s12, 0
    %p116 = por %p114, %p115
    %p117 = scmp.ne.s32.totalorder %s109, %s111
    %p118 = scmp.eq.s32.totalorder %s17, 1
    %p119 = por %p117, %p118
    %p120 = scmp.ne.s32.totalorder %s111, %s112
    %p121 = scmp.eq.s32.totalorder %s17, 0
    %p122 = por %p120, %p121
    %p123 = scmp.ne.s32.totalorder %s111, %s112
    %p124 = scmp.eq.s32.totalorder %s18, 1
    %p125 = por %p123, %p124
    %p127 = scmp.ne.s32.totalorder %s112, %s126
    %p128 = scmp.eq.s32.totalorder %s18, 0
    %p129 = por %p127, %p128
    %s131 = sadd.s32 %s130, 1
    %p134 = scmp.eq.s32.totalorder %s12, 1
    %p135 = scmp.ne.s32.totalorder %s130, %s132
    %p136 = scmp.eq.s32.totalorder %s12, 0
    %p137 = por %p135, %p136
    %p138 = scmp.ne.s32.totalorder %s130, %s132
    %p139 = scmp.eq.s32.totalorder %s17, 1
    %p140 = por %p138, %p139
    %p141 = scmp.ne.s32.totalorder %s132, %s133
    %p142 = scmp.eq.s32.totalorder %s17, 0
    %p143 = por %p141, %p142
    %p144 = scmp.ne.s32.totalorder %s132, %s133
    %p145 = scmp.eq.s32.totalorder %s18, 1
    %p146 = por %p144, %p145
    %p148 = scmp.ne.s32.totalorder %s133, %s147
    %p149 = scmp.eq.s32.totalorder %s18, 0
    %p150 = por %p148, %p149
    %s151 = ssub.s32 %s12, %s19
    %p152 = scmp.eq.s32.totalorder %s151, 0
    %s154 = sadd.s32 %s153, 1
    %s155 = scalar_select %p152, %s153, %s154
    %p158 = pneg %p152
    %p159 = scmp.eq.s32.totalorder %s12, 1
    %p160 = por %p158, %p159
    %p161 = scmp.ne.s32.totalorder %s153, %s156
    %p162 = scmp.eq.s32.totalorder %s12, 0
    %p163 = por %p161, %p162
    %p164 = scmp.ne.s32.totalorder %s153, %s156
    %p165 = scmp.eq.s32.totalorder %s17, 1
    %p166 = por %p164, %p165
    %p167 = scmp.ne.s32.totalorder %s156, %s157
    %p168 = scmp.eq.s32.totalorder %s17, 0
    %p169 = por %p167, %p168
    %p170 = scmp.ne.s32.totalorder %s156, %s157
    %p171 = scmp.eq.s32.totalorder %s18, 1
    %p172 = por %p170, %p171
    %p174 = scmp.ne.s32.totalorder %s157, %s173
    %p175 = scmp.eq.s32.totalorder %s18, 0
    %p176 = por %p174, %p175
    %p177 = scmp.le.s32.totalorder 1, %s12
    %p178 = scmp.lt.s32.totalorder %s12, 3
    %p179 = pnand %p177, %p178
    %p180 = pneg %p179
    // Predicated region
    $region9: #{network_block_forward.6} parent=5 // pred_check
      _
    $region10: #{network_block_forward.6} parent=5 // pred_check_branch
      %182 = sbr.rel (%p179) target = $region12
    $region11: #{network_block_forward.6} parent=5 // pred_region
      %s183 = ssub.s32 %s12, 1
      // Predicated region
      $region13: #{network_block_forward.6} parent=11 // pred_check
        %p184 = pneg %p59
      $region14: #{network_block_forward.6} parent=11 // pred_check_branch
        %186 = sbr.rel (%p184) target = $region16
      $region15: #{network_block_forward.6} parent=11 // pred_region
        _
      $region16: #{network_block_forward.6} parent=11 // pred_fallthru
        _
      // Predicated region
      $region17: #{network_block_forward.6} parent=11 // pred_check
        %p187 = pneg %p80
      $region18: #{network_block_forward.6} parent=11 // pred_check_branch
        %189 = sbr.rel (%p187) target = $region20
      $region19: #{network_block_forward.6} parent=11 // pred_region
        _
      $region20: #{network_block_forward.6} parent=11 // pred_fallthru
        _
      // Predicated region
      $region21: #{network_block_forward.6} parent=11 // pred_check
        %p190 = pneg %p101
      $region22: #{network_block_forward.6} parent=11 // pred_check_branch
        %192 = sbr.rel (%p190) target = $region24
      $region23: #{network_block_forward.6} parent=11 // pred_region
        _
      $region24: #{network_block_forward.6} parent=11 // pred_fallthru
        _
      // Predicated region
      $region25: #{network_block_forward.6} parent=11 // pred_check
        %p193 = pneg %p122
      $region26: #{network_block_forward.6} parent=11 // pred_check_branch
        %195 = sbr.rel (%p193) target = $region28
      $region27: #{network_block_forward.6} parent=11 // pred_region
        _
      $region28: #{network_block_forward.6} parent=11 // pred_fallthru
        _
      // Predicated region
      $region29: #{network_block_forward.6} parent=11 // pred_check
        %p196 = pneg %p143
      $region30: #{network_block_forward.6} parent=11 // pred_check_branch
        %198 = sbr.rel (%p196) target = $region32
      $region31: #{network_block_forward.6} parent=11 // pred_region
        _
      $region32: #{network_block_forward.6} parent=11 // pred_fallthru
        _
    $region12: #{network_block_forward.6} parent=5 // pred_fallthru
      _
    %p199 = scmp.lt.s32.totalorder %s12, 2
    // Predicated region
    $region33: #{network_block_forward.6} parent=5 // pred_check
      %p200 = pneg %p199
    $region34: #{network_block_forward.6} parent=5 // pred_check_branch
      %202 = sbr.rel (%p200) target = $region36
    $region35: #{network_block_forward.6} parent=5 // pred_region
      // Predicated region
      $region37: #{network_block_forward.6} parent=35 // pred_check
        %p203 = pneg %p32
      $region38: #{network_block_forward.6} parent=35 // pred_check_branch
        %205 = sbr.rel (%p203) target = $region40
      $region39: #{network_block_forward.6} parent=35 // pred_region
        %p206 = scmp.lt.s32.totalorder %s12, 1
        %s207 = scalar_select %p206, %s12, 1
        %s208 = smul.addr %s207, 20
        %s209 = smul.addr %s208, 8
        %s210 = scalar_lea.vmem %s0, %s209
      $region40: #{network_block_forward.6} parent=35 // pred_fallthru
        _
    $region36: #{network_block_forward.6} parent=5 // pred_fallthru
      _
    %p211 = scmp.le.s32.totalorder 1, %s12
    %p212 = scmp.lt.s32.totalorder %s12, 3
    %p213 = pnand %p211, %p212
    %p214 = pneg %p213
    // Predicated region
    $region41: #{network_block_forward.6} parent=5 // pred_check
      _
    $region42: #{network_block_forward.6} parent=5 // pred_check_branch
      %216 = sbr.rel (%p213) target = $region44
    $region43: #{network_block_forward.6} parent=5 // pred_region
      %s217 = ssub.s32 %s12, 1
      %p218 = scmp.lt.s32.totalorder %s17, 1
      %s219 = scalar_select %p218, %s17, 1
      %s220 = smul.addr %s219, 20
      %s221 = smul.addr %s220, 8
      %s222 = scalar_lea.vmem %s0, %s221
      %p223 = pneg %p38
      %p224 = pneg %p35
      %p225 = pneg %p59
      %p226 = pneg %p56
      %p227 = pneg %p80
      %p228 = pneg %p77
      %p229 = pneg %p101
      %p230 = pneg %p98
      %p231 = pneg %p122
      %p232 = pneg %p119
      %p233 = pneg %p143
      %p234 = pneg %p140
      %p235 = pneg %p169
      %p236 = pneg %p166
      %p237 = scmp.lt.s32.totalorder %s17, 1
      %s238 = scalar_select %p237, %s17, 1
      %s239 = smul.addr %s238, 20
      %s240 = smul.addr %s239, 8
      %s241 = scalar_lea.vmem %s6, %s240
      %p242 = scmp.lt.s32.totalorder %s17, 1
      %s243 = scalar_select %p242, %s17, 1
      %s244 = smul.addr %s243, 20
      %s245 = smul.addr %s244, 8
      %s246 = scalar_lea.vmem %s0, %s245
      %p247 = scmp.lt.s32.totalorder %s17, 1
      %s248 = scalar_select %p247, %s17, 1
      %s249 = smul.addr %s248, 20
      %s250 = smul.addr %s249, 8
      %s251 = scalar_lea.vmem %s6, %s250
      %vm253 = vcmask 64512
      %254 = vst.msk [vmem:[%s251] sm:$0xff] %vm253, 0.0
      %vm255 = vcmask 58368
      %256 = vst.msk [vmem:[%s251 + $0x8] sm:$0x3] %vm255, 0.0
      %257 = vst.msk [vmem:[%s251 + $0x10] sm:$0xff] %vm253, 0.0
      %258 = vst.msk [vmem:[%s251 + $0x18] sm:$0x3] %vm255, 0.0
      %259 = vst.msk [vmem:[%s251 + $0x20] sm:$0xff] %vm253, 0.0
      %260 = vst.msk [vmem:[%s251 + $0x28] sm:$0x3] %vm255, 0.0
      %261 = vst.msk [vmem:[%s251 + $0x30] sm:$0xff] %vm253, 0.0
      %262 = vst.msk [vmem:[%s251 + $0x38] sm:$0x3] %vm255, 0.0
      %263 = vst.msk [vmem:[%s251 + $0x40] sm:$0xff] %vm253, 0.0
      %264 = vst.msk [vmem:[%s251 + $0x48] sm:$0x3] %vm255, 0.0
      %265 = vst.msk [vmem:[%s251 + $0x50] sm:$0xff] %vm253, 0.0
      %266 = vst.msk [vmem:[%s251 + $0x58] sm:$0x3] %vm255, 0.0
      %267 = vst.msk [vmem:[%s251 + $0x60] sm:$0xff] %vm253, 0.0
      %268 = vst.msk [vmem:[%s251 + $0x68] sm:$0x3] %vm255, 0.0
      %269 = vst.msk [vmem:[%s251 + $0x70] sm:$0xff] %vm253, 0.0
      %270 = vst.msk [vmem:[%s251 + $0x78] sm:$0x3] %vm255, 0.0
      %271 = vst.msk [vmem:[%s251 + $0x80] sm:$0xff] %vm253, 0.0
      %272 = vst.msk [vmem:[%s251 + $0x88] sm:$0x3] %vm255, 0.0
      %273 = vst.msk [vmem:[%s251 + $0x90] sm:$0xff] %vm253, 0.0
      %274 = vst.msk [vmem:[%s251 + $0x98] sm:$0x3] %vm255, 0.0
      %v275 = vld [vmem:[%s1] sm:$0x1]
      %v276 = vld [vmem:[%s2] sm:$0x1]
      %v277 = vlaneseq
      %v278 = vshrl.u32 %v277, 7
      %v279 = vld [vmem:[%s246] sm:$0xff]
      %v280 = vld [vmem:[%s246 + $0x10] sm:$0xff]
      %v281 = vld [vmem:[%s246 + $0x20] sm:$0xff]
      %v282 = vld [vmem:[%s246 + $0x30] sm:$0xff]
      %v284 = vperm.slane %v275, 0
      %v286 = vmul.f32 %v279, %v284
      %v287 = vmul.f32 %v280, %v284
      %v288 = vmul.f32 %v281, %v284
      %v289 = vmul.f32 %v282, %v284
      %v291 = vperm.slane %v276, 0
      %v293 = vadd.f32 %v286, %v291
      %v294 = vadd.f32 %v287, %v291
      %v295 = vadd.f32 %v288, %v291
      %v296 = vadd.f32 %v289, %v291
      %v297 = vmax.f32 %v293, 0.0
      %v298 = vmax.f32 %v294, 0.0
      %v299 = vmax.f32 %v295, 0.0
      %v300 = vmax.f32 %v296, 0.0
      %vm301 = vcmp.ge.s32.totalorder %v278, 1
      %vm302 = vmand 0, %vm301
      %vm303 = vmand 1, %vm301
      %vm304 = vcmp.le.s32.totalorder %v278, 8
      %vm305 = vmand %vm302, %vm304
      %vm306 = vmand %vm303, %vm304
      %v307 = vsel %vm305, 1, 0
      %v308 = vsel %vm306, 1, 0
      %vm309 = vcmp.eq.s32.totalorder %v307, 1
      %vm310 = vcmp.eq.s32.totalorder %v308, 1
      %v311 = vsel %vm309, %v297, 0.0
      %v312 = vsel %vm310, %v298, 0.0
      %v313 = vsel %vm310, %v299, 0.0
      %v314 = vsel %vm310, %v300, 0.0
      %315 = vst.msk [vmem:[#allocation2] sm:$0xff] %vm253, %v311
      %316 = vst.msk [vmem:[#allocation2 + $0x8] sm:$0xff] %vm253, %v312
      %317 = vst.msk [vmem:[#allocation2 + $0x10] sm:$0xff] %vm253, %v313
      %318 = vst.msk [vmem:[#allocation2 + $0x18] sm:$0xff] %vm253, %v314
      %v319 = vld [vmem:[%s246 + $0x1] sm:$0xff]
      %v320 = vld [vmem:[%s246 + $0x11] sm:$0xff]
      %v321 = vld [vmem:[%s246 + $0x21] sm:$0xff]
      %v322 = vld [vmem:[%s246 + $0x31] sm:$0xff]
      %v323 = vmul.f32 %v319, %v284
      %v324 = vmul.f32 %v320, %v284
      %v325 = vmul.f32 %v321, %v284
      %v326 = vmul.f32 %v322, %v284
      %v327 = vadd.f32 %v323, %v291
      %v328 = vadd.f32 %v324, %v291
      %v329 = vadd.f32 %v325, %v291
      %v330 = vadd.f32 %v326, %v291
      %v331 = vmax.f32 %v327, 0.0
      %v332 = vmax.f32 %v328, 0.0
      %v333 = vmax.f32 %v329, 0.0
      %v334 = vmax.f32 %v330, 0.0
      %v335 = vadd.s32 %v278, 1
      %vm336 = vcmp.ge.s32.totalorder %v335, 1
      %vm337 = vmand 0, %vm336
      %vm338 = vmand 1, %vm336
      %vm339 = vcmp.le.s32.totalorder %v335, 8
      %vm340 = vmand %vm337, %vm339
      %vm341 = vmand %vm338, %vm339
      %v342 = vsel %vm340, 1, 0
      %v343 = vsel %vm341, 1, 0
      %vm344 = vcmp.eq.s32.totalorder %v342, 1
      %vm345 = vcmp.eq.s32.totalorder %v343, 1
      %v346 = vsel %vm344, %v331, 0.0
      %v347 = vsel %vm345, %v332, 0.0
      %v348 = vsel %vm345, %v333, 0.0
      %v349 = vsel %vm345, %v334, 0.0
      %354 = vrot.lane.b32.xlu0 %v346, 8
      %v355 = vpop.permute.xlu0 %354
      %356 = vrot.lane.b32.xlu0 %v347, 8
      %v357 = vpop.permute.xlu0 %356
      %358 = vrot.lane.b32.xlu0 %v348, 8
      %v359 = vpop.permute.xlu0 %358
      %360 = vrot.lane.b32.xlu0 %v349, 8
      %v361 = vpop.permute.xlu0 %360
      %vm366 = vcmask 130112
      %367 = vst.msk [vmem:[#allocation2] sm:$0xff] %vm366, %v355
      %368 = vst.msk [vmem:[#allocation2 + $0x8] sm:$0xff] %vm366, %v357
      %369 = vst.msk [vmem:[#allocation2 + $0x10] sm:$0xff] %vm366, %v359
      %370 = vst.msk [vmem:[#allocation2 + $0x18] sm:$0xff] %vm366, %v361
      %v371 = vld [vmem:[%s246 + $0x2] sm:$0xff]
      %v372 = vld [vmem:[%s246 + $0x12] sm:$0xff]
      %v373 = vld [vmem:[%s246 + $0x22] sm:$0xff]
      %v374 = vld [vmem:[%s246 + $0x32] sm:$0xff]
      %v375 = vmul.f32 %v371, %v284
      %v376 = vmul.f32 %v372, %v284
      %v377 = vmul.f32 %v373, %v284
      %v378 = vmul.f32 %v374, %v284
      %v379 = vadd.f32 %v375, %v291
      %v380 = vadd.f32 %v376, %v291
      %v381 = vadd.f32 %v377, %v291
      %v382 = vadd.f32 %v378, %v291
      %v383 = vmax.f32 %v379, 0.0
      %v384 = vmax.f32 %v380, 0.0
      %v385 = vmax.f32 %v381, 0.0
      %v386 = vmax.f32 %v382, 0.0
      %v387 = vadd.s32 %v278, 2
      %vm388 = vcmp.ge.s32.totalorder %v387, 1
      %vm389 = vmand 0, %vm388
      %vm390 = vmand 1, %vm388
      %vm391 = vcmp.le.s32.totalorder %v387, 8
      %vm392 = vmand %vm389, %vm391
      %vm393 = vmand %vm390, %vm391
      %v394 = vsel %vm392, 1, 0
      %v395 = vsel %vm393, 1, 0
      %vm396 = vcmp.eq.s32.totalorder %v394, 1
      %vm397 = vcmp.eq.s32.totalorder %v395, 1
      %v398 = vsel %vm396, %v383, 0.0
      %v399 = vsel %vm397, %v384, 0.0
      %v400 = vsel %vm397, %v385, 0.0
      %v401 = vsel %vm397, %v386, 0.0
      %406 = vrot.lane.b32.xlu0 %v398, 16
      %v407 = vpop.permute.xlu0 %406
      %408 = vrot.lane.b32.xlu0 %v399, 16
      %v409 = vpop.permute.xlu0 %408
      %410 = vrot.lane.b32.xlu0 %v400, 16
      %v411 = vpop.permute.xlu0 %410
      %412 = vrot.lane.b32.xlu0 %v401, 16
      %v413 = vpop.permute.xlu0 %412
      %vm418 = vcmask 195712
      %419 = vst.msk [vmem:[#allocation2] sm:$0xff] %vm418, %v407
      %420 = vst.msk [vmem:[#allocation2 + $0x8] sm:$0xff] %vm418, %v409
      %421 = vst.msk [vmem:[#allocation2 + $0x10] sm:$0xff] %vm418, %v411
      %422 = vst.msk [vmem:[#allocation2 + $0x18] sm:$0xff] %vm418, %v413
      %s423 = scalar_lea.vmem %s246, 16
      %v424 = vld [vmem:[%s423] sm:$0xff]
      %v425 = vld [vmem:[%s423 + $0x10] sm:$0xff]
      %v426 = vld [vmem:[%s423 + $0x20] sm:$0xff]
      %v427 = vld [vmem:[%s423 + $0x30] sm:$0xff]
      %v428 = vmul.f32 %v424, %v284
      %v429 = vmul.f32 %v425, %v284
      %v430 = vmul.f32 %v426, %v284
      %v431 = vmul.f32 %v427, %v284
      %v432 = vadd.f32 %v428, %v291
      %v433 = vadd.f32 %v429, %v291
      %v434 = vadd.f32 %v430, %v291
      %v435 = vadd.f32 %v431, %v291
      %v436 = vmax.f32 %v432, 0.0
      %v437 = vmax.f32 %v433, 0.0
      %v438 = vmax.f32 %v434, 0.0
      %v439 = vmax.f32 %v435, 0.0
      %v440 = vsel %vm310, %v436, 0.0
      %v441 = vsel %vm310, %v437, 0.0
      %v442 = vsel %vm310, %v438, 0.0
      %v443 = vsel %vm310, %v439, 0.0
      %448 = vrot.lane.b32.xlu0 %v440, 24
      %v449 = vpop.permute.xlu0 %448
      %450 = vrot.lane.b32.xlu0 %v441, 24
      %v451 = vpop.permute.xlu0 %450
      %452 = vrot.lane.b32.xlu0 %v442, 24
      %v453 = vpop.permute.xlu0 %452
      %454 = vrot.lane.b32.xlu0 %v443, 24
      %v455 = vpop.permute.xlu0 %454
      %vm460 = vcmask 261312
      %461 = vst.msk [vmem:[#allocation2] sm:$0xff] %vm460, %v449
      %462 = vst.msk [vmem:[#allocation2 + $0x8] sm:$0xff] %vm460, %v451
      %463 = vst.msk [vmem:[#allocation2 + $0x10] sm:$0xff] %vm460, %v453
      %464 = vst.msk [vmem:[#allocation2 + $0x18] sm:$0xff] %vm460, %v455
      %v465 = vld [vmem:[%s423 + $0x1] sm:$0xff]
      %v466 = vld [vmem:[%s423 + $0x11] sm:$0xff]
      %v467 = vld [vmem:[%s423 + $0x21] sm:$0xff]
      %v468 = vld [vmem:[%s423 + $0x31] sm:$0xff]
      %v469 = vmul.f32 %v465, %v284
      %v470 = vmul.f32 %v466, %v284
      %v471 = vmul.f32 %v467, %v284
      %v472 = vmul.f32 %v468, %v284
      %v473 = vadd.f32 %v469, %v291
      %v474 = vadd.f32 %v470, %v291
      %v475 = vadd.f32 %v471, %v291
      %v476 = vadd.f32 %v472, %v291
      %v477 = vmax.f32 %v473, 0.0
      %v478 = vmax.f32 %v474, 0.0
      %v479 = vmax.f32 %v475, 0.0
      %v480 = vmax.f32 %v476, 0.0
      %v481 = vsel %vm345, %v477, 0.0
      %v482 = vsel %vm345, %v478, 0.0
      %v483 = vsel %vm345, %v479, 0.0
      %v484 = vsel %vm345, %v480, 0.0
      %489 = vrot.lane.b32.xlu0 %v481, 32
      %v490 = vpop.permute.xlu0 %489
      %491 = vrot.lane.b32.xlu0 %v482, 32
      %v492 = vpop.permute.xlu0 %491
      %493 = vrot.lane.b32.xlu0 %v483, 32
      %v494 = vpop.permute.xlu0 %493
      %495 = vrot.lane.b32.xlu0 %v484, 32
      %v496 = vpop.permute.xlu0 %495
      %vm501 = vcmask 326912
      %502 = vst.msk [vmem:[#allocation2] sm:$0xff] %vm501, %v490
      %503 = vst.msk [vmem:[#allocation2 + $0x8] sm:$0xff] %vm501, %v492
      %504 = vst.msk [vmem:[#allocation2 + $0x10] sm:$0xff] %vm501, %v494
      %505 = vst.msk [vmem:[#allocation2 + $0x18] sm:$0xff] %vm501, %v496
      %v506 = vld [vmem:[%s423 + $0x2] sm:$0xff]
      %v507 = vld [vmem:[%s423 + $0x12] sm:$0xff]
      %v508 = vld [vmem:[%s423 + $0x22] sm:$0xff]
      %v509 = vld [vmem:[%s423 + $0x32] sm:$0xff]
      %v510 = vmul.f32 %v506, %v284
      %v511 = vmul.f32 %v507, %v284
      %v512 = vmul.f32 %v508, %v284
      %v513 = vmul.f32 %v509, %v284
      %v514 = vadd.f32 %v510, %v291
      %v515 = vadd.f32 %v511, %v291
      %v516 = vadd.f32 %v512, %v291
      %v517 = vadd.f32 %v513, %v291
      %v518 = vmax.f32 %v514, 0.0
      %v519 = vmax.f32 %v515, 0.0
      %v520 = vmax.f32 %v516, 0.0
      %v521 = vmax.f32 %v517, 0.0
      %v522 = vsel %vm397, %v518, 0.0
      %v523 = vsel %vm397, %v519, 0.0
      %v524 = vsel %vm397, %v520, 0.0
      %v525 = vsel %vm397, %v521, 0.0
      %530 = vrot.lane.b32.xlu0 %v522, 40
      %v531 = vpop.permute.xlu0 %530
      %532 = vrot.lane.b32.xlu0 %v523, 40
      %v533 = vpop.permute.xlu0 %532
      %534 = vrot.lane.b32.xlu0 %v524, 40
      %v535 = vpop.permute.xlu0 %534
      %536 = vrot.lane.b32.xlu0 %v525, 40
      %v537 = vpop.permute.xlu0 %536
      %vm542 = vcmask 392512
      %543 = vst.msk [vmem:[#allocation2] sm:$0xff] %vm542, %v531
      %544 = vst.msk [vmem:[#allocation2 + $0x8] sm:$0xff] %vm542, %v533
      %545 = vst.msk [vmem:[#allocation2 + $0x10] sm:$0xff] %vm542, %v535
      %546 = vst.msk [vmem:[#allocation2 + $0x18] sm:$0xff] %vm542, %v537
      %s547 = scalar_lea.vmem %s246, 32
      %v548 = vld [vmem:[%s547] sm:$0xff]
      %v549 = vld [vmem:[%s547 + $0x10] sm:$0xff]
      %v550 = vld [vmem:[%s547 + $0x20] sm:$0xff]
      %v551 = vld [vmem:[%s547 + $0x30] sm:$0xff]
      %v552 = vmul.f32 %v548, %v284
      %v553 = vmul.f32 %v549, %v284
      %v554 = vmul.f32 %v550, %v284
      %v555 = vmul.f32 %v551, %v284
      %v556 = vadd.f32 %v552, %v291
      %v557 = vadd.f32 %v553, %v291
      %v558 = vadd.f32 %v554, %v291
      %v559 = vadd.f32 %v555, %v291
      %v560 = vmax.f32 %v556, 0.0
      %v561 = vmax.f32 %v557, 0.0
      %v562 = vmax.f32 %v558, 0.0
      %v563 = vmax.f32 %v559, 0.0
      %v564 = vsel %vm310, %v560, 0.0
      %v565 = vsel %vm310, %v561, 0.0
      %v566 = vsel %vm310, %v562, 0.0
      %v567 = vsel %vm310, %v563, 0.0
      %572 = vrot.lane.b32.xlu0 %v564, 48
      %v573 = vpop.permute.xlu0 %572
      %574 = vrot.lane.b32.xlu0 %v565, 48
      %v575 = vpop.permute.xlu0 %574
      %576 = vrot.lane.b32.xlu0 %v566, 48
      %v577 = vpop.permute.xlu0 %576
      %578 = vrot.lane.b32.xlu0 %v567, 48
      %v579 = vpop.permute.xlu0 %578
      %vm584 = vcmask 458112
      %585 = vst.msk [vmem:[#allocation2] sm:$0xff] %vm584, %v573
      %586 = vst.msk [vmem:[#allocation2 + $0x8] sm:$0xff] %vm584, %v575
      %587 = vst.msk [vmem:[#allocation2 + $0x10] sm:$0xff] %vm584, %v577
      %588 = vst.msk [vmem:[#allocation2 + $0x18] sm:$0xff] %vm584, %v579
      %v589 = vld [vmem:[%s547 + $0x1] sm:$0xff]
      %v590 = vld [vmem:[%s547 + $0x11] sm:$0xff]
      %v591 = vld [vmem:[%s547 + $0x21] sm:$0xff]
      %v592 = vld [vmem:[%s547 + $0x31] sm:$0xff]
      %v593 = vmul.f32 %v589, %v284
      %v594 = vmul.f32 %v590, %v284
      %v595 = vmul.f32 %v591, %v284
      %v596 = vmul.f32 %v592, %v284
      %v597 = vadd.f32 %v593, %v291
      %v598 = vadd.f32 %v594, %v291
      %v599 = vadd.f32 %v595, %v291
      %v600 = vadd.f32 %v596, %v291
      %v601 = vmax.f32 %v597, 0.0
      %v602 = vmax.f32 %v598, 0.0
      %v603 = vmax.f32 %v599, 0.0
      %v604 = vmax.f32 %v600, 0.0
      %v605 = vsel %vm345, %v601, 0.0
      %v606 = vsel %vm345, %v602, 0.0
      %v607 = vsel %vm345, %v603, 0.0
      %v608 = vsel %vm345, %v604, 0.0
      %613 = vrot.lane.b32.xlu0 %v605, 56
      %v614 = vpop.permute.xlu0 %613
      %615 = vrot.lane.b32.xlu0 %v606, 56
      %v616 = vpop.permute.xlu0 %615
      %617 = vrot.lane.b32.xlu0 %v607, 56
      %v618 = vpop.permute.xlu0 %617
      %619 = vrot.lane.b32.xlu0 %v608, 56
      %v620 = vpop.permute.xlu0 %619
      %vm625 = vcmask 523712
      %626 = vst.msk [vmem:[#allocation2] sm:$0xff] %vm625, %v614
      %627 = vst.msk [vmem:[#allocation2 + $0x8] sm:$0xff] %vm625, %v616
      %628 = vst.msk [vmem:[#allocation2 + $0x10] sm:$0xff] %vm625, %v618
      %629 = vst.msk [vmem:[#allocation2 + $0x18] sm:$0xff] %vm625, %v620
      %v630 = vld [vmem:[%s547 + $0x2] sm:$0xff]
      %v631 = vld [vmem:[%s547 + $0x12] sm:$0xff]
      %v632 = vld [vmem:[%s547 + $0x22] sm:$0xff]
      %v633 = vld [vmem:[%s547 + $0x32] sm:$0xff]
      %v634 = vmul.f32 %v630, %v284
      %v635 = vmul.f32 %v631, %v284
      %v636 = vmul.f32 %v632, %v284
      %v637 = vmul.f32 %v633, %v284
      %v638 = vadd.f32 %v634, %v291
      %v639 = vadd.f32 %v635, %v291
      %v640 = vadd.f32 %v636, %v291
      %v641 = vadd.f32 %v637, %v291
      %v642 = vmax.f32 %v638, 0.0
      %v643 = vmax.f32 %v639, 0.0
      %v644 = vmax.f32 %v640, 0.0
      %v645 = vmax.f32 %v641, 0.0
      %v646 = vsel %vm397, %v642, 0.0
      %v647 = vsel %vm397, %v643, 0.0
      %v648 = vsel %vm397, %v644, 0.0
      %v649 = vsel %vm397, %v645, 0.0
      %654 = vrot.lane.b32.xlu0 %v646, 64
      %v655 = vpop.permute.xlu0 %654
      %656 = vrot.lane.b32.xlu0 %v647, 64
      %v657 = vpop.permute.xlu0 %656
      %658 = vrot.lane.b32.xlu0 %v648, 64
      %v659 = vpop.permute.xlu0 %658
      %660 = vrot.lane.b32.xlu0 %v649, 64
      %v661 = vpop.permute.xlu0 %660
      %vm666 = vcmask 589312
      %667 = vst.msk [vmem:[#allocation2] sm:$0xff] %vm666, %v655
      %668 = vst.msk [vmem:[#allocation2 + $0x8] sm:$0xff] %vm666, %v657
      %669 = vst.msk [vmem:[#allocation2 + $0x10] sm:$0xff] %vm666, %v659
      %670 = vst.msk [vmem:[#allocation2 + $0x18] sm:$0xff] %vm666, %v661
      %v671 = vld [vmem:[#allocation2] sm:$0xff]
      %v672 = vld [vmem:[#allocation2 + $0x8] sm:$0xff]
      %v673 = vld [vmem:[#allocation2 + $0x10] sm:$0xff]
      %v674 = vld [vmem:[#allocation2 + $0x18] sm:$0xff]
      %v675 = vpack.c.bf16 %v672, %v671
      %v676 = vpack.c.bf16 %v674, %v673
      %v677 = vld [vmem:[%s5] sm:$0xf]
      %v678 = vld [vmem:[%s5 + $0x4] sm:$0xf]
      %v679 = vld [vmem:[%s5 + $0x8] sm:$0xf]
      %v680 = vld [vmem:[%s5 + $0xc] sm:$0xf]
      %v681 = vld [vmem:[%s5 + $0x10] sm:$0xf]
      %v682 = vld [vmem:[%s5 + $0x14] sm:$0xf]
      %v683 = vld [vmem:[%s5 + $0x18] sm:$0xf]
      %v684 = vld [vmem:[%s5 + $0x1c] sm:$0xf]
      %v685 = vld [vmem:[%s5 + $0x20] sm:$0xf]
      %v695 = vunpack.c.l.b16 %v677
      %v696 = vunpack.c.l.b16 %v678
      %v697 = vunpack.c.l.b16 %v679
      %v698 = vunpack.c.l.b16 %v680
      %v699 = vunpack.c.l.b16 %v681
      %v700 = vunpack.c.l.b16 %v682
      %v701 = vunpack.c.l.b16 %v683
      %v702 = vunpack.c.l.b16 %v684
      %v703 = vunpack.c.l.b16 %v685
      %v704 = vpack.c.b16 %v696, %v695
      %v705 = vpack.c.b16 %v698, %v697
      %v706 = vpack.c.b16 %v700, %v699
      %v707 = vpack.c.b16 %v702, %v701
      %v708 = vpack.c.b16 %v703, %v703
      %vm713 = vcmask 588800
      %v715 = vsel %vm713, %v675, 0
      %v718 = vsel %vm713, %v676, 0
      %vm720 = vcmask 1043456
      %v722 = vsel %vm720, %v708, 0
      %724 = vmatpush.bf16.msra.mxu0 0
      %725 = vmatpush.bf16.msra.mxu0 0
      %726 = vmatpush.bf16.msra.mxu0 0
      %727 = vmatpush.bf16.msra.mxu0 %v722
      %728 = vmatpush.bf16.msra.mxu0 %v707
      %729 = vmatpush.bf16.msra.mxu0 %v706
      %730 = vmatpush.bf16.msra.mxu0 %v705
      %731 = vmatpush.bf16.msra.mxu0 %v704
      %732 = vmatmul.bf16.gmra.mxu0 %v715
      %v733 = vpop.f32.mrf.mxu0
      %v734 = vadd.f32 0.0, %v733
      %v735 = vpop.f32.mrf.mxu0
      %v736 = vadd.f32 0.0, %v735
      %737 = vmatmul.bf16.gmra.mxu0 %v718
      %v738 = vpop.f32.mrf.mxu0
      %v739 = vadd.f32 0.0, %v738
      %v740 = vpop.f32.mrf.mxu0
      %v741 = vadd.f32 0.0, %v740
      %742 = vdwg.mxu0
      %v743 = vld [vmem:[%s3] sm:$0x1]
      %v745 = vperm.slane %v743, 0
      %v747 = vmul.f32 %v734, %v745
      %v748 = vmul.f32 %v736, %v745
      %v749 = vmul.f32 %v739, %v745
      %v750 = vmul.f32 %v741, %v745
      %v751 = vld [vmem:[%s4] sm:$0x1]
      %v753 = vperm.slane %v751, 0
      %v755 = vadd.f32 %v747, %v753
      %v756 = vadd.f32 %v748, %v753
      %v757 = vadd.f32 %v749, %v753
      %v758 = vadd.f32 %v750, %v753
      %v759 = vmax.f32 %v755, 0.0
      %v760 = vmax.f32 %v756, 0.0
      %v761 = vmax.f32 %v757, 0.0
      %v762 = vmax.f32 %v758, 0.0
      %s763 = scalar_lea.vmem %s251, 16
      %764 = vst.msk [vmem:[%s763 + $0x1] sm:$0xff] %vm253, %v759
      %765 = vst.msk [vmem:[%s763 + $0x11] sm:$0xff] %vm253, %v760
      %766 = vst.msk [vmem:[%s763 + $0x21] sm:$0xff] %vm253, %v761
      %767 = vst.msk [vmem:[%s763 + $0x31] sm:$0xff] %vm253, %v762
      %s768 = scalar_lea.vmem %s246, 64
      %v769 = vld [vmem:[%s768] sm:$0xff]
      %v770 = vld [vmem:[%s768 + $0x10] sm:$0xff]
      %v771 = vld [vmem:[%s768 + $0x20] sm:$0xff]
      %v772 = vld [vmem:[%s768 + $0x30] sm:$0xff]
      %v773 = vmul.f32 %v769, %v284
      %v774 = vmul.f32 %v770, %v284
      %v775 = vmul.f32 %v771, %v284
      %v776 = vmul.f32 %v772, %v284
      %v777 = vadd.f32 %v773, %v291
      %v778 = vadd.f32 %v774, %v291
      %v779 = vadd.f32 %v775, %v291
      %v780 = vadd.f32 %v776, %v291
      %v781 = vmax.f32 %v777, 0.0
      %v782 = vmax.f32 %v778, 0.0
      %v783 = vmax.f32 %v779, 0.0
      %v784 = vmax.f32 %v780, 0.0
      %v785 = vsel %vm310, %v781, 0.0
      %v786 = vsel %vm310, %v782, 0.0
      %v787 = vsel %vm310, %v783, 0.0
      %v788 = vsel %vm310, %v784, 0.0
      %789 = vst.msk [vmem:[#allocation2] sm:$0xff] %vm253, %v785
      %790 = vst.msk [vmem:[#allocation2 + $0x8] sm:$0xff] %vm253, %v786
      %791 = vst.msk [vmem:[#allocation2 + $0x10] sm:$0xff] %vm253, %v787
      %792 = vst.msk [vmem:[#allocation2 + $0x18] sm:$0xff] %vm253, %v788
      %v793 = vld [vmem:[%s768 + $0x1] sm:$0xff]
      %v794 = vld [vmem:[%s768 + $0x11] sm:$0xff]
      %v795 = vld [vmem:[%s768 + $0x21] sm:$0xff]
      %v796 = vld [vmem:[%s768 + $0x31] sm:$0xff]
      %v797 = vmul.f32 %v793, %v284
      %v798 = vmul.f32 %v794, %v284
      %v799 = vmul.f32 %v795, %v284
      %v800 = vmul.f32 %v796, %v284
      %v801 = vadd.f32 %v797, %v291
      %v802 = vadd.f32 %v798, %v291
      %v803 = vadd.f32 %v799, %v291
      %v804 = vadd.f32 %v800, %v291
      %v805 = vmax.f32 %v801, 0.0
      %v806 = vmax.f32 %v802, 0.0
      %v807 = vmax.f32 %v803, 0.0
      %v808 = vmax.f32 %v804, 0.0
      %v809 = vsel %vm345, %v805, 0.0
      %v810 = vsel %vm345, %v806, 0.0
      %v811 = vsel %vm345, %v807, 0.0
      %v812 = vsel %vm345, %v808, 0.0
      %817 = vrot.lane.b32.xlu0 %v809, 8
      %v818 = vpop.permute.xlu0 %817
      %819 = vrot.lane.b32.xlu0 %v810, 8
      %v820 = vpop.permute.xlu0 %819
      %821 = vrot.lane.b32.xlu0 %v811, 8
      %v822 = vpop.permute.xlu0 %821
      %823 = vrot.lane.b32.xlu0 %v812, 8
      %v824 = vpop.permute.xlu0 %823
      %829 = vst.msk [vmem:[#allocation2] sm:$0xff] %vm366, %v818
      %830 = vst.msk [vmem:[#allocation2 + $0x8] sm:$0xff] %vm366, %v820
      %831 = vst.msk [vmem:[#allocation2 + $0x10] sm:$0xff] %vm366, %v822
      %832 = vst.msk [vmem:[#allocation2 + $0x18] sm:$0xff] %vm366, %v824
      %v833 = vld [vmem:[%s768 + $0x2] sm:$0xff]
      %v834 = vld [vmem:[%s768 + $0x12] sm:$0xff]
      %v835 = vld [vmem:[%s768 + $0x22] sm:$0xff]
      %v836 = vld [vmem:[%s768 + $0x32] sm:$0xff]
      %v837 = vmul.f32 %v833, %v284
      %v838 = vmul.f32 %v834, %v284
      %v839 = vmul.f32 %v835, %v284
      %v840 = vmul.f32 %v836, %v284
      %v841 = vadd.f32 %v837, %v291
      %v842 = vadd.f32 %v838, %v291
      %v843 = vadd.f32 %v839, %v291
      %v844 = vadd.f32 %v840, %v291
      %v845 = vmax.f32 %v841, 0.0
      %v846 = vmax.f32 %v842, 0.0
      %v847 = vmax.f32 %v843, 0.0
      %v848 = vmax.f32 %v844, 0.0
      %v849 = vsel %vm397, %v845, 0.0
      %v850 = vsel %vm397, %v846, 0.0
      %v851 = vsel %vm397, %v847, 0.0
      %v852 = vsel %vm397, %v848, 0.0
      %857 = vrot.lane.b32.xlu0 %v849, 16
      %v858 = vpop.permute.xlu0 %857
      %859 = vrot.lane.b32.xlu0 %v850, 16
      %v860 = vpop.permute.xlu0 %859
      %861 = vrot.lane.b32.xlu0 %v851, 16
      %v862 = vpop.permute.xlu0 %861
      %863 = vrot.lane.b32.xlu0 %v852, 16
      %v864 = vpop.permute.xlu0 %863
      %869 = vst.msk [vmem:[#allocation2] sm:$0xff] %vm418, %v858
      %870 = vst.msk [vmem:[#allocation2 + $0x8] sm:$0xff] %vm418, %v860
      %871 = vst.msk [vmem:[#allocation2 + $0x10] sm:$0xff] %vm418, %v862
      %872 = vst.msk [vmem:[#allocation2 + $0x18] sm:$0xff] %vm418, %v864
      %s873 = scalar_lea.vmem %s246, 80
      %v874 = vld [vmem:[%s873] sm:$0xff]
      %v875 = vld [vmem:[%s873 + $0x10] sm:$0xff]
      %v876 = vld [vmem:[%s873 + $0x20] sm:$0xff]
      %v877 = vld [vmem:[%s873 + $0x30] sm:$0xff]
      %v878 = vmul.f32 %v874, %v284
      %v879 = vmul.f32 %v875, %v284
      %v880 = vmul.f32 %v876, %v284
      %v881 = vmul.f32 %v877, %v284
      %v882 = vadd.f32 %v878, %v291
      %v883 = vadd.f32 %v879, %v291
      %v884 = vadd.f32 %v880, %v291
      %v885 = vadd.f32 %v881, %v291
      %v886 = vmax.f32 %v882, 0.0
      %v887 = vmax.f32 %v883, 0.0
      %v888 = vmax.f32 %v884, 0.0
      %v889 = vmax.f32 %v885, 0.0
      %v890 = vsel %vm310, %v886, 0.0
      %v891 = vsel %vm310, %v887, 0.0
      %v892 = vsel %vm310, %v888, 0.0
      %v893 = vsel %vm310, %v889, 0.0
      %898 = vrot.lane.b32.xlu0 %v890, 24
      %v899 = vpop.permute.xlu0 %898
      %900 = vrot.lane.b32.xlu0 %v891, 24
      %v901 = vpop.permute.xlu0 %900
      %902 = vrot.lane.b32.xlu0 %v892, 24
      %v903 = vpop.permute.xlu0 %902
      %904 = vrot.lane.b32.xlu0 %v893, 24
      %v905 = vpop.permute.xlu0 %904
      %910 = vst.msk [vmem:[#allocation2] sm:$0xff] %vm460, %v899
      %911 = vst.msk [vmem:[#allocation2 + $0x8] sm:$0xff] %vm460, %v901
      %912 = vst.msk [vmem:[#allocation2 + $0x10] sm:$0xff] %vm460, %v903
      %913 = vst.msk [vmem:[#allocation2 + $0x18] sm:$0xff] %vm460, %v905
      %v914 = vld [vmem:[%s873 + $0x1] sm:$0xff]
      %v915 = vld [vmem:[%s873 + $0x11] sm:$0xff]
      %v916 = vld [vmem:[%s873 + $0x21] sm:$0xff]
      %v917 = vld [vmem:[%s873 + $0x31] sm:$0xff]
      %v918 = vmul.f32 %v914, %v284
      %v919 = vmul.f32 %v915, %v284
      %v920 = vmul.f32 %v916, %v284
      %v921 = vmul.f32 %v917, %v284
      %v922 = vadd.f32 %v918, %v291
      %v923 = vadd.f32 %v919, %v291
      %v924 = vadd.f32 %v920, %v291
      %v925 = vadd.f32 %v921, %v291
      %v926 = vmax.f32 %v922, 0.0
      %v927 = vmax.f32 %v923, 0.0
      %v928 = vmax.f32 %v924, 0.0
      %v929 = vmax.f32 %v925, 0.0
      %v930 = vsel %vm345, %v926, 0.0
      %v931 = vsel %vm345, %v927, 0.0
      %v932 = vsel %vm345, %v928, 0.0
      %v933 = vsel %vm345, %v929, 0.0
      %938 = vrot.lane.b32.xlu0 %v930, 32
      %v939 = vpop.permute.xlu0 %938
      %940 = vrot.lane.b32.xlu0 %v931, 32
      %v941 = vpop.permute.xlu0 %940
      %942 = vrot.lane.b32.xlu0 %v932, 32
      %v943 = vpop.permute.xlu0 %942
      %944 = vrot.lane.b32.xlu0 %v933, 32
      %v945 = vpop.permute.xlu0 %944
      %950 = vst.msk [vmem:[#allocation2] sm:$0xff] %vm501, %v939
      %951 = vst.msk [vmem:[#allocation2 + $0x8] sm:$0xff] %vm501, %v941
      %952 = vst.msk [vmem:[#allocation2 + $0x10] sm:$0xff] %vm501, %v943
      %953 = vst.msk [vmem:[#allocation2 + $0x18] sm:$0xff] %vm501, %v945
      %v954 = vld [vmem:[%s873 + $0x2] sm:$0xff]
      %v955 = vld [vmem:[%s873 + $0x12] sm:$0xff]
      %v956 = vld [vmem:[%s873 + $0x22] sm:$0xff]
      %v957 = vld [vmem:[%s873 + $0x32] sm:$0xff]
      %v958 = vmul.f32 %v954, %v284
      %v959 = vmul.f32 %v955, %v284
      %v960 = vmul.f32 %v956, %v284
      %v961 = vmul.f32 %v957, %v284
      %v962 = vadd.f32 %v958, %v291
      %v963 = vadd.f32 %v959, %v291
      %v964 = vadd.f32 %v960, %v291
      %v965 = vadd.f32 %v961, %v291
      %v966 = vmax.f32 %v962, 0.0
      %v967 = vmax.f32 %v963, 0.0
      %v968 = vmax.f32 %v964, 0.0
      %v969 = vmax.f32 %v965, 0.0
      %v970 = vsel %vm397, %v966, 0.0
      %v971 = vsel %vm397, %v967, 0.0
      %v972 = vsel %vm397, %v968, 0.0
      %v973 = vsel %vm397, %v969, 0.0
      %978 = vrot.lane.b32.xlu0 %v970, 40
      %v979 = vpop.permute.xlu0 %978
      %980 = vrot.lane.b32.xlu0 %v971, 40
      %v981 = vpop.permute.xlu0 %980
      %982 = vrot.lane.b32.xlu0 %v972, 40
      %v983 = vpop.permute.xlu0 %982
      %984 = vrot.lane.b32.xlu0 %v973, 40
      %v985 = vpop.permute.xlu0 %984
      %990 = vst.msk [vmem:[#allocation2] sm:$0xff] %vm542, %v979
      %991 = vst.msk [vmem:[#allocation2 + $0x8] sm:$0xff] %vm542, %v981
      %992 = vst.msk [vmem:[#allocation2 + $0x10] sm:$0xff] %vm542, %v983
      %993 = vst.msk [vmem:[#allocation2 + $0x18] sm:$0xff] %vm542, %v985
      %s994 = scalar_lea.vmem %s246, 96
      %v995 = vld [vmem:[%s994] sm:$0xff]
      %v996 = vld [vmem:[%s994 + $0x10] sm:$0xff]
      %v997 = vld [vmem:[%s994 + $0x20] sm:$0xff]
      %v998 = vld [vmem:[%s994 + $0x30] sm:$0xff]
      %v999 = vmul.f32 %v995, %v284
      %v1000 = vmul.f32 %v996, %v284
      %v1001 = vmul.f32 %v997, %v284
      %v1002 = vmul.f32 %v998, %v284
      %v1003 = vadd.f32 %v999, %v291
      %v1004 = vadd.f32 %v1000, %v291
      %v1005 = vadd.f32 %v1001, %v291
      %v1006 = vadd.f32 %v1002, %v291
      %v1007 = vmax.f32 %v1003, 0.0
      %v1008 = vmax.f32 %v1004, 0.0
      %v1009 = vmax.f32 %v1005, 0.0
      %v1010 = vmax.f32 %v1006, 0.0
      %v1011 = vsel %vm310, %v1007, 0.0
      %v1012 = vsel %vm310, %v1008, 0.0
      %v1013 = vsel %vm310, %v1009, 0.0
      %v1014 = vsel %vm309, %v1010, 0.0
      %1019 = vrot.lane.b32.xlu0 %v1011, 48
      %v1020 = vpop.permute.xlu0 %1019
      %1021 = vrot.lane.b32.xlu0 %v1012, 48
      %v1022 = vpop.permute.xlu0 %1021
      %1023 = vrot.lane.b32.xlu0 %v1013, 48
      %v1024 = vpop.permute.xlu0 %1023
      %1025 = vrot.lane.b32.xlu0 %v1014, 48
      %v1026 = vpop.permute.xlu0 %1025
      %1031 = vst.msk [vmem:[#allocation2] sm:$0xff] %vm584, %v1020
      %1032 = vst.msk [vmem:[#allocation2 + $0x8] sm:$0xff] %vm584, %v1022
      %1033 = vst.msk [vmem:[#allocation2 + $0x10] sm:$0xff] %vm584, %v1024
      %1034 = vst.msk [vmem:[#allocation2 + $0x18] sm:$0xff] %vm584, %v1026
      %v1035 = vld [vmem:[%s994 + $0x1] sm:$0xff]
      %v1036 = vld [vmem:[%s994 + $0x11] sm:$0xff]
      %v1037 = vld [vmem:[%s994 + $0x21] sm:$0xff]
      %v1038 = vld [vmem:[%s994 + $0x31] sm:$0xff]
      %v1039 = vmul.f32 %v1035, %v284
      %v1040 = vmul.f32 %v1036, %v284
      %v1041 = vmul.f32 %v1037, %v284
      %v1042 = vmul.f32 %v1038, %v284
      %v1043 = vadd.f32 %v1039, %v291
      %v1044 = vadd.f32 %v1040, %v291
      %v1045 = vadd.f32 %v1041, %v291
      %v1046 = vadd.f32 %v1042, %v291
      %v1047 = vmax.f32 %v1043, 0.0
      %v1048 = vmax.f32 %v1044, 0.0
      %v1049 = vmax.f32 %v1045, 0.0
      %v1050 = vmax.f32 %v1046, 0.0
      %v1051 = vsel %vm345, %v1047, 0.0
      %v1052 = vsel %vm345, %v1048, 0.0
      %v1053 = vsel %vm345, %v1049, 0.0
      %v1054 = vsel %vm344, %v1050, 0.0
      %1059 = vrot.lane.b32.xlu0 %v1051, 56
      %v1060 = vpop.permute.xlu0 %1059
      %1061 = vrot.lane.b32.xlu0 %v1052, 56
      %v1062 = vpop.permute.xlu0 %1061
      %1063 = vrot.lane.b32.xlu0 %v1053, 56
      %v1064 = vpop.permute.xlu0 %1063
      %1065 = vrot.lane.b32.xlu0 %v1054, 56
      %v1066 = vpop.permute.xlu0 %1065
      %1071 = vst.msk [vmem:[#allocation2] sm:$0xff] %vm625, %v1060
      %1072 = vst.msk [vmem:[#allocation2 + $0x8] sm:$0xff] %vm625, %v1062
      %1073 = vst.msk [vmem:[#allocation2 + $0x10] sm:$0xff] %vm625, %v1064
      %1074 = vst.msk [vmem:[#allocation2 + $0x18] sm:$0xff] %vm625, %v1066
      %v1075 = vld [vmem:[%s994 + $0x2] sm:$0xff]
      %v1076 = vld [vmem:[%s994 + $0x12] sm:$0xff]
      %v1077 = vld [vmem:[%s994 + $0x22] sm:$0xff]
      %v1078 = vld [vmem:[%s994 + $0x32] sm:$0xff]
      %v1079 = vmul.f32 %v1075, %v284
      %v1080 = vmul.f32 %v1076, %v284
      %v1081 = vmul.f32 %v1077, %v284
      %v1082 = vmul.f32 %v1078, %v284
      %v1083 = vadd.f32 %v1079, %v291
      %v1084 = vadd.f32 %v1080, %v291
      %v1085 = vadd.f32 %v1081, %v291
      %v1086 = vadd.f32 %v1082, %v291
      %v1087 = vmax.f32 %v1083, 0.0
      %v1088 = vmax.f32 %v1084, 0.0
      %v1089 = vmax.f32 %v1085, 0.0
      %v1090 = vmax.f32 %v1086, 0.0
      %v1091 = vsel %vm397, %v1087, 0.0
      %v1092 = vsel %vm397, %v1088, 0.0
      %v1093 = vsel %vm397, %v1089, 0.0
      %v1094 = vsel %vm396, %v1090, 0.0
      %1099 = vrot.lane.b32.xlu0 %v1091, 64
      %v1100 = vpop.permute.xlu0 %1099
      %1101 = vrot.lane.b32.xlu0 %v1092, 64
      %v1102 = vpop.permute.xlu0 %1101
      %1103 = vrot.lane.b32.xlu0 %v1093, 64
      %v1104 = vpop.permute.xlu0 %1103
      %1105 = vrot.lane.b32.xlu0 %v1094, 64
      %v1106 = vpop.permute.xlu0 %1105
      %1111 = vst.msk [vmem:[#allocation2] sm:$0xff] %vm666, %v1100
      %1112 = vst.msk [vmem:[#allocation2 + $0x8] sm:$0xff] %vm666, %v1102
      %1113 = vst.msk [vmem:[#allocation2 + $0x10] sm:$0xff] %vm666, %v1104
      %1114 = vst.msk [vmem:[#allocation2 + $0x18] sm:$0xff] %vm666, %v1106
      %v1115 = vld [vmem:[#allocation2] sm:$0xff]
      %v1116 = vld [vmem:[#allocation2 + $0x8] sm:$0xff]
      %v1117 = vld [vmem:[#allocation2 + $0x10] sm:$0xff]
      %v1118 = vld [vmem:[#allocation2 + $0x18] sm:$0xff]
      %v1119 = vpack.c.bf16 %v1116, %v1115
      %v1120 = vpack.c.bf16 %v1118, %v1117
      %v1121 = vld [vmem:[%s5] sm:$0xf]
      %v1122 = vld [vmem:[%s5 + $0x4] sm:$0xf]
      %v1123 = vld [vmem:[%s5 + $0x8] sm:$0xf]
      %v1124 = vld [vmem:[%s5 + $0xc] sm:$0xf]
      %v1125 = vld [vmem:[%s5 + $0x10] sm:$0xf]
      %v1126 = vld [vmem:[%s5 + $0x14] sm:$0xf]
      %v1127 = vld [vmem:[%s5 + $0x18] sm:$0xf]
      %v1128 = vld [vmem:[%s5 + $0x1c] sm:$0xf]
      %v1129 = vld [vmem:[%s5 + $0x20] sm:$0xf]
      %v1139 = vunpack.c.l.b16 %v1121
      %v1140 = vunpack.c.l.b16 %v1122
      %v1141 = vunpack.c.l.b16 %v1123
      %v1142 = vunpack.c.l.b16 %v1124
      %v1143 = vunpack.c.l.b16 %v1125
      %v1144 = vunpack.c.l.b16 %v1126
      %v1145 = vunpack.c.l.b16 %v1127
      %v1146 = vunpack.c.l.b16 %v1128
      %v1147 = vunpack.c.l.b16 %v1129
      %v1148 = vpack.c.b16 %v1140, %v1139
      %v1149 = vpack.c.b16 %v1142, %v1141
      %v1150 = vpack.c.b16 %v1144, %v1143
      %v1151 = vpack.c.b16 %v1146, %v1145
      %v1152 = vpack.c.b16 %v1147, %v1147
      %v1158 = vsel %vm713, %v1119, 0
      %v1161 = vsel %vm713, %v1120, 0
      %v1164 = vsel %vm720, %v1152, 0
      %1166 = vmatpush.bf16.msra.mxu0 0
      %1167 = vmatpush.bf16.msra.mxu0 0
      %1168 = vmatpush.bf16.msra.mxu0 0
      %1169 = vmatpush.bf16.msra.mxu0 %v1164
      %1170 = vmatpush.bf16.msra.mxu0 %v1151
      %1171 = vmatpush.bf16.msra.mxu0 %v1150
      %1172 = vmatpush.bf16.msra.mxu0 %v1149
      %1173 = vmatpush.bf16.msra.mxu0 %v1148
      %1174 = vmatmul.bf16.gmra.mxu0 %v1158
      %v1175 = vpop.f32.mrf.mxu0
      %v1176 = vadd.f32 0.0, %v1175
      %v1177 = vpop.f32.mrf.mxu0
      %v1178 = vadd.f32 0.0, %v1177
      %1179 = vmatmul.bf16.gmra.mxu0 %v1161
      %v1180 = vpop.f32.mrf.mxu0
      %v1181 = vadd.f32 0.0, %v1180
      %v1182 = vpop.f32.mrf.mxu0
      %v1183 = vadd.f32 0.0, %v1182
      %1184 = vdwg.mxu0
      %v1185 = vld [vmem:[%s3] sm:$0x1]
      %v1187 = vperm.slane %v1185, 0
      %v1189 = vmul.f32 %v1176, %v1187
      %v1190 = vmul.f32 %v1178, %v1187
      %v1191 = vmul.f32 %v1181, %v1187
      %v1192 = vmul.f32 %v1183, %v1187
      %v1193 = vld [vmem:[%s4] sm:$0x1]
      %v1195 = vperm.slane %v1193, 0
      %v1197 = vadd.f32 %v1189, %v1195
      %v1198 = vadd.f32 %v1190, %v1195
      %v1199 = vadd.f32 %v1191, %v1195
      %v1200 = vadd.f32 %v1192, %v1195
      %v1201 = vmax.f32 %v1197, 0.0
      %v1202 = vmax.f32 %v1198, 0.0
      %v1203 = vmax.f32 %v1199, 0.0
      %v1204 = vmax.f32 %v1200, 0.0
      %s1205 = scalar_lea.vmem %s251, 80
      %1206 = vst.msk [vmem:[%s1205 + $0x1] sm:$0xff] %vm253, %v1201
      %1207 = vst.msk [vmem:[%s1205 + $0x11] sm:$0xff] %vm253, %v1202
      %1208 = vst.msk [vmem:[%s1205 + $0x21] sm:$0xff] %vm253, %v1203
      %1209 = vst.msk [vmem:[%s1205 + $0x31] sm:$0xff] %vm253, %v1204
      %p1210 = scmp.lt.s32.totalorder %s17, 1
      %s1211 = scalar_select %p1210, %s17, 1
      %s1212 = smul.addr %s1211, 20
      %s1213 = smul.addr %s1212, 8
      %s1214 = scalar_lea.vmem %s6, %s1213
      // Predicated region
      $region45: #{network_block_forward.6} parent=43 // pred_check
        %p1215 = pneg %p166
      $region46: #{network_block_forward.6} parent=43 // pred_check_branch
        %1217 = sbr.rel (%p1215) target = $region48
      $region47: #{network_block_forward.6} parent=43 // pred_region
        _
      $region48: #{network_block_forward.6} parent=43 // pred_fallthru
        _
    $region44: #{network_block_forward.6} parent=5 // pred_fallthru
      _
    %p1218 = scmp.le.s32.totalorder 2, %s12
    // Predicated region
    $region49: #{network_block_forward.6} parent=5 // pred_check
      %p1219 = pneg %p1218
    $region50: #{network_block_forward.6} parent=5 // pred_check_branch
      %1221 = sbr.rel (%p1219) target = $region52
    $region51: #{network_block_forward.6} parent=5 // pred_region
      %s1222 = ssub.s32 %s12, 2
      // Predicated region
      $region53: #{network_block_forward.6} parent=51 // pred_check
        %p1223 = pneg %p172
      $region54: #{network_block_forward.6} parent=51 // pred_check_branch
        %1225 = sbr.rel (%p1223) target = $region56
      $region55: #{network_block_forward.6} parent=51 // pred_region
        %p1226 = scmp.lt.s32.totalorder %s18, 1
        %s1227 = scalar_select %p1226, %s18, 1
        %s1228 = smul.addr %s1227, 20
        %s1229 = smul.addr %s1228, 8
        %s1230 = scalar_lea.vmem %s6, %s1229
      $region56: #{network_block_forward.6} parent=51 // pred_fallthru
        _
    $region52: #{network_block_forward.6} parent=5 // pred_fallthru
      _
  $region6: #{network_block_forward.6} parent=0 // loop_footer
    %s16 = sadd.s32 1, %s12
  $region7: #{network_block_forward.6} parent=0 // loop_footer_branch
    %11 = sbr.rel target = $region3
  $region8: #{network_block_forward.6} parent=0 // loop_exit
    _

</llo_original>
